<compile_context>
chip_gen: v5e
topology: v5e:2x2
jax: 0.10.0
libtpu: 0.0.40
codegen_flags: <defaults>
</compile_context>

<pallas_src>
import jax
import jax.numpy as jnp
from jax.experimental import pallas as pl
from jax.experimental.pallas import tpu as pltpu

BN_EPS = 1e-5


def _attention_kernel(g_ref, x_ref, wg_ref, wx_ref, wpsi_ref, b_ref, tpsi_ref,
                      out_ref):
    """One (channels, TILE) spatial slab of one batch item.

    NOTE(ragged tail): when S is not a multiple of the spatial tile, lanes past
    S in the last block hold unspecified data.  Every op below is lane-local
    (the matmuls contract over the sublane/channel axis only), so garbage stays
    confined to garbage lanes and is dropped by the masked output store.  Do
    NOT add cross-lane reductions here without an explicit tail mask.
    """
    g = g_ref[0]                 # (F_g, TILE), native dtype
    x = x_ref[0]                 # (F_l, TILE), native dtype

    # Folded conv+BN for both branches (BN scale baked into the weights,
    # combined bias added once).  f32 accumulation on the MXU.
    g1 = jnp.dot(wg_ref[...], g, preferred_element_type=jnp.float32)   # (F_int, TILE)
    x1 = jnp.dot(wx_ref[...], x, preferred_element_type=jnp.float32)   # (F_int, TILE)
    a = jnp.maximum(g1 + x1 + b_ref[...], 0.0)                         # ReLU

    # psi: folded 1-channel conv+BN, then sigmoid.  (1, F_int) @ (F_int, TILE).
    psi = jnp.dot(wpsi_ref[...], a, preferred_element_type=jnp.float32)
    psi = jax.nn.sigmoid(psi + tpsi_ref[...])                          # (1, TILE)

    # Gate the skip connection (sublane broadcast of psi over F_l channels).
    if x_ref.dtype == jnp.float32:
        gated = x * psi                          # f32 path
    else:
        gated = x * psi.astype(x_ref.dtype)      # bf16 gating (v6e/v7x VALU)
    out_ref[0] = gated.astype(out_ref.dtype)


def _fold_scale_shift(bias, gamma, beta, mean, var):
    """Fold conv bias + BatchNorm(eval) into per-channel scale/shift."""
    s = gamma / jnp.sqrt(var + BN_EPS)
    t = (bias - mean) * s + beta
    return s, t


def _vmem_capacity_bytes():
    """Per-core VMEM capacity, with a conservative fallback."""
    try:
        cap = int(getattr(pltpu.get_tpu_info(), "vmem_capacity_bytes", 0))
        if cap > 0:
            return cap
    except Exception:
        pass
    return 128 * 1024 * 1024


def _choose_tile(S, N, bytes_per_lane, budget, max_tile):
    """Pick the spatial tile (lanes per grid step).

    Largest 128-multiple tile whose double-buffered + intermediate footprint
    fits `budget`, capped at `max_tile` and at the largest 128-multiple <= S,
    then adjusted so both v7x TensorCores get work.
    """
    if S <= 128:
        return S                                    # full-extent block
    cdiv = lambda a, b: -(-a // b)

    t = budget // max(1, bytes_per_lane)
    t = min(t, max_tile, (S // 128) * 128)
    t = max(128, (t // 128) * 128)

    nb = cdiv(S, t)
    # Megacore: ensure at least 2 grid steps so both v7x TensorCores get work
    # (no-op / harmless on single-core v5e/v6e).
    if N * nb < 2 and S >= 256:
        t = min(t, max(128, ((S // 2 + 127) // 128) * 128))
        while cdiv(S, t) < 2 and t > 128:
            t -= 128
        nb = cdiv(S, t)

    # Mild preference for an even total step count (avoids an idle core in the
    # last v7x wave); only when the step count is small so the extra grid-step
    # overhead is negligible on single-core chips.
    steps = N * nb
    if steps % 2 == 1 and steps < 16:
        t2 = max(128, ((cdiv(S, nb + 1) + 127) // 128) * 128)
        if cdiv(S, t2) == nb + 1:
            t = t2
    return t


def attention_block(g, x, params, *, max_tile_lanes=65536):
    """g: (N, F_g, D, H, W), x: (N, F_l, D, H, W)  ->  (N, F_l, D, H, W).

    The spatial tile is derived from the running generation's VMEM capacity
    (v5e/v6e: 128 MiB, v7x: 64 MiB per TensorCore); `max_tile_lanes` is an
    upper cap that also keeps a few grid steps alive for DMA/compute overlap.
    """
    N, F_g, D, H, W = g.shape
    F_l = x.shape[1]
    F_int = params["wg"].shape[0]        # PyTorch conv weight: (out, in)
    S = D * H * W

    # NCDHW -> (N, C, S): contiguous reshape, no transpose, no data movement,
    # no padding (ragged tail handled in-kernel by Pallas edge-block masking).
    g3 = g.reshape(N, F_g, S)
    x3 = x.reshape(N, F_l, S)

    it_g = g.dtype.itemsize
    it_x = x.dtype.itemsize

    # Per-lane VMEM footprint of one grid step:
    #   double-buffered g/x input tiles + double-buffered output tile
    #   + f32 intermediates (g1, x1, a, psi) + the gated result.
    bytes_per_lane = (2 * (F_g * it_g + F_l * it_x)          # inputs (x2 buffers)
                      + 2 * (F_l * it_x)                     # output (x2 buffers)
                      + 4 * (3 * F_int + 1)                  # g1, x1, a, psi (f32)
                      + F_l * it_x)                          # gated result
    vmem_cap = _vmem_capacity_bytes()
    budget = max(1 << 20, int(vmem_cap * 0.45) - (1 << 20))  # ~28 MiB v7x / ~57 MiB v5e,v6e
    tile = _choose_tile(S, N, bytes_per_lane, budget, max_tile_lanes)

    footprint = bytes_per_lane * tile + (1 << 20)            # +weights/Mosaic slack
    vmem_limit = max(32 << 20, (footprint * 5) // 4)
    vmem_limit = int(min(vmem_limit, vmem_cap - (8 << 20)))

    # Fold conv bias + BatchNorm(eval) into the conv weights / a single bias.
    sg, tg = _fold_scale_shift(params["bg"], params["gamma_g"], params["beta_g"],
                               params["mean_g"], params["var_g"])
    sx, tx = _fold_scale_shift(params["bx"], params["gamma_x"], params["beta_x"],
                               params["mean_x"], params["var_x"])
    sp, tp = _fold_scale_shift(params["bpsi"], params["gamma_p"], params["beta_p"],
                               params["mean_p"], params["var_p"])

    wg_f = (params["wg"] * sg[:, None]).astype(g.dtype)        # (F_int, F_g)
    wx_f = (params["wx"] * sx[:, None]).astype(x.dtype)        # (F_int, F_l)
    bias = (tg + tx).reshape(F_int, 1).astype(jnp.float32)     # (F_int, 1)
    wpsi_f = (params["wpsi"] * sp).reshape(1, F_int).astype(jnp.float32)
    tpsi = tp.reshape(1, 1).astype(jnp.float32)

    grid = (N, pl.cdiv(S, tile))
    const = lambda shape: pl.BlockSpec(shape, lambda n, s: (0, 0))

    # Advisory cost estimate (matmuls + elementwise + sigmoid).
    M_vox = N * S
    flops = 2 * M_vox * F_int * (F_g + F_l + 1) + 6 * M_vox * F_int + 2 * M_vox * F_l
    bytes_acc = (g3.size * it_g + x3.size * it_x + M_vox * F_l * it_x
                 + wg_f.size * wg_f.dtype.itemsize + wx_f.size * wx_f.dtype.itemsize
                 + (bias.size + wpsi_f.size + tpsi.size) * 4)

    out3 = pl.pallas_call(
        _attention_kernel,
        out_shape=jax.ShapeDtypeStruct((N, F_l, S), x.dtype),
        grid_spec=pltpu.PrefetchScalarGridSpec(
            num_scalar_prefetch=0,
            grid=grid,
            in_specs=[
                pl.BlockSpec((1, F_g, tile), lambda n, s: (n, 0, s)),   # g tile
                pl.BlockSpec((1, F_l, tile), lambda n, s: (n, 0, s)),   # x tile
                const((F_int, F_g)),    # Wg (BN-folded)
                const((F_int, F_l)),    # Wx (BN-folded)
                const((1, F_int)),      # wpsi (BN-folded)
                const((F_int, 1)),      # combined bias tg + tx
                const((1, 1)),          # psi bias/shift
            ],
            out_specs=pl.BlockSpec((1, F_l, tile), lambda n, s: (n, 0, s)),
        ),
        compiler_params=pltpu.CompilerParams(
            dimension_semantics=("parallel", "parallel"),
            vmem_limit_bytes=int(vmem_limit)),
        cost_estimate=pl.CostEstimate(
            flops=int(flops),
            transcendentals=int(M_vox),
            bytes_accessed=int(bytes_acc)),
    )(g3, x3, wg_f, wx_f, wpsi_f, bias, tpsi)

    return out3.reshape(N, F_l, D, H, W)


def reference_attention_block(g, x, params):
    """Plain-JAX reference mirroring the PyTorch module (eval-mode BN)."""
    def bn(y, gamma, beta, mean, var):
        s = (gamma / jnp.sqrt(var + BN_EPS))[None, :, None]
        return (y - mean[None, :, None]) * s + beta[None, :, None]

    N, F_g, D, H, W = g.shape
    F_l = x.shape[1]
    gf = g.reshape(N, F_g, -1).astype(jnp.float32)
    xf = x.reshape(N, F_l, -1).astype(jnp.float32)

    g1 = jnp.einsum("oi,nis->nos", params["wg"], gf) + params["bg"][None, :, None]
    g1 = bn(g1, params["gamma_g"], params["beta_g"], params["mean_g"], params["var_g"])
    x1 = jnp.einsum("oi,nis->nos", params["wx"], xf) + params["bx"][None, :, None]
    x1 = bn(x1, params["gamma_x"], params["beta_x"], params["mean_x"], params["var_x"])
    a = jnp.maximum(g1 + x1, 0.0)
    p = jnp.einsum("i,nis->ns", params["wpsi"], a)[:, None, :] + params["bpsi"][None, :, None]
    p = bn(p, params["gamma_p"], params["beta_p"], params["mean_p"], params["var_p"])
    psi = jax.nn.sigmoid(p)
    out = xf * psi
    return out.reshape(N, F_l, D, H, W).astype(x.dtype)


def make_params(key, F_g, F_l, F_int):
    ks = jax.random.split(key, 8)
    return {
        # Conv3d weights in PyTorch orientation (out_ch, in_ch), kernel 1x1x1.
        "wg": 0.1 * jax.random.normal(ks[0], (F_int, F_g), jnp.float32),
        "bg": 0.1 * jax.random.normal(ks[1], (F_int,), jnp.float32),
        "wx": 0.1 * jax.random.normal(ks[2], (F_int, F_l), jnp.float32),
        "bx": 0.1 * jax.random.normal(ks[3], (F_int,), jnp.float32),
        # psi conv: (1, F_int, 1, 1, 1) -> (F_int,)
        "wpsi": 0.1 * jax.random.normal(ks[4], (F_int,), jnp.float32),
        "bpsi": 0.1 * jax.random.normal(ks[5], (1,), jnp.float32),
        # BatchNorm params (eval mode) — deterministic, non-trivial values.
        "gamma_g": 1.0 + 0.05 * jnp.arange(F_int, dtype=jnp.float32),
        "beta_g": 0.01 * jnp.arange(F_int, dtype=jnp.float32),
        "mean_g": 0.02 * jnp.arange(F_int, dtype=jnp.float32),
        "var_g": 1.0 + 0.03 * jnp.arange(F_int, dtype=jnp.float32),
        "gamma_x": 1.0 - 0.02 * jnp.arange(F_int, dtype=jnp.float32),
        "beta_x": -0.01 * jnp.arange(F_int, dtype=jnp.float32),
        "mean_x": -0.02 * jnp.arange(F_int, dtype=jnp.float32),
        "var_x": 1.0 + 0.01 * jnp.arange(F_int, dtype=jnp.float32),
        "gamma_p": jnp.array([1.1], jnp.float32),
        "beta_p": jnp.array([0.05], jnp.float32),
        "mean_p": jnp.array([0.02], jnp.float32),
        "var_p": jnp.array([1.2], jnp.float32),
    }


if __name__ == "__main__":
    key = jax.random.PRNGKey(0)
    kg, kx, kp = jax.random.split(key, 3)

    N, F_g, F_l, F_int = 2, 4, 4, 8
    D = H = W = 16                     # S = 4096

    g = jax.random.normal(kg, (N, F_g, D, H, W), jnp.float32)
    x = jax.random.normal(kx, (N, F_l, D, H, W), jnp.float32)
    params = make_params(kp, F_g, F_l, F_int)

    # f32 path.
    out = jax.block_until_ready(attention_block(g, x, params))
    ref = reference_attention_block(g, x, params)
    assert out.shape == x.shape
    # Tolerance accounts for the TPU MXU's default (reduced-precision) f32
    # matmul path, traversed with different operand layouts than the reference.
    max_err = float(jnp.max(jnp.abs(out - ref)))
    assert jnp.allclose(out, ref, atol=2e-3, rtol=2e-3), \
        f"mismatch vs reference (max |err| = {max_err})"

    # Ragged-S path (S = 210, not a multiple of 128): no padding, no slicing —
    # the ragged tail is handled by Pallas edge-block masking.
    g2 = jax.random.normal(kg, (1, F_g, 5, 6, 7), jnp.float32)
    x2 = jax.random.normal(kx, (1, F_l, 5, 6, 7), jnp.float32)
    out2 = jax.block_until_ready(attention_block(g2, x2, params))
    ref2 = reference_attention_block(g2, x2, params)
    max_err2 = float(jnp.max(jnp.abs(out2 - ref2)))
    assert jnp.allclose(out2, ref2, atol=2e-3, rtol=2e-3), \
        f"ragged-S mismatch vs reference (max |err| = {max_err2})"

    # bf16-activation path (halves HBM traffic; kernel gates in bf16).
    out_bf16 = jax.block_until_ready(
        attention_block(g.astype(jnp.bfloat16), x.astype(jnp.bfloat16), params))
    assert out_bf16.shape == x.shape and out_bf16.dtype == jnp.bfloat16
    assert bool(jnp.all(jnp.isfinite(out_bf16.astype(jnp.float32))))

    print("KERNEL_OK")
</pallas_src>

<mosaic_0001>
module attributes {stable_mosaic.version = 11 : i64} {
  func.func @_attention_kernel(%arg0: i32, %arg1: i32, %arg2: memref<1x4x4096xf32, #tpu.memory_space<vmem>>, %arg3: memref<1x4x4096xf32, #tpu.memory_space<vmem>>, %arg4: memref<8x4xf32, #tpu.memory_space<vmem>>, %arg5: memref<8x4xf32, #tpu.memory_space<vmem>>, %arg6: memref<1x8xf32, #tpu.memory_space<vmem>>, %arg7: memref<8x1xf32, #tpu.memory_space<vmem>>, %arg8: memref<1x1xf32, #tpu.memory_space<vmem>>, %arg9: memref<1x4x4096xf32, #tpu.memory_space<vmem>>) attributes {dimension_semantics = [#tpu.dimension_semantics<parallel>, #tpu.dimension_semantics<parallel>], iteration_bounds = array<i64: 2, 1>, scalar_prefetch = 0 : i64, scratch_operands = 0 : i64, tpu.core_type = #tpu.core_type<tc>, window_params = [{transform_indices = @transform_0, window_bounds = array<i64: 1, 4, 4096>}, {transform_indices = @transform_1, window_bounds = array<i64: 1, 4, 4096>}, {pipeline_mode = #tpu.pipeline_mode<synchronous>, transform_indices = @transform_2, window_bounds = array<i64: 8, 4>}, {pipeline_mode = #tpu.pipeline_mode<synchronous>, transform_indices = @transform_3, window_bounds = array<i64: 8, 4>}, {pipeline_mode = #tpu.pipeline_mode<synchronous>, transform_indices = @transform_4, window_bounds = array<i64: 1, 8>}, {pipeline_mode = #tpu.pipeline_mode<synchronous>, transform_indices = @transform_5, window_bounds = array<i64: 8, 1>}, {pipeline_mode = #tpu.pipeline_mode<synchronous>, transform_indices = @transform_6, window_bounds = array<i64: 1, 1>}, {transform_indices = @transform_7, window_bounds = array<i64: 1, 4, 4096>}]} {
    %c0 = arith.constant 0 : index
    %c0_0 = arith.constant 0 : index
    %c0_1 = arith.constant 0 : index
    %0 = vector.load %arg2[%c0, %c0_0, %c0_1] : memref<1x4x4096xf32, #tpu.memory_space<vmem>>, vector<1x4x4096xf32>
    %1 = vector.shape_cast %0 : vector<1x4x4096xf32> to vector<4x4096xf32>
    %c0_2 = arith.constant 0 : index
    %c0_3 = arith.constant 0 : index
    %c0_4 = arith.constant 0 : index
    %2 = vector.load %arg3[%c0_2, %c0_3, %c0_4] : memref<1x4x4096xf32, #tpu.memory_space<vmem>>, vector<1x4x4096xf32>
    %3 = vector.shape_cast %2 : vector<1x4x4096xf32> to vector<4x4096xf32>
    %c0_5 = arith.constant 0 : index
    %c0_6 = arith.constant 0 : index
    %4 = vector.load %arg4[%c0_5, %c0_6] : memref<8x4xf32, #tpu.memory_space<vmem>>, vector<8x4xf32>
    %cst = arith.constant dense<0.000000e+00> : vector<8x4096xf32>
    %5 = tpu.matmul %4, %1, %cst {dimension_numbers = #tpu.dot_dimension_numbers<[1], [0], [0], [1], [0, 0, 1, 1], [], []>} : vector<8x4xf32>, vector<4x4096xf32>, vector<8x4096xf32> -> vector<8x4096xf32>
    %c0_7 = arith.constant 0 : index
    %c0_8 = arith.constant 0 : index
    %6 = vector.load %arg5[%c0_7, %c0_8] : memref<8x4xf32, #tpu.memory_space<vmem>>, vector<8x4xf32>
    %cst_9 = arith.constant dense<0.000000e+00> : vector<8x4096xf32>
    %7 = tpu.matmul %6, %3, %cst_9 {dimension_numbers = #tpu.dot_dimension_numbers<[1], [0], [0], [1], [0, 0, 1, 1], [], []>} : vector<8x4xf32>, vector<4x4096xf32>, vector<8x4096xf32> -> vector<8x4096xf32>
    %8 = arith.addf %5, %7 : vector<8x4096xf32>
    %c0_10 = arith.constant 0 : index
    %c0_11 = arith.constant 0 : index
    %9 = vector.load %arg7[%c0_10, %c0_11] : memref<8x1xf32, #tpu.memory_space<vmem>>, vector<8x1xf32>
    %10 = vector.broadcast %9 : vector<8x1xf32> to vector<8x4096xf32>
    %11 = arith.addf %8, %10 : vector<8x4096xf32>
    %cst_12 = arith.constant 0.000000e+00 : f32
    %12 = vector.broadcast %cst_12 : f32 to vector<8x4096xf32>
    %13 = arith.maximumf %11, %12 : vector<8x4096xf32>
    %c0_13 = arith.constant 0 : index
    %c0_14 = arith.constant 0 : index
    %14 = vector.load %arg6[%c0_13, %c0_14] : memref<1x8xf32, #tpu.memory_space<vmem>>, vector<1x8xf32>
    %cst_15 = arith.constant dense<0.000000e+00> : vector<1x4096xf32>
    %15 = tpu.matmul %14, %13, %cst_15 {dimension_numbers = #tpu.dot_dimension_numbers<[1], [0], [0], [1], [0, 0, 1, 1], [], []>} : vector<1x8xf32>, vector<8x4096xf32>, vector<1x4096xf32> -> vector<1x4096xf32>
    %c0_16 = arith.constant 0 : index
    %c0_17 = arith.constant 0 : index
    %16 = vector.load %arg8[%c0_16, %c0_17] : memref<1x1xf32, #tpu.memory_space<vmem>>, vector<1x1xf32>
    %17 = vector.broadcast %16 : vector<1x1xf32> to vector<1x4096xf32>
    %18 = arith.addf %15, %17 : vector<1x4096xf32>
    %19 = arith.negf %18 : vector<1x4096xf32>
    %20 = math.exp %19 : vector<1x4096xf32>
    %cst_18 = arith.constant 1.000000e+00 : f32
    %21 = vector.broadcast %cst_18 : f32 to vector<1x4096xf32>
    %22 = arith.addf %21, %20 : vector<1x4096xf32>
    %23 = arith.divf %21, %22 : vector<1x4096xf32>
    %24 = vector.broadcast %23 : vector<1x4096xf32> to vector<4x4096xf32>
    %25 = arith.mulf %3, %24 : vector<4x4096xf32>
    %c0_19 = arith.constant 0 : index
    %c0_20 = arith.constant 0 : index
    %c0_21 = arith.constant 0 : index
    %26 = vector.load %arg9[%c0_19, %c0_20, %c0_21] : memref<1x4x4096xf32, #tpu.memory_space<vmem>>, vector<1x4x4096xf32>
    %27 = vector.shape_cast %26 : vector<1x4x4096xf32> to vector<4x4096xf32>
    %28 = vector.shape_cast %25 : vector<4x4096xf32> to vector<1x4x4096xf32>
    tpu.vector_store %arg9[%c0_19, %c0_20, %c0_21], %28 {strides = array<i32>} : memref<1x4x4096xf32, #tpu.memory_space<vmem>>, vector<1x4x4096xf32>,
    return
  }
  func.func @transform_0(%arg0: i32, %arg1: i32) -> (i32, i32, i32) {
    %c0_i32 = arith.constant 0 : i32
    %c0_i32_0 = arith.constant 0 : i32
    return %arg0, %c0_i32, %arg1 : i32, i32, i32
  }
  func.func @transform_1(%arg0: i32, %arg1: i32) -> (i32, i32, i32) {
    %c0_i32 = arith.constant 0 : i32
    %c0_i32_0 = arith.constant 0 : i32
    return %arg0, %c0_i32, %arg1 : i32, i32, i32
  }
  func.func @transform_2(%arg0: i32, %arg1: i32) -> (i32, i32) {
    %c0_i32 = arith.constant 0 : i32
    %c0_i32_0 = arith.constant 0 : i32
    %c0_i32_1 = arith.constant 0 : i32
    return %c0_i32, %c0_i32_0 : i32, i32
  }
  func.func @transform_3(%arg0: i32, %arg1: i32) -> (i32, i32) {
    %c0_i32 = arith.constant 0 : i32
    %c0_i32_0 = arith.constant 0 : i32
    %c0_i32_1 = arith.constant 0 : i32
    return %c0_i32, %c0_i32_0 : i32, i32
  }
  func.func @transform_4(%arg0: i32, %arg1: i32) -> (i32, i32) {
    %c0_i32 = arith.constant 0 : i32
    %c0_i32_0 = arith.constant 0 : i32
    %c0_i32_1 = arith.constant 0 : i32
    return %c0_i32, %c0_i32_0 : i32, i32
  }
  func.func @transform_5(%arg0: i32, %arg1: i32) -> (i32, i32) {
    %c0_i32 = arith.constant 0 : i32
    %c0_i32_0 = arith.constant 0 : i32
    %c0_i32_1 = arith.constant 0 : i32
    return %c0_i32, %c0_i32_0 : i32, i32
  }
  func.func @transform_6(%arg0: i32, %arg1: i32) -> (i32, i32) {
    %c0_i32 = arith.constant 0 : i32
    %c0_i32_0 = arith.constant 0 : i32
    %c0_i32_1 = arith.constant 0 : i32
    return %c0_i32, %c0_i32_0 : i32, i32
  }
  func.func @transform_7(%arg0: i32, %arg1: i32) -> (i32, i32, i32) {
    %c0_i32 = arith.constant 0 : i32
    %c0_i32_0 = arith.constant 0 : i32
    return %arg0, %c0_i32, %arg1 : i32, i32, i32
  }
}

</mosaic_0001>

<llo_original>
// kernel: tpu_custom_call.1
$region0: #{tpu_custom_call.1}
  #allocation0 [shape = 'u32[]', space=smem, size = 0x4, offset = 0x4, fixed_abs, tag = 'smem constant byte address 0x4 - core index']
  #allocation1 [shape = 'u32[72,128]{1,0:T(1,128)}', space=vmem, size = 0x9000, scoped, tag = 'internal scratch']
  #allocation2 [shape = 'f32[1,1]{1,0:T(1,128)S(1)}', space=vmem, size = 0x200, scoped, tag = 'scoped memory for tpu_custom_call.1']
  %s0 = inlined_call_operand.hbm [shape: f32[2,4,4096], index: 0, kind: input, shape index: {}]
  %s1 = inlined_call_operand.hbm [shape: f32[2,4,4096], index: 1, kind: input, shape index: {}]
  %s2 = inlined_call_operand.vmem [shape: f32[8,4], index: 2, kind: input, shape index: {}]
  %s3 = inlined_call_operand.vmem [shape: f32[8,4], index: 3, kind: input, shape index: {}]
  %s4 = inlined_call_operand.vmem [shape: f32[1,8], index: 4, kind: input, shape index: {}]
  %s5 = inlined_call_operand.vmem [shape: f32[8,1], index: 5, kind: input, shape index: {}]
  %s6 = inlined_call_operand.<no memory space> [shape: f32[1,1], index: 6, kind: input, shape index: {}]
  %s7 = inlined_call_operand.hbm [shape: f32[2,4,4096], index: 7, kind: output, shape index: {}]
  %s8 = sld [smem:[#allocation0]]
  $region69: #{tpu_custom_call.1} parent=0
    _
  %s10 = ssub.s32 1, %s8
  %s11 = scalar_select 0, %s10, %s8
  %v12 = vstv %s6
  %13 = vst [vmem:[#allocation2] sm:$0x1] %v12
  $region1: #{tpu_custom_call.1} parent=0
    #allocation3 [shape = 'u8[131072]{0}', space=vmem, size = 0x20000, scoped, tag = 'input window, operand 0']
    #allocation4 [shape = 's32[2]{0}', space=sflag, size = 0x8, scoped, tag = 'scoped memory for tpu_custom_call.1']
    #allocation5 [shape = 's32[2]{0}', space=sflag, size = 0x8, scoped, tag = 'scoped memory for tpu_custom_call.1']
    #allocation6 [shape = 'u8[131072]{0}', space=vmem, size = 0x20000, scoped, tag = 'input window, operand 1']
    #allocation7 [shape = 's32[2]{0}', space=sflag, size = 0x8, scoped, tag = 'scoped memory for tpu_custom_call.1']
    #allocation8 [shape = 'u8[131072]{0}', space=vmem, size = 0x20000, scoped, tag = 'output window, operand 0']
    %14 = vsyncpa [#allocation4], 0
    %s15 = scalar_lea.sflag [#allocation4], 1
    %16 = vsyncpa %s15, 0
    %17 = vsyncpa [#allocation7], 0
    %s18 = scalar_lea.sflag [#allocation7], 1
    %19 = vsyncpa %s18, 0
    %20 = vsyncpa [#allocation5], 0
    %s21 = scalar_lea.sflag [#allocation5], 1
    %22 = vsyncpa %s21, 0
    loop: start=0, step=1, limit=4
    $region2: #{tpu_custom_call.1} parent=1 // loop_pre_header
      _
    $region3: #{tpu_custom_call.1} parent=1 // loop_header
      %s24 = sphi 0, %s28
      %p25 = scmp.ge.s32.totalorder %s24, 4
      %s31 = sphi 0, %s43
      %s32 = sphi 0, %s39
      %s33 = sphi 0, %s31
      %s34 = sphi 0, %s32
      %s35 = sphi 0, %s33
      %s36 = sphi 0, %s34
      %s48 = sphi 0, %s50
      %s51 = sphi 0, %s48
      %s52 = sphi 0, %s51
      %s68 = sphi 0, %s52
      %s76 = sphi 0, %s78
      %s79 = sphi 0, %s76
      %s80 = sphi 0, %s79
      %s96 = sphi 0, %s80
      %s100 = sphi 0, %s100
      %s102 = sphi 0, %s100
      %s103 = sphi 0, %s102
      %s117 = sphi 0, %s103
      %s121 = sphi 0, %s121
      %s123 = sphi 0, %s121
      %s124 = sphi 0, %s123
      %s138 = sphi 0, %s124
      %s142 = sphi 0, %s142
      %s144 = sphi 0, %s142
      %s145 = sphi 0, %s144
      %s159 = sphi 0, %s145
      %s163 = sphi 0, %s163
      %s165 = sphi 0, %s163
      %s166 = sphi 0, %s165
      %s180 = sphi 0, %s166
      %s184 = sphi 0, %s184
      %s186 = sphi 0, %s184
      %s187 = sphi 0, %s186
      %s201 = sphi 0, %s187
      %s209 = sphi 0, %s211
      %s212 = sphi 0, %s209
      %s213 = sphi 0, %s212
      %s229 = sphi 0, %s213
    $region4: #{tpu_custom_call.1} parent=1 // loop_header_branch
      %27 = sbr.rel (%p25) target = $region8
    $region5: #{tpu_custom_call.1} parent=1 // loop_body
      %s29 = ssub.s32 %s24, 1
      %s30 = ssub.s32 %s24, 2
      %s37 = sadd.s32 1, %s32
      %p38 = scmp.ge.s32.totalorder %s37, 1
      %s39 = scalar_select %p38, 0, %s37
      %s40 = sadd.s32 1, %s31
      %s41 = scalar_select %p38, %s40, %s31
      %p42 = scmp.ge.s32.totalorder %s41, 2
      %s43 = scalar_select %p42, 0, %s41
      %s44 = ssub.s32 %s31, %s43
      %s45 = ssub.s32 %s32, %s39
      %s46 = sor.u32 %s44, %s45
      %p47 = scmp.eq.s32.totalorder %s46, 0
      %s49 = sadd.s32 %s48, 1
      %s50 = scalar_select %p47, %s48, %s49
      %p53 = pneg %p47
      %p54 = scmp.eq.s32.totalorder %s24, 1
      %p55 = por %p53, %p54
      %p56 = scmp.ne.s32.totalorder %s48, %s51
      %p57 = scmp.eq.s32.totalorder %s24, 0
      %p58 = por %p56, %p57
      %p59 = scmp.ne.s32.totalorder %s48, %s51
      %p60 = scmp.eq.s32.totalorder %s29, 1
      %p61 = por %p59, %p60
      %p62 = scmp.ne.s32.totalorder %s51, %s52
      %p63 = scmp.eq.s32.totalorder %s29, 0
      %p64 = por %p62, %p63
      %p65 = scmp.ne.s32.totalorder %s51, %s52
      %p66 = scmp.eq.s32.totalorder %s30, 1
      %p67 = por %p65, %p66
      %p69 = scmp.ne.s32.totalorder %s52, %s68
      %p70 = scmp.eq.s32.totalorder %s30, 0
      %p71 = por %p69, %p70
      %s72 = ssub.s32 %s31, %s43
      %s73 = ssub.s32 %s32, %s39
      %s74 = sor.u32 %s72, %s73
      %p75 = scmp.eq.s32.totalorder %s74, 0
      %s77 = sadd.s32 %s76, 1
      %s78 = scalar_select %p75, %s76, %s77
      %p81 = pneg %p75
      %p82 = scmp.eq.s32.totalorder %s24, 1
      %p83 = por %p81, %p82
      %p84 = scmp.ne.s32.totalorder %s76, %s79
      %p85 = scmp.eq.s32.totalorder %s24, 0
      %p86 = por %p84, %p85
      %p87 = scmp.ne.s32.totalorder %s76, %s79
      %p88 = scmp.eq.s32.totalorder %s29, 1
      %p89 = por %p87, %p88
      %p90 = scmp.ne.s32.totalorder %s79, %s80
      %p91 = scmp.eq.s32.totalorder %s29, 0
      %p92 = por %p90, %p91
      %p93 = scmp.ne.s32.totalorder %s79, %s80
      %p94 = scmp.eq.s32.totalorder %s30, 1
      %p95 = por %p93, %p94
      %p97 = scmp.ne.s32.totalorder %s80, %s96
      %p98 = scmp.eq.s32.totalorder %s30, 0
      %p99 = por %p97, %p98
      %s101 = sadd.s32 %s100, 1
      %p104 = scmp.eq.s32.totalorder %s24, 1
      %p105 = scmp.ne.s32.totalorder %s100, %s102
      %p106 = scmp.eq.s32.totalorder %s24, 0
      %p107 = por %p105, %p106
      %p108 = scmp.ne.s32.totalorder %s100, %s102
      %p109 = scmp.eq.s32.totalorder %s29, 1
      %p110 = por %p108, %p109
      %p111 = scmp.ne.s32.totalorder %s102, %s103
      %p112 = scmp.eq.s32.totalorder %s29, 0
      %p113 = por %p111, %p112
      %p114 = scmp.ne.s32.totalorder %s102, %s103
      %p115 = scmp.eq.s32.totalorder %s30, 1
      %p116 = por %p114, %p115
      %p118 = scmp.ne.s32.totalorder %s103, %s117
      %p119 = scmp.eq.s32.totalorder %s30, 0
      %p120 = por %p118, %p119
      %s122 = sadd.s32 %s121, 1
      %p125 = scmp.eq.s32.totalorder %s24, 1
      %p126 = scmp.ne.s32.totalorder %s121, %s123
      %p127 = scmp.eq.s32.totalorder %s24, 0
      %p128 = por %p126, %p127
      %p129 = scmp.ne.s32.totalorder %s121, %s123
      %p130 = scmp.eq.s32.totalorder %s29, 1
      %p131 = por %p129, %p130
      %p132 = scmp.ne.s32.totalorder %s123, %s124
      %p133 = scmp.eq.s32.totalorder %s29, 0
      %p134 = por %p132, %p133
      %p135 = scmp.ne.s32.totalorder %s123, %s124
      %p136 = scmp.eq.s32.totalorder %s30, 1
      %p137 = por %p135, %p136
      %p139 = scmp.ne.s32.totalorder %s124, %s138
      %p140 = scmp.eq.s32.totalorder %s30, 0
      %p141 = por %p139, %p140
      %s143 = sadd.s32 %s142, 1
      %p146 = scmp.eq.s32.totalorder %s24, 1
      %p147 = scmp.ne.s32.totalorder %s142, %s144
      %p148 = scmp.eq.s32.totalorder %s24, 0
      %p149 = por %p147, %p148
      %p150 = scmp.ne.s32.totalorder %s142, %s144
      %p151 = scmp.eq.s32.totalorder %s29, 1
      %p152 = por %p150, %p151
      %p153 = scmp.ne.s32.totalorder %s144, %s145
      %p154 = scmp.eq.s32.totalorder %s29, 0
      %p155 = por %p153, %p154
      %p156 = scmp.ne.s32.totalorder %s144, %s145
      %p157 = scmp.eq.s32.totalorder %s30, 1
      %p158 = por %p156, %p157
      %p160 = scmp.ne.s32.totalorder %s145, %s159
      %p161 = scmp.eq.s32.totalorder %s30, 0
      %p162 = por %p160, %p161
      %s164 = sadd.s32 %s163, 1
      %p167 = scmp.eq.s32.totalorder %s24, 1
      %p168 = scmp.ne.s32.totalorder %s163, %s165
      %p169 = scmp.eq.s32.totalorder %s24, 0
      %p170 = por %p168, %p169
      %p171 = scmp.ne.s32.totalorder %s163, %s165
      %p172 = scmp.eq.s32.totalorder %s29, 1
      %p173 = por %p171, %p172
      %p174 = scmp.ne.s32.totalorder %s165, %s166
      %p175 = scmp.eq.s32.totalorder %s29, 0
      %p176 = por %p174, %p175
      %p177 = scmp.ne.s32.totalorder %s165, %s166
      %p178 = scmp.eq.s32.totalorder %s30, 1
      %p179 = por %p177, %p178
      %p181 = scmp.ne.s32.totalorder %s166, %s180
      %p182 = scmp.eq.s32.totalorder %s30, 0
      %p183 = por %p181, %p182
      %s185 = sadd.s32 %s184, 1
      %p188 = scmp.eq.s32.totalorder %s24, 1
      %p189 = scmp.ne.s32.totalorder %s184, %s186
      %p190 = scmp.eq.s32.totalorder %s24, 0
      %p191 = por %p189, %p190
      %p192 = scmp.ne.s32.totalorder %s184, %s186
      %p193 = scmp.eq.s32.totalorder %s29, 1
      %p194 = por %p192, %p193
      %p195 = scmp.ne.s32.totalorder %s186, %s187
      %p196 = scmp.eq.s32.totalorder %s29, 0
      %p197 = por %p195, %p196
      %p198 = scmp.ne.s32.totalorder %s186, %s187
      %p199 = scmp.eq.s32.totalorder %s30, 1
      %p200 = por %p198, %p199
      %p202 = scmp.ne.s32.totalorder %s187, %s201
      %p203 = scmp.eq.s32.totalorder %s30, 0
      %p204 = por %p202, %p203
      %s205 = ssub.s32 %s31, %s43
      %s206 = ssub.s32 %s32, %s39
      %s207 = sor.u32 %s205, %s206
      %p208 = scmp.eq.s32.totalorder %s207, 0
      %s210 = sadd.s32 %s209, 1
      %s211 = scalar_select %p208, %s209, %s210
      %p214 = pneg %p208
      %p215 = scmp.eq.s32.totalorder %s24, 1
      %p216 = por %p214, %p215
      %p217 = scmp.ne.s32.totalorder %s209, %s212
      %p218 = scmp.eq.s32.totalorder %s24, 0
      %p219 = por %p217, %p218
      %p220 = scmp.ne.s32.totalorder %s209, %s212
      %p221 = scmp.eq.s32.totalorder %s29, 1
      %p222 = por %p220, %p221
      %p223 = scmp.ne.s32.totalorder %s212, %s213
      %p224 = scmp.eq.s32.totalorder %s29, 0
      %p225 = por %p223, %p224
      %p226 = scmp.ne.s32.totalorder %s212, %s213
      %p227 = scmp.eq.s32.totalorder %s30, 1
      %p228 = por %p226, %p227
      %p230 = scmp.ne.s32.totalorder %s213, %s229
      %p231 = scmp.eq.s32.totalorder %s30, 0
      %p232 = por %p230, %p231
      %p233 = scmp.le.s32.totalorder 1, %s24
      %p234 = scmp.lt.s32.totalorder %s24, 3
      %p235 = pnand %p233, %p234
      %p236 = pneg %p235
      // Predicated region
      $region9: #{tpu_custom_call.1} parent=5 // pred_check
        _
      $region10: #{tpu_custom_call.1} parent=5 // pred_check_branch
        %238 = sbr.rel (%p235) target = $region12
      $region11: #{tpu_custom_call.1} parent=5 // pred_region
        %s239 = ssub.s32 %s24, 1
        // Predicated region
        $region13: #{tpu_custom_call.1} parent=11 // pred_check
          %p240 = pneg %p113
        $region14: #{tpu_custom_call.1} parent=11 // pred_check_branch
          %242 = sbr.rel (%p240) target = $region16
        $region15: #{tpu_custom_call.1} parent=11 // pred_region
          _
        $region16: #{tpu_custom_call.1} parent=11 // pred_fallthru
          _
        // Predicated region
        $region17: #{tpu_custom_call.1} parent=11 // pred_check
          %p243 = pneg %p134
        $region18: #{tpu_custom_call.1} parent=11 // pred_check_branch
          %245 = sbr.rel (%p243) target = $region20
        $region19: #{tpu_custom_call.1} parent=11 // pred_region
          _
        $region20: #{tpu_custom_call.1} parent=11 // pred_fallthru
          _
        // Predicated region
        $region21: #{tpu_custom_call.1} parent=11 // pred_check
          %p246 = pneg %p155
        $region22: #{tpu_custom_call.1} parent=11 // pred_check_branch
          %248 = sbr.rel (%p246) target = $region24
        $region23: #{tpu_custom_call.1} parent=11 // pred_region
          _
        $region24: #{tpu_custom_call.1} parent=11 // pred_fallthru
          _
        // Predicated region
        $region25: #{tpu_custom_call.1} parent=11 // pred_check
          %p249 = pneg %p176
        $region26: #{tpu_custom_call.1} parent=11 // pred_check_branch
          %251 = sbr.rel (%p249) target = $region28
        $region27: #{tpu_custom_call.1} parent=11 // pred_region
          _
        $region28: #{tpu_custom_call.1} parent=11 // pred_fallthru
          _
        // Predicated region
        $region29: #{tpu_custom_call.1} parent=11 // pred_check
          %p252 = pneg %p197
        $region30: #{tpu_custom_call.1} parent=11 // pred_check_branch
          %254 = sbr.rel (%p252) target = $region32
        $region31: #{tpu_custom_call.1} parent=11 // pred_region
          _
        $region32: #{tpu_custom_call.1} parent=11 // pred_fallthru
          _
      $region12: #{tpu_custom_call.1} parent=5 // pred_fallthru
        _
      %p255 = scmp.lt.s32.totalorder %s24, 2
      // Predicated region
      $region33: #{tpu_custom_call.1} parent=5 // pred_check
        %p256 = pneg %p255
      $region34: #{tpu_custom_call.1} parent=5 // pred_check_branch
        %258 = sbr.rel (%p256) target = $region36
      $region35: #{tpu_custom_call.1} parent=5 // pred_region
        // Predicated region
        $region37: #{tpu_custom_call.1} parent=35 // pred_check
          %p259 = pneg %p58
        $region38: #{tpu_custom_call.1} parent=35 // pred_check_branch
          %261 = sbr.rel (%p259) target = $region40
        $region39: #{tpu_custom_call.1} parent=35 // pred_region
          %s262 = sand.u32 %s48, 1
          %s263 = scalar_lea.sflag [#allocation4], %s262
          %s264 = sand.u32 %s48, 1
          %s265 = smul.addr %s264, 128
          %s266 = scalar_lea.vmem [#allocation3], %s265
          %s267 = smul.u32 32, %s32
          %269 = vsyncadd %s263, 0
          %s270 = smul.addr %s31, 32
          %s271 = sadd.s32 %s267, %s270
          %s272 = smul.addr %s271, 4
          %s273 = scalar_lea.hbm %s0, %s272
          %s275 = sshll.u32 %s273, 4
          %s276 = int_to_ptr.hbm [resolvable:$true] %s275
          %s277 = sshll.u32 %s266, 4
          %s278 = int_to_ptr.vmem [resolvable:$true] %s277
          %280 = dma.hbm_to_vmem [thread:$0]  %s276, 2048, %s278, %s263
        $region40: #{tpu_custom_call.1} parent=35 // pred_fallthru
          _
        // Predicated region
        $region41: #{tpu_custom_call.1} parent=35 // pred_check
          %p281 = pneg %p86
        $region42: #{tpu_custom_call.1} parent=35 // pred_check_branch
          %283 = sbr.rel (%p281) target = $region44
        $region43: #{tpu_custom_call.1} parent=35 // pred_region
          %s284 = sand.u32 %s76, 1
          %s285 = scalar_lea.sflag [#allocation7], %s284
          %s286 = sand.u32 %s76, 1
          %s287 = smul.addr %s286, 128
          %s288 = scalar_lea.vmem [#allocation6], %s287
          %s289 = smul.u32 32, %s32
          %291 = vsyncadd %s285, 0
          %s292 = smul.addr %s31, 32
          %s293 = sadd.s32 %s289, %s292
          %s294 = smul.addr %s293, 4
          %s295 = scalar_lea.hbm %s1, %s294
          %s297 = sshll.u32 %s295, 4
          %s298 = int_to_ptr.hbm [resolvable:$true] %s297
          %s299 = sshll.u32 %s288, 4
          %s300 = int_to_ptr.vmem [resolvable:$true] %s299
          %302 = dma.hbm_to_vmem [thread:$0]  %s298, 2048, %s300, %s285
        $region44: #{tpu_custom_call.1} parent=35 // pred_fallthru
          _
      $region36: #{tpu_custom_call.1} parent=5 // pred_fallthru
        _
      %p303 = scmp.le.s32.totalorder 1, %s24
      %p304 = scmp.lt.s32.totalorder %s24, 3
      %p305 = pnand %p303, %p304
      %p306 = pneg %p305
      // Predicated region
      $region45: #{tpu_custom_call.1} parent=5 // pred_check
        _
      $region46: #{tpu_custom_call.1} parent=5 // pred_check_branch
        %308 = sbr.rel (%p305) target = $region48
      $region47: #{tpu_custom_call.1} parent=5 // pred_region
        %s309 = ssub.s32 %s24, 1
        %s310 = sand.u32 %s51, 1
        %s311 = scalar_lea.sflag [#allocation4], %s310
        %s312 = sand.u32 %s51, 1
        %s313 = smul.addr %s312, 128
        %s314 = scalar_lea.vmem [#allocation3], %s313
        // Predicated region
        $region49: #{tpu_custom_call.1} parent=47 // pred_check
          %p315 = pneg %p64
        $region50: #{tpu_custom_call.1} parent=47 // pred_check_branch
          %317 = sbr.rel (%p315) target = $region52
        $region51: #{tpu_custom_call.1} parent=47 // pred_region
          %319 = dma.done %s311, 2048
        $region52: #{tpu_custom_call.1} parent=47 // pred_fallthru
          _
        %s320 = sand.u32 %s79, 1
        %s321 = scalar_lea.sflag [#allocation7], %s320
        %s322 = sand.u32 %s79, 1
        %s323 = smul.addr %s322, 128
        %s324 = scalar_lea.vmem [#allocation6], %s323
        // Predicated region
        $region53: #{tpu_custom_call.1} parent=47 // pred_check
          %p325 = pneg %p92
        $region54: #{tpu_custom_call.1} parent=47 // pred_check_branch
          %327 = sbr.rel (%p325) target = $region56
        $region55: #{tpu_custom_call.1} parent=47 // pred_region
          %329 = dma.done %s321, 2048
        $region56: #{tpu_custom_call.1} parent=47 // pred_fallthru
          _
        %s330 = sand.u32 %s51, 1
        %s331 = scalar_lea.sflag [#allocation4], %s330
        %s332 = sand.u32 %s51, 1
        %s333 = smul.addr %s332, 128
        %s334 = scalar_lea.vmem [#allocation3], %s333
        %p335 = pneg %p64
        %p336 = pneg %p61
        %s337 = sand.u32 %s79, 1
        %s338 = scalar_lea.sflag [#allocation7], %s337
        %s339 = sand.u32 %s79, 1
        %s340 = smul.addr %s339, 128
        %s341 = scalar_lea.vmem [#allocation6], %s340
        %p342 = pneg %p92
        %p343 = pneg %p89
        %p344 = pneg %p113
        %p345 = pneg %p110
        %p346 = pneg %p134
        %p347 = pneg %p131
        %p348 = pneg %p155
        %p349 = pneg %p152
        %p350 = pneg %p176
        %p351 = pneg %p173
        %p352 = pneg %p197
        %p353 = pneg %p194
        %p354 = pneg %p225
        %p355 = pneg %p222
        %s356 = sand.u32 %s212, 1
        %s357 = scalar_lea.sflag [#allocation5], %s356
        %s358 = sand.u32 %s212, 1
        %s359 = smul.addr %s358, 128
        %s360 = scalar_lea.vmem [#allocation8], %s359
        %s361 = smul.u32 32, %s34
        %s362 = smul.u32 32, %s34
        %s363 = smul.u32 32, %s34
        %v364 = vld [vmem:[%s314] sm:$0xff]
        %v365 = vld [vmem:[%s314 + $0x8] sm:$0xff]
        %v366 = vld [vmem:[%s314 + $0x10] sm:$0xff]
        %v367 = vld [vmem:[%s314 + $0x18] sm:$0xff]
        %v368 = vld [vmem:[%s314 + $0x20] sm:$0xff]
        %v369 = vld [vmem:[%s314 + $0x28] sm:$0xff]
        %v370 = vld [vmem:[%s314 + $0x30] sm:$0xff]
        %v371 = vld [vmem:[%s314 + $0x38] sm:$0xff]
        %v372 = vld [vmem:[%s314 + $0x40] sm:$0xff]
        %v373 = vld [vmem:[%s314 + $0x48] sm:$0xff]
        %v374 = vld [vmem:[%s314 + $0x50] sm:$0xff]
        %v375 = vld [vmem:[%s314 + $0x58] sm:$0xff]
        %v376 = vld [vmem:[%s314 + $0x60] sm:$0xff]
        %v377 = vld [vmem:[%s314 + $0x68] sm:$0xff]
        %v378 = vld [vmem:[%s314 + $0x70] sm:$0xff]
        %v379 = vld [vmem:[%s314 + $0x78] sm:$0xff]
        %v380 = vld [vmem:[%s324] sm:$0xff]
        %v381 = vld [vmem:[%s324 + $0x8] sm:$0xff]
        %v382 = vld [vmem:[%s324 + $0x10] sm:$0xff]
        %v383 = vld [vmem:[%s324 + $0x18] sm:$0xff]
        %v384 = vld [vmem:[%s324 + $0x20] sm:$0xff]
        %v385 = vld [vmem:[%s324 + $0x28] sm:$0xff]
        %v386 = vld [vmem:[%s324 + $0x30] sm:$0xff]
        %v387 = vld [vmem:[%s324 + $0x38] sm:$0xff]
        %v388 = vld [vmem:[%s324 + $0x40] sm:$0xff]
        %v389 = vld [vmem:[%s324 + $0x48] sm:$0xff]
        %v390 = vld [vmem:[%s324 + $0x50] sm:$0xff]
        %v391 = vld [vmem:[%s324 + $0x58] sm:$0xff]
        %v392 = vld [vmem:[%s324 + $0x60] sm:$0xff]
        %v393 = vld [vmem:[%s324 + $0x68] sm:$0xff]
        %v394 = vld [vmem:[%s324 + $0x70] sm:$0xff]
        %v395 = vld [vmem:[%s324 + $0x78] sm:$0xff]
        %v396 = vld [vmem:[%s2] sm:$0xff]
        %v397 = vld [vmem:[%s3] sm:$0xff]
        %414 = vst [vmem:[#allocation1] ss:$2 sm:$0xff] %v380
        %s415 = scalar_lea.vmem [#allocation1], 16
        %416 = vst [vmem:[%s415] ss:$2 sm:$0xff] %v381
        %s417 = scalar_lea.vmem [#allocation1], 32
        %418 = vst [vmem:[%s417] ss:$2 sm:$0xff] %v382
        %s419 = scalar_lea.vmem [#allocation1], 48
        %420 = vst [vmem:[%s419] ss:$2 sm:$0xff] %v383
        %v421 = vld.sshfl [vmem:[#allocation1] sm:$0xff pattern:$0x75316420]
        %v422 = vld.sshfl [vmem:[#allocation1 + $0x8] sm:$0xff pattern:$0x75316420]
        %v423 = vld.sshfl [vmem:[#allocation1 + $0x10] sm:$0xff pattern:$0x75316420]
        %v424 = vld.sshfl [vmem:[#allocation1 + $0x18] sm:$0xff pattern:$0x75316420]
        %v425 = vld.sshfl [vmem:[#allocation1 + $0x20] sm:$0xff pattern:$0x75316420]
        %v426 = vld.sshfl [vmem:[#allocation1 + $0x28] sm:$0xff pattern:$0x75316420]
        %v427 = vld.sshfl [vmem:[#allocation1 + $0x30] sm:$0xff pattern:$0x75316420]
        %v428 = vld.sshfl [vmem:[#allocation1 + $0x38] sm:$0xff pattern:$0x75316420]
        %429 = vst [vmem:[#allocation1] ss:$2 sm:$0xff] %v384
        %430 = vst [vmem:[%s415] ss:$2 sm:$0xff] %v385
        %431 = vst [vmem:[%s417] ss:$2 sm:$0xff] %v386
        %432 = vst [vmem:[%s419] ss:$2 sm:$0xff] %v387
        %v433 = vld.sshfl [vmem:[#allocation1] sm:$0xff pattern:$0x75316420]
        %v434 = vld.sshfl [vmem:[#allocation1 + $0x8] sm:$0xff pattern:$0x75316420]
        %v435 = vld.sshfl [vmem:[#allocation1 + $0x10] sm:$0xff pattern:$0x75316420]
        %v436 = vld.sshfl [vmem:[#allocation1 + $0x18] sm:$0xff pattern:$0x75316420]
        %v437 = vld.sshfl [vmem:[#allocation1 + $0x20] sm:$0xff pattern:$0x75316420]
        %v438 = vld.sshfl [vmem:[#allocation1 + $0x28] sm:$0xff pattern:$0x75316420]
        %v439 = vld.sshfl [vmem:[#allocation1 + $0x30] sm:$0xff pattern:$0x75316420]
        %v440 = vld.sshfl [vmem:[#allocation1 + $0x38] sm:$0xff pattern:$0x75316420]
        %441 = vst [vmem:[#allocation1] ss:$2 sm:$0xff] %v388
        %442 = vst [vmem:[%s415] ss:$2 sm:$0xff] %v389
        %443 = vst [vmem:[%s417] ss:$2 sm:$0xff] %v390
        %444 = vst [vmem:[%s419] ss:$2 sm:$0xff] %v391
        %v445 = vld.sshfl [vmem:[#allocation1] sm:$0xff pattern:$0x75316420]
        %v446 = vld.sshfl [vmem:[#allocation1 + $0x8] sm:$0xff pattern:$0x75316420]
        %v447 = vld.sshfl [vmem:[#allocation1 + $0x10] sm:$0xff pattern:$0x75316420]
        %v448 = vld.sshfl [vmem:[#allocation1 + $0x18] sm:$0xff pattern:$0x75316420]
        %v449 = vld.sshfl [vmem:[#allocation1 + $0x20] sm:$0xff pattern:$0x75316420]
        %v450 = vld.sshfl [vmem:[#allocation1 + $0x28] sm:$0xff pattern:$0x75316420]
        %v451 = vld.sshfl [vmem:[#allocation1 + $0x30] sm:$0xff pattern:$0x75316420]
        %v452 = vld.sshfl [vmem:[#allocation1 + $0x38] sm:$0xff pattern:$0x75316420]
        %453 = vst [vmem:[#allocation1] ss:$2 sm:$0xff] %v392
        %454 = vst [vmem:[%s415] ss:$2 sm:$0xff] %v393
        %455 = vst [vmem:[%s417] ss:$2 sm:$0xff] %v394
        %456 = vst [vmem:[%s419] ss:$2 sm:$0xff] %v395
        %v457 = vld.sshfl [vmem:[#allocation1] sm:$0xff pattern:$0x75316420]
        %v458 = vld.sshfl [vmem:[#allocation1 + $0x8] sm:$0xff pattern:$0x75316420]
        %v459 = vld.sshfl [vmem:[#allocation1 + $0x10] sm:$0xff pattern:$0x75316420]
        %v460 = vld.sshfl [vmem:[#allocation1 + $0x18] sm:$0xff pattern:$0x75316420]
        %v461 = vld.sshfl [vmem:[#allocation1 + $0x20] sm:$0xff pattern:$0x75316420]
        %v462 = vld.sshfl [vmem:[#allocation1 + $0x28] sm:$0xff pattern:$0x75316420]
        %v463 = vld.sshfl [vmem:[#allocation1 + $0x30] sm:$0xff pattern:$0x75316420]
        %v464 = vld.sshfl [vmem:[#allocation1 + $0x38] sm:$0xff pattern:$0x75316420]
        %vm465 = vcmask 31744
        %v467 = vsel %vm465, %v397, 0
        %vm469 = vcmask 1043456
        %v470 = vsel %vm469, %v421, 0
        %v472 = vsel %vm469, %v422, 0
        %v474 = vsel %vm469, %v423, 0
        %v476 = vsel %vm469, %v424, 0
        %v478 = vsel %vm469, %v425, 0
        %v480 = vsel %vm469, %v426, 0
        %v482 = vsel %vm469, %v427, 0
        %v484 = vsel %vm469, %v428, 0
        %v486 = vsel %vm469, %v433, 0
        %v488 = vsel %vm469, %v434, 0
        %v490 = vsel %vm469, %v435, 0
        %v492 = vsel %vm469, %v436, 0
        %v494 = vsel %vm469, %v437, 0
        %v496 = vsel %vm469, %v438, 0
        %v498 = vsel %vm469, %v439, 0
        %v500 = vsel %vm469, %v440, 0
        %v502 = vsel %vm469, %v445, 0
        %v504 = vsel %vm469, %v446, 0
        %v506 = vsel %vm469, %v447, 0
        %v508 = vsel %vm469, %v448, 0
        %v510 = vsel %vm469, %v449, 0
        %v512 = vsel %vm469, %v450, 0
        %v514 = vsel %vm469, %v451, 0
        %v516 = vsel %vm469, %v452, 0
        %v518 = vsel %vm469, %v457, 0
        %v520 = vsel %vm469, %v458, 0
        %v522 = vsel %vm469, %v459, 0
        %v524 = vsel %vm469, %v460, 0
        %v526 = vsel %vm469, %v461, 0
        %v528 = vsel %vm469, %v462, 0
        %v530 = vsel %vm469, %v463, 0
        %v532 = vsel %vm469, %v464, 0
        %534 = vmatpush.msra.mxu0 0.0
        %535 = vmatpush.msra.mxu0 0.0
        %536 = vmatpush.msra.mxu0 0.0
        %537 = vmatpush.msra.mxu0 0.0
        %538 = vmatpush.msra.mxu0 0.0
        %539 = vmatpush.msra.mxu0 0.0
        %540 = vmatpush.msra.mxu0 0.0
        %541 = vmatpush.msra.mxu0 0.0
        %542 = vmatpush.msra.mxu0 0.0
        %543 = vmatpush.msra.mxu0 0.0
        %544 = vmatpush.msra.mxu0 0.0
        %545 = vmatpush.msra.mxu0 0.0
        %546 = vmatpush.msra.mxu0 0.0
        %547 = vmatpush.msra.mxu0 0.0
        %548 = vmatpush.msra.mxu0 0.0
        %549 = vmatpush.msra.mxu0 %v470
        %550 = vmatmul.f32.gmra.mxu0 %v467
        %v551 = vpop.f32.mrf.mxu0
        %v552 = vadd.f32 0.0, %v551
        %553 = vdwg.mxu0
        %554 = vmatpush.msra.mxu0 0.0
        %555 = vmatpush.msra.mxu0 0.0
        %556 = vmatpush.msra.mxu0 0.0
        %557 = vmatpush.msra.mxu0 0.0
        %558 = vmatpush.msra.mxu0 0.0
        %559 = vmatpush.msra.mxu0 0.0
        %560 = vmatpush.msra.mxu0 0.0
        %561 = vmatpush.msra.mxu0 0.0
        %562 = vmatpush.msra.mxu0 0.0
        %563 = vmatpush.msra.mxu0 0.0
        %564 = vmatpush.msra.mxu0 0.0
        %565 = vmatpush.msra.mxu0 0.0
        %566 = vmatpush.msra.mxu0 0.0
        %567 = vmatpush.msra.mxu0 0.0
        %568 = vmatpush.msra.mxu0 0.0
        %569 = vmatpush.msra.mxu0 %v472
        %570 = vmatmul.f32.gmra.mxu0 %v467
        %v571 = vpop.f32.mrf.mxu0
        %v572 = vadd.f32 0.0, %v571
        %573 = vdwg.mxu0
        %574 = vmatpush.msra.mxu0 0.0
        %575 = vmatpush.msra.mxu0 0.0
        %576 = vmatpush.msra.mxu0 0.0
        %577 = vmatpush.msra.mxu0 0.0
        %578 = vmatpush.msra.mxu0 0.0
        %579 = vmatpush.msra.mxu0 0.0
        %580 = vmatpush.msra.mxu0 0.0
        %581 = vmatpush.msra.mxu0 0.0
        %582 = vmatpush.msra.mxu0 0.0
        %583 = vmatpush.msra.mxu0 0.0
        %584 = vmatpush.msra.mxu0 0.0
        %585 = vmatpush.msra.mxu0 0.0
        %586 = vmatpush.msra.mxu0 0.0
        %587 = vmatpush.msra.mxu0 0.0
        %588 = vmatpush.msra.mxu0 0.0
        %589 = vmatpush.msra.mxu0 %v474
        %590 = vmatmul.f32.gmra.mxu0 %v467
        %v591 = vpop.f32.mrf.mxu0
        %v592 = vadd.f32 0.0, %v591
        %593 = vdwg.mxu0
        %594 = vmatpush.msra.mxu0 0.0
        %595 = vmatpush.msra.mxu0 0.0
        %596 = vmatpush.msra.mxu0 0.0
        %597 = vmatpush.msra.mxu0 0.0
        %598 = vmatpush.msra.mxu0 0.0
        %599 = vmatpush.msra.mxu0 0.0
        %600 = vmatpush.msra.mxu0 0.0
        %601 = vmatpush.msra.mxu0 0.0
        %602 = vmatpush.msra.mxu0 0.0
        %603 = vmatpush.msra.mxu0 0.0
        %604 = vmatpush.msra.mxu0 0.0
        %605 = vmatpush.msra.mxu0 0.0
        %606 = vmatpush.msra.mxu0 0.0
        %607 = vmatpush.msra.mxu0 0.0
        %608 = vmatpush.msra.mxu0 0.0
        %609 = vmatpush.msra.mxu0 %v476
        %610 = vmatmul.f32.gmra.mxu0 %v467
        %v611 = vpop.f32.mrf.mxu0
        %v612 = vadd.f32 0.0, %v611
        %613 = vdwg.mxu0
        %614 = vmatpush.msra.mxu0 0.0
        %615 = vmatpush.msra.mxu0 0.0
        %616 = vmatpush.msra.mxu0 0.0
        %617 = vmatpush.msra.mxu0 0.0
        %618 = vmatpush.msra.mxu0 0.0
        %619 = vmatpush.msra.mxu0 0.0
        %620 = vmatpush.msra.mxu0 0.0
        %621 = vmatpush.msra.mxu0 0.0
        %622 = vmatpush.msra.mxu0 0.0
        %623 = vmatpush.msra.mxu0 0.0
        %624 = vmatpush.msra.mxu0 0.0
        %625 = vmatpush.msra.mxu0 0.0
        %626 = vmatpush.msra.mxu0 0.0
        %627 = vmatpush.msra.mxu0 0.0
        %628 = vmatpush.msra.mxu0 0.0
        %629 = vmatpush.msra.mxu0 %v478
        %630 = vmatmul.f32.gmra.mxu0 %v467
        %v631 = vpop.f32.mrf.mxu0
        %v632 = vadd.f32 0.0, %v631
        %633 = vdwg.mxu0
        %634 = vmatpush.msra.mxu0 0.0
        %635 = vmatpush.msra.mxu0 0.0
        %636 = vmatpush.msra.mxu0 0.0
        %637 = vmatpush.msra.mxu0 0.0
        %638 = vmatpush.msra.mxu0 0.0
        %639 = vmatpush.msra.mxu0 0.0
        %640 = vmatpush.msra.mxu0 0.0
        %641 = vmatpush.msra.mxu0 0.0
        %642 = vmatpush.msra.mxu0 0.0
        %643 = vmatpush.msra.mxu0 0.0
        %644 = vmatpush.msra.mxu0 0.0
        %645 = vmatpush.msra.mxu0 0.0
        %646 = vmatpush.msra.mxu0 0.0
        %647 = vmatpush.msra.mxu0 0.0
        %648 = vmatpush.msra.mxu0 0.0
        %649 = vmatpush.msra.mxu0 %v480
        %650 = vmatmul.f32.gmra.mxu0 %v467
        %v651 = vpop.f32.mrf.mxu0
        %v652 = vadd.f32 0.0, %v651
        %653 = vdwg.mxu0
        %654 = vmatpush.msra.mxu0 0.0
        %655 = vmatpush.msra.mxu0 0.0
        %656 = vmatpush.msra.mxu0 0.0
        %657 = vmatpush.msra.mxu0 0.0
        %658 = vmatpush.msra.mxu0 0.0
        %659 = vmatpush.msra.mxu0 0.0
        %660 = vmatpush.msra.mxu0 0.0
        %661 = vmatpush.msra.mxu0 0.0
        %662 = vmatpush.msra.mxu0 0.0
        %663 = vmatpush.msra.mxu0 0.0
        %664 = vmatpush.msra.mxu0 0.0
        %665 = vmatpush.msra.mxu0 0.0
        %666 = vmatpush.msra.mxu0 0.0
        %667 = vmatpush.msra.mxu0 0.0
        %668 = vmatpush.msra.mxu0 0.0
        %669 = vmatpush.msra.mxu0 %v482
        %670 = vmatmul.f32.gmra.mxu0 %v467
        %v671 = vpop.f32.mrf.mxu0
        %v672 = vadd.f32 0.0, %v671
        %673 = vdwg.mxu0
        %674 = vmatpush.msra.mxu0 0.0
        %675 = vmatpush.msra.mxu0 0.0
        %676 = vmatpush.msra.mxu0 0.0
        %677 = vmatpush.msra.mxu0 0.0
        %678 = vmatpush.msra.mxu0 0.0
        %679 = vmatpush.msra.mxu0 0.0
        %680 = vmatpush.msra.mxu0 0.0
        %681 = vmatpush.msra.mxu0 0.0
        %682 = vmatpush.msra.mxu0 0.0
        %683 = vmatpush.msra.mxu0 0.0
        %684 = vmatpush.msra.mxu0 0.0
        %685 = vmatpush.msra.mxu0 0.0
        %686 = vmatpush.msra.mxu0 0.0
        %687 = vmatpush.msra.mxu0 0.0
        %688 = vmatpush.msra.mxu0 0.0
        %689 = vmatpush.msra.mxu0 %v484
        %690 = vmatmul.f32.gmra.mxu0 %v467
        %v691 = vpop.f32.mrf.mxu0
        %v692 = vadd.f32 0.0, %v691
        %693 = vdwg.mxu0
        %694 = vmatpush.msra.mxu0 0.0
        %695 = vmatpush.msra.mxu0 0.0
        %696 = vmatpush.msra.mxu0 0.0
        %697 = vmatpush.msra.mxu0 0.0
        %698 = vmatpush.msra.mxu0 0.0
        %699 = vmatpush.msra.mxu0 0.0
        %700 = vmatpush.msra.mxu0 0.0
        %701 = vmatpush.msra.mxu0 0.0
        %702 = vmatpush.msra.mxu0 0.0
        %703 = vmatpush.msra.mxu0 0.0
        %704 = vmatpush.msra.mxu0 0.0
        %705 = vmatpush.msra.mxu0 0.0
        %706 = vmatpush.msra.mxu0 0.0
        %707 = vmatpush.msra.mxu0 0.0
        %708 = vmatpush.msra.mxu0 0.0
        %709 = vmatpush.msra.mxu0 %v486
        %710 = vmatmul.f32.gmra.mxu0 %v467
        %v711 = vpop.f32.mrf.mxu0
        %v712 = vadd.f32 0.0, %v711
        %713 = vdwg.mxu0
        %714 = vmatpush.msra.mxu0 0.0
        %715 = vmatpush.msra.mxu0 0.0
        %716 = vmatpush.msra.mxu0 0.0
        %717 = vmatpush.msra.mxu0 0.0
        %718 = vmatpush.msra.mxu0 0.0
        %719 = vmatpush.msra.mxu0 0.0
        %720 = vmatpush.msra.mxu0 0.0
        %721 = vmatpush.msra.mxu0 0.0
        %722 = vmatpush.msra.mxu0 0.0
        %723 = vmatpush.msra.mxu0 0.0
        %724 = vmatpush.msra.mxu0 0.0
        %725 = vmatpush.msra.mxu0 0.0
        %726 = vmatpush.msra.mxu0 0.0
        %727 = vmatpush.msra.mxu0 0.0
        %728 = vmatpush.msra.mxu0 0.0
        %729 = vmatpush.msra.mxu0 %v488
        %730 = vmatmul.f32.gmra.mxu0 %v467
        %v731 = vpop.f32.mrf.mxu0
        %v732 = vadd.f32 0.0, %v731
        %733 = vdwg.mxu0
        %734 = vmatpush.msra.mxu0 0.0
        %735 = vmatpush.msra.mxu0 0.0
        %736 = vmatpush.msra.mxu0 0.0
        %737 = vmatpush.msra.mxu0 0.0
        %738 = vmatpush.msra.mxu0 0.0
        %739 = vmatpush.msra.mxu0 0.0
        %740 = vmatpush.msra.mxu0 0.0
        %741 = vmatpush.msra.mxu0 0.0
        %742 = vmatpush.msra.mxu0 0.0
        %743 = vmatpush.msra.mxu0 0.0
        %744 = vmatpush.msra.mxu0 0.0
        %745 = vmatpush.msra.mxu0 0.0
        %746 = vmatpush.msra.mxu0 0.0
        %747 = vmatpush.msra.mxu0 0.0
        %748 = vmatpush.msra.mxu0 0.0
        %749 = vmatpush.msra.mxu0 %v490
        %750 = vmatmul.f32.gmra.mxu0 %v467
        %v751 = vpop.f32.mrf.mxu0
        %v752 = vadd.f32 0.0, %v751
        %753 = vdwg.mxu0
        %754 = vmatpush.msra.mxu0 0.0
        %755 = vmatpush.msra.mxu0 0.0
        %756 = vmatpush.msra.mxu0 0.0
        %757 = vmatpush.msra.mxu0 0.0
        %758 = vmatpush.msra.mxu0 0.0
        %759 = vmatpush.msra.mxu0 0.0
        %760 = vmatpush.msra.mxu0 0.0
        %761 = vmatpush.msra.mxu0 0.0
        %762 = vmatpush.msra.mxu0 0.0
        %763 = vmatpush.msra.mxu0 0.0
        %764 = vmatpush.msra.mxu0 0.0
        %765 = vmatpush.msra.mxu0 0.0
        %766 = vmatpush.msra.mxu0 0.0
        %767 = vmatpush.msra.mxu0 0.0
        %768 = vmatpush.msra.mxu0 0.0
        %769 = vmatpush.msra.mxu0 %v492
        %770 = vmatmul.f32.gmra.mxu0 %v467
        %v771 = vpop.f32.mrf.mxu0
        %v772 = vadd.f32 0.0, %v771
        %773 = vdwg.mxu0
        %774 = vmatpush.msra.mxu0 0.0
        %775 = vmatpush.msra.mxu0 0.0
        %776 = vmatpush.msra.mxu0 0.0
        %777 = vmatpush.msra.mxu0 0.0
        %778 = vmatpush.msra.mxu0 0.0
        %779 = vmatpush.msra.mxu0 0.0
        %780 = vmatpush.msra.mxu0 0.0
        %781 = vmatpush.msra.mxu0 0.0
        %782 = vmatpush.msra.mxu0 0.0
        %783 = vmatpush.msra.mxu0 0.0
        %784 = vmatpush.msra.mxu0 0.0
        %785 = vmatpush.msra.mxu0 0.0
        %786 = vmatpush.msra.mxu0 0.0
        %787 = vmatpush.msra.mxu0 0.0
        %788 = vmatpush.msra.mxu0 0.0
        %789 = vmatpush.msra.mxu0 %v494
        %790 = vmatmul.f32.gmra.mxu0 %v467
        %v791 = vpop.f32.mrf.mxu0
        %v792 = vadd.f32 0.0, %v791
        %793 = vdwg.mxu0
        %794 = vmatpush.msra.mxu0 0.0
        %795 = vmatpush.msra.mxu0 0.0
        %796 = vmatpush.msra.mxu0 0.0
        %797 = vmatpush.msra.mxu0 0.0
        %798 = vmatpush.msra.mxu0 0.0
        %799 = vmatpush.msra.mxu0 0.0
        %800 = vmatpush.msra.mxu0 0.0
        %801 = vmatpush.msra.mxu0 0.0
        %802 = vmatpush.msra.mxu0 0.0
        %803 = vmatpush.msra.mxu0 0.0
        %804 = vmatpush.msra.mxu0 0.0
        %805 = vmatpush.msra.mxu0 0.0
        %806 = vmatpush.msra.mxu0 0.0
        %807 = vmatpush.msra.mxu0 0.0
        %808 = vmatpush.msra.mxu0 0.0
        %809 = vmatpush.msra.mxu0 %v496
        %810 = vmatmul.f32.gmra.mxu0 %v467
        %v811 = vpop.f32.mrf.mxu0
        %v812 = vadd.f32 0.0, %v811
        %813 = vdwg.mxu0
        %814 = vmatpush.msra.mxu0 0.0
        %815 = vmatpush.msra.mxu0 0.0
        %816 = vmatpush.msra.mxu0 0.0
        %817 = vmatpush.msra.mxu0 0.0
        %818 = vmatpush.msra.mxu0 0.0
        %819 = vmatpush.msra.mxu0 0.0
        %820 = vmatpush.msra.mxu0 0.0
        %821 = vmatpush.msra.mxu0 0.0
        %822 = vmatpush.msra.mxu0 0.0
        %823 = vmatpush.msra.mxu0 0.0
        %824 = vmatpush.msra.mxu0 0.0
        %825 = vmatpush.msra.mxu0 0.0
        %826 = vmatpush.msra.mxu0 0.0
        %827 = vmatpush.msra.mxu0 0.0
        %828 = vmatpush.msra.mxu0 0.0
        %829 = vmatpush.msra.mxu0 %v498
        %830 = vmatmul.f32.gmra.mxu0 %v467
        %v831 = vpop.f32.mrf.mxu0
        %v832 = vadd.f32 0.0, %v831
        %833 = vdwg.mxu0
        %834 = vmatpush.msra.mxu0 0.0
        %835 = vmatpush.msra.mxu0 0.0
        %836 = vmatpush.msra.mxu0 0.0
        %837 = vmatpush.msra.mxu0 0.0
        %838 = vmatpush.msra.mxu0 0.0
        %839 = vmatpush.msra.mxu0 0.0
        %840 = vmatpush.msra.mxu0 0.0
        %841 = vmatpush.msra.mxu0 0.0
        %842 = vmatpush.msra.mxu0 0.0
        %843 = vmatpush.msra.mxu0 0.0
        %844 = vmatpush.msra.mxu0 0.0
        %845 = vmatpush.msra.mxu0 0.0
        %846 = vmatpush.msra.mxu0 0.0
        %847 = vmatpush.msra.mxu0 0.0
        %848 = vmatpush.msra.mxu0 0.0
        %849 = vmatpush.msra.mxu0 %v500
        %850 = vmatmul.f32.gmra.mxu0 %v467
        %v851 = vpop.f32.mrf.mxu0
        %v852 = vadd.f32 0.0, %v851
        %853 = vdwg.mxu0
        %854 = vmatpush.msra.mxu0 0.0
        %855 = vmatpush.msra.mxu0 0.0
        %856 = vmatpush.msra.mxu0 0.0
        %857 = vmatpush.msra.mxu0 0.0
        %858 = vmatpush.msra.mxu0 0.0
        %859 = vmatpush.msra.mxu0 0.0
        %860 = vmatpush.msra.mxu0 0.0
        %861 = vmatpush.msra.mxu0 0.0
        %862 = vmatpush.msra.mxu0 0.0
        %863 = vmatpush.msra.mxu0 0.0
        %864 = vmatpush.msra.mxu0 0.0
        %865 = vmatpush.msra.mxu0 0.0
        %866 = vmatpush.msra.mxu0 0.0
        %867 = vmatpush.msra.mxu0 0.0
        %868 = vmatpush.msra.mxu0 0.0
        %869 = vmatpush.msra.mxu0 %v502
        %870 = vmatmul.f32.gmra.mxu0 %v467
        %v871 = vpop.f32.mrf.mxu0
        %v872 = vadd.f32 0.0, %v871
        %873 = vdwg.mxu0
        %874 = vmatpush.msra.mxu0 0.0
        %875 = vmatpush.msra.mxu0 0.0
        %876 = vmatpush.msra.mxu0 0.0
        %877 = vmatpush.msra.mxu0 0.0
        %878 = vmatpush.msra.mxu0 0.0
        %879 = vmatpush.msra.mxu0 0.0
        %880 = vmatpush.msra.mxu0 0.0
        %881 = vmatpush.msra.mxu0 0.0
        %882 = vmatpush.msra.mxu0 0.0
        %883 = vmatpush.msra.mxu0 0.0
        %884 = vmatpush.msra.mxu0 0.0
        %885 = vmatpush.msra.mxu0 0.0
        %886 = vmatpush.msra.mxu0 0.0
        %887 = vmatpush.msra.mxu0 0.0
        %888 = vmatpush.msra.mxu0 0.0
        %889 = vmatpush.msra.mxu0 %v504
        %890 = vmatmul.f32.gmra.mxu0 %v467
        %v891 = vpop.f32.mrf.mxu0
        %v892 = vadd.f32 0.0, %v891
        %893 = vdwg.mxu0
        %894 = vmatpush.msra.mxu0 0.0
        %895 = vmatpush.msra.mxu0 0.0
        %896 = vmatpush.msra.mxu0 0.0
        %897 = vmatpush.msra.mxu0 0.0
        %898 = vmatpush.msra.mxu0 0.0
        %899 = vmatpush.msra.mxu0 0.0
        %900 = vmatpush.msra.mxu0 0.0
        %901 = vmatpush.msra.mxu0 0.0
        %902 = vmatpush.msra.mxu0 0.0
        %903 = vmatpush.msra.mxu0 0.0
        %904 = vmatpush.msra.mxu0 0.0
        %905 = vmatpush.msra.mxu0 0.0
        %906 = vmatpush.msra.mxu0 0.0
        %907 = vmatpush.msra.mxu0 0.0
        %908 = vmatpush.msra.mxu0 0.0
        %909 = vmatpush.msra.mxu0 %v506
        %910 = vmatmul.f32.gmra.mxu0 %v467
        %v911 = vpop.f32.mrf.mxu0
        %v912 = vadd.f32 0.0, %v911
        %913 = vdwg.mxu0
        %914 = vmatpush.msra.mxu0 0.0
        %915 = vmatpush.msra.mxu0 0.0
        %916 = vmatpush.msra.mxu0 0.0
        %917 = vmatpush.msra.mxu0 0.0
        %918 = vmatpush.msra.mxu0 0.0
        %919 = vmatpush.msra.mxu0 0.0
        %920 = vmatpush.msra.mxu0 0.0
        %921 = vmatpush.msra.mxu0 0.0
        %922 = vmatpush.msra.mxu0 0.0
        %923 = vmatpush.msra.mxu0 0.0
        %924 = vmatpush.msra.mxu0 0.0
        %925 = vmatpush.msra.mxu0 0.0
        %926 = vmatpush.msra.mxu0 0.0
        %927 = vmatpush.msra.mxu0 0.0
        %928 = vmatpush.msra.mxu0 0.0
        %929 = vmatpush.msra.mxu0 %v508
        %930 = vmatmul.f32.gmra.mxu0 %v467
        %v931 = vpop.f32.mrf.mxu0
        %v932 = vadd.f32 0.0, %v931
        %933 = vdwg.mxu0
        %934 = vmatpush.msra.mxu0 0.0
        %935 = vmatpush.msra.mxu0 0.0
        %936 = vmatpush.msra.mxu0 0.0
        %937 = vmatpush.msra.mxu0 0.0
        %938 = vmatpush.msra.mxu0 0.0
        %939 = vmatpush.msra.mxu0 0.0
        %940 = vmatpush.msra.mxu0 0.0
        %941 = vmatpush.msra.mxu0 0.0
        %942 = vmatpush.msra.mxu0 0.0
        %943 = vmatpush.msra.mxu0 0.0
        %944 = vmatpush.msra.mxu0 0.0
        %945 = vmatpush.msra.mxu0 0.0
        %946 = vmatpush.msra.mxu0 0.0
        %947 = vmatpush.msra.mxu0 0.0
        %948 = vmatpush.msra.mxu0 0.0
        %949 = vmatpush.msra.mxu0 %v510
        %950 = vmatmul.f32.gmra.mxu0 %v467
        %v951 = vpop.f32.mrf.mxu0
        %v952 = vadd.f32 0.0, %v951
        %953 = vdwg.mxu0
        %954 = vmatpush.msra.mxu0 0.0
        %955 = vmatpush.msra.mxu0 0.0
        %956 = vmatpush.msra.mxu0 0.0
        %957 = vmatpush.msra.mxu0 0.0
        %958 = vmatpush.msra.mxu0 0.0
        %959 = vmatpush.msra.mxu0 0.0
        %960 = vmatpush.msra.mxu0 0.0
        %961 = vmatpush.msra.mxu0 0.0
        %962 = vmatpush.msra.mxu0 0.0
        %963 = vmatpush.msra.mxu0 0.0
        %964 = vmatpush.msra.mxu0 0.0
        %965 = vmatpush.msra.mxu0 0.0
        %966 = vmatpush.msra.mxu0 0.0
        %967 = vmatpush.msra.mxu0 0.0
        %968 = vmatpush.msra.mxu0 0.0
        %969 = vmatpush.msra.mxu0 %v512
        %970 = vmatmul.f32.gmra.mxu0 %v467
        %v971 = vpop.f32.mrf.mxu0
        %v972 = vadd.f32 0.0, %v971
        %973 = vdwg.mxu0
        %974 = vmatpush.msra.mxu0 0.0
        %975 = vmatpush.msra.mxu0 0.0
        %976 = vmatpush.msra.mxu0 0.0
        %977 = vmatpush.msra.mxu0 0.0
        %978 = vmatpush.msra.mxu0 0.0
        %979 = vmatpush.msra.mxu0 0.0
        %980 = vmatpush.msra.mxu0 0.0
        %981 = vmatpush.msra.mxu0 0.0
        %982 = vmatpush.msra.mxu0 0.0
        %983 = vmatpush.msra.mxu0 0.0
        %984 = vmatpush.msra.mxu0 0.0
        %985 = vmatpush.msra.mxu0 0.0
        %986 = vmatpush.msra.mxu0 0.0
        %987 = vmatpush.msra.mxu0 0.0
        %988 = vmatpush.msra.mxu0 0.0
        %989 = vmatpush.msra.mxu0 %v514
        %990 = vmatmul.f32.gmra.mxu0 %v467
        %v991 = vpop.f32.mrf.mxu0
        %v992 = vadd.f32 0.0, %v991
        %993 = vdwg.mxu0
        %994 = vmatpush.msra.mxu0 0.0
        %995 = vmatpush.msra.mxu0 0.0
        %996 = vmatpush.msra.mxu0 0.0
        %997 = vmatpush.msra.mxu0 0.0
        %998 = vmatpush.msra.mxu0 0.0
        %999 = vmatpush.msra.mxu0 0.0
        %1000 = vmatpush.msra.mxu0 0.0
        %1001 = vmatpush.msra.mxu0 0.0
        %1002 = vmatpush.msra.mxu0 0.0
        %1003 = vmatpush.msra.mxu0 0.0
        %1004 = vmatpush.msra.mxu0 0.0
        %1005 = vmatpush.msra.mxu0 0.0
        %1006 = vmatpush.msra.mxu0 0.0
        %1007 = vmatpush.msra.mxu0 0.0
        %1008 = vmatpush.msra.mxu0 0.0
        %1009 = vmatpush.msra.mxu0 %v516
        %1010 = vmatmul.f32.gmra.mxu0 %v467
        %v1011 = vpop.f32.mrf.mxu0
        %v1012 = vadd.f32 0.0, %v1011
        %1013 = vdwg.mxu0
        %1014 = vmatpush.msra.mxu0 0.0
        %1015 = vmatpush.msra.mxu0 0.0
        %1016 = vmatpush.msra.mxu0 0.0
        %1017 = vmatpush.msra.mxu0 0.0
        %1018 = vmatpush.msra.mxu0 0.0
        %1019 = vmatpush.msra.mxu0 0.0
        %1020 = vmatpush.msra.mxu0 0.0
        %1021 = vmatpush.msra.mxu0 0.0
        %1022 = vmatpush.msra.mxu0 0.0
        %1023 = vmatpush.msra.mxu0 0.0
        %1024 = vmatpush.msra.mxu0 0.0
        %1025 = vmatpush.msra.mxu0 0.0
        %1026 = vmatpush.msra.mxu0 0.0
        %1027 = vmatpush.msra.mxu0 0.0
        %1028 = vmatpush.msra.mxu0 0.0
        %1029 = vmatpush.msra.mxu0 %v518
        %1030 = vmatmul.f32.gmra.mxu0 %v467
        %v1031 = vpop.f32.mrf.mxu0
        %v1032 = vadd.f32 0.0, %v1031
        %1033 = vdwg.mxu0
        %1034 = vmatpush.msra.mxu0 0.0
        %1035 = vmatpush.msra.mxu0 0.0
        %1036 = vmatpush.msra.mxu0 0.0
        %1037 = vmatpush.msra.mxu0 0.0
        %1038 = vmatpush.msra.mxu0 0.0
        %1039 = vmatpush.msra.mxu0 0.0
        %1040 = vmatpush.msra.mxu0 0.0
        %1041 = vmatpush.msra.mxu0 0.0
        %1042 = vmatpush.msra.mxu0 0.0
        %1043 = vmatpush.msra.mxu0 0.0
        %1044 = vmatpush.msra.mxu0 0.0
        %1045 = vmatpush.msra.mxu0 0.0
        %1046 = vmatpush.msra.mxu0 0.0
        %1047 = vmatpush.msra.mxu0 0.0
        %1048 = vmatpush.msra.mxu0 0.0
        %1049 = vmatpush.msra.mxu0 %v520
        %1050 = vmatmul.f32.gmra.mxu0 %v467
        %v1051 = vpop.f32.mrf.mxu0
        %v1052 = vadd.f32 0.0, %v1051
        %1053 = vdwg.mxu0
        %1054 = vmatpush.msra.mxu0 0.0
        %1055 = vmatpush.msra.mxu0 0.0
        %1056 = vmatpush.msra.mxu0 0.0
        %1057 = vmatpush.msra.mxu0 0.0
        %1058 = vmatpush.msra.mxu0 0.0
        %1059 = vmatpush.msra.mxu0 0.0
        %1060 = vmatpush.msra.mxu0 0.0
        %1061 = vmatpush.msra.mxu0 0.0
        %1062 = vmatpush.msra.mxu0 0.0
        %1063 = vmatpush.msra.mxu0 0.0
        %1064 = vmatpush.msra.mxu0 0.0
        %1065 = vmatpush.msra.mxu0 0.0
        %1066 = vmatpush.msra.mxu0 0.0
        %1067 = vmatpush.msra.mxu0 0.0
        %1068 = vmatpush.msra.mxu0 0.0
        %1069 = vmatpush.msra.mxu0 %v522
        %1070 = vmatmul.f32.gmra.mxu0 %v467
        %v1071 = vpop.f32.mrf.mxu0
        %v1072 = vadd.f32 0.0, %v1071
        %1073 = vdwg.mxu0
        %1074 = vmatpush.msra.mxu0 0.0
        %1075 = vmatpush.msra.mxu0 0.0
        %1076 = vmatpush.msra.mxu0 0.0
        %1077 = vmatpush.msra.mxu0 0.0
        %1078 = vmatpush.msra.mxu0 0.0
        %1079 = vmatpush.msra.mxu0 0.0
        %1080 = vmatpush.msra.mxu0 0.0
        %1081 = vmatpush.msra.mxu0 0.0
        %1082 = vmatpush.msra.mxu0 0.0
        %1083 = vmatpush.msra.mxu0 0.0
        %1084 = vmatpush.msra.mxu0 0.0
        %1085 = vmatpush.msra.mxu0 0.0
        %1086 = vmatpush.msra.mxu0 0.0
        %1087 = vmatpush.msra.mxu0 0.0
        %1088 = vmatpush.msra.mxu0 0.0
        %1089 = vmatpush.msra.mxu0 %v524
        %1090 = vmatmul.f32.gmra.mxu0 %v467
        %v1091 = vpop.f32.mrf.mxu0
        %v1092 = vadd.f32 0.0, %v1091
        %1093 = vdwg.mxu0
        %1094 = vmatpush.msra.mxu0 0.0
        %1095 = vmatpush.msra.mxu0 0.0
        %1096 = vmatpush.msra.mxu0 0.0
        %1097 = vmatpush.msra.mxu0 0.0
        %1098 = vmatpush.msra.mxu0 0.0
        %1099 = vmatpush.msra.mxu0 0.0
        %1100 = vmatpush.msra.mxu0 0.0
        %1101 = vmatpush.msra.mxu0 0.0
        %1102 = vmatpush.msra.mxu0 0.0
        %1103 = vmatpush.msra.mxu0 0.0
        %1104 = vmatpush.msra.mxu0 0.0
        %1105 = vmatpush.msra.mxu0 0.0
        %1106 = vmatpush.msra.mxu0 0.0
        %1107 = vmatpush.msra.mxu0 0.0
        %1108 = vmatpush.msra.mxu0 0.0
        %1109 = vmatpush.msra.mxu0 %v526
        %1110 = vmatmul.f32.gmra.mxu0 %v467
        %v1111 = vpop.f32.mrf.mxu0
        %v1112 = vadd.f32 0.0, %v1111
        %1113 = vdwg.mxu0
        %1114 = vmatpush.msra.mxu0 0.0
        %1115 = vmatpush.msra.mxu0 0.0
        %1116 = vmatpush.msra.mxu0 0.0
        %1117 = vmatpush.msra.mxu0 0.0
        %1118 = vmatpush.msra.mxu0 0.0
        %1119 = vmatpush.msra.mxu0 0.0
        %1120 = vmatpush.msra.mxu0 0.0
        %1121 = vmatpush.msra.mxu0 0.0
        %1122 = vmatpush.msra.mxu0 0.0
        %1123 = vmatpush.msra.mxu0 0.0
        %1124 = vmatpush.msra.mxu0 0.0
        %1125 = vmatpush.msra.mxu0 0.0
        %1126 = vmatpush.msra.mxu0 0.0
        %1127 = vmatpush.msra.mxu0 0.0
        %1128 = vmatpush.msra.mxu0 0.0
        %1129 = vmatpush.msra.mxu0 %v528
        %1130 = vmatmul.f32.gmra.mxu0 %v467
        %v1131 = vpop.f32.mrf.mxu0
        %v1132 = vadd.f32 0.0, %v1131
        %1133 = vdwg.mxu0
        %1134 = vmatpush.msra.mxu0 0.0
        %1135 = vmatpush.msra.mxu0 0.0
        %1136 = vmatpush.msra.mxu0 0.0
        %1137 = vmatpush.msra.mxu0 0.0
        %1138 = vmatpush.msra.mxu0 0.0
        %1139 = vmatpush.msra.mxu0 0.0
        %1140 = vmatpush.msra.mxu0 0.0
        %1141 = vmatpush.msra.mxu0 0.0
        %1142 = vmatpush.msra.mxu0 0.0
        %1143 = vmatpush.msra.mxu0 0.0
        %1144 = vmatpush.msra.mxu0 0.0
        %1145 = vmatpush.msra.mxu0 0.0
        %1146 = vmatpush.msra.mxu0 0.0
        %1147 = vmatpush.msra.mxu0 0.0
        %1148 = vmatpush.msra.mxu0 0.0
        %1149 = vmatpush.msra.mxu0 %v530
        %1150 = vmatmul.f32.gmra.mxu0 %v467
        %v1151 = vpop.f32.mrf.mxu0
        %v1152 = vadd.f32 0.0, %v1151
        %1153 = vdwg.mxu0
        %1154 = vmatpush.msra.mxu0 0.0
        %1155 = vmatpush.msra.mxu0 0.0
        %1156 = vmatpush.msra.mxu0 0.0
        %1157 = vmatpush.msra.mxu0 0.0
        %1158 = vmatpush.msra.mxu0 0.0
        %1159 = vmatpush.msra.mxu0 0.0
        %1160 = vmatpush.msra.mxu0 0.0
        %1161 = vmatpush.msra.mxu0 0.0
        %1162 = vmatpush.msra.mxu0 0.0
        %1163 = vmatpush.msra.mxu0 0.0
        %1164 = vmatpush.msra.mxu0 0.0
        %1165 = vmatpush.msra.mxu0 0.0
        %1166 = vmatpush.msra.mxu0 0.0
        %1167 = vmatpush.msra.mxu0 0.0
        %1168 = vmatpush.msra.mxu0 0.0
        %1169 = vmatpush.msra.mxu0 %v532
        %1170 = vmatmul.f32.gmra.mxu0 %v467
        %v1171 = vpop.f32.mrf.mxu0
        %v1172 = vadd.f32 0.0, %v1171
        %1173 = vdwg.mxu0
        %1190 = vst [vmem:[#allocation1] ss:$2 sm:$0xff] %v364
        %s1191 = scalar_lea.vmem [#allocation1], 16
        %1192 = vst [vmem:[%s1191] ss:$2 sm:$0xff] %v365
        %s1193 = scalar_lea.vmem [#allocation1], 32
        %1194 = vst [vmem:[%s1193] ss:$2 sm:$0xff] %v366
        %s1195 = scalar_lea.vmem [#allocation1], 48
        %1196 = vst [vmem:[%s1195] ss:$2 sm:$0xff] %v367
        %v1197 = vld.sshfl [vmem:[#allocation1] sm:$0xff pattern:$0x75316420]
        %v1198 = vld.sshfl [vmem:[#allocation1 + $0x8] sm:$0xff pattern:$0x75316420]
        %v1199 = vld.sshfl [vmem:[#allocation1 + $0x10] sm:$0xff pattern:$0x75316420]
        %v1200 = vld.sshfl [vmem:[#allocation1 + $0x18] sm:$0xff pattern:$0x75316420]
        %v1201 = vld.sshfl [vmem:[#allocation1 + $0x20] sm:$0xff pattern:$0x75316420]
        %v1202 = vld.sshfl [vmem:[#allocation1 + $0x28] sm:$0xff pattern:$0x75316420]
        %v1203 = vld.sshfl [vmem:[#allocation1 + $0x30] sm:$0xff pattern:$0x75316420]
        %v1204 = vld.sshfl [vmem:[#allocation1 + $0x38] sm:$0xff pattern:$0x75316420]
        %1205 = vst [vmem:[#allocation1] ss:$2 sm:$0xff] %v368
        %1206 = vst [vmem:[%s1191] ss:$2 sm:$0xff] %v369
        %1207 = vst [vmem:[%s1193] ss:$2 sm:$0xff] %v370
        %1208 = vst [vmem:[%s1195] ss:$2 sm:$0xff] %v371
        %v1209 = vld.sshfl [vmem:[#allocation1] sm:$0xff pattern:$0x75316420]
        %v1210 = vld.sshfl [vmem:[#allocation1 + $0x8] sm:$0xff pattern:$0x75316420]
        %v1211 = vld.sshfl [vmem:[#allocation1 + $0x10] sm:$0xff pattern:$0x75316420]
        %v1212 = vld.sshfl [vmem:[#allocation1 + $0x18] sm:$0xff pattern:$0x75316420]
        %v1213 = vld.sshfl [vmem:[#allocation1 + $0x20] sm:$0xff pattern:$0x75316420]
        %v1214 = vld.sshfl [vmem:[#allocation1 + $0x28] sm:$0xff pattern:$0x75316420]
        %v1215 = vld.sshfl [vmem:[#allocation1 + $0x30] sm:$0xff pattern:$0x75316420]
        %v1216 = vld.sshfl [vmem:[#allocation1 + $0x38] sm:$0xff pattern:$0x75316420]
        %1217 = vst [vmem:[#allocation1] ss:$2 sm:$0xff] %v372
        %1218 = vst [vmem:[%s1191] ss:$2 sm:$0xff] %v373
        %1219 = vst [vmem:[%s1193] ss:$2 sm:$0xff] %v374
        %1220 = vst [vmem:[%s1195] ss:$2 sm:$0xff] %v375
        %v1221 = vld.sshfl [vmem:[#allocation1] sm:$0xff pattern:$0x75316420]
        %v1222 = vld.sshfl [vmem:[#allocation1 + $0x8] sm:$0xff pattern:$0x75316420]
        %v1223 = vld.sshfl [vmem:[#allocation1 + $0x10] sm:$0xff pattern:$0x75316420]
        %v1224 = vld.sshfl [vmem:[#allocation1 + $0x18] sm:$0xff pattern:$0x75316420]
        %v1225 = vld.sshfl [vmem:[#allocation1 + $0x20] sm:$0xff pattern:$0x75316420]
        %v1226 = vld.sshfl [vmem:[#allocation1 + $0x28] sm:$0xff pattern:$0x75316420]
        %v1227 = vld.sshfl [vmem:[#allocation1 + $0x30] sm:$0xff pattern:$0x75316420]
        %v1228 = vld.sshfl [vmem:[#allocation1 + $0x38] sm:$0xff pattern:$0x75316420]
        %1229 = vst [vmem:[#allocation1] ss:$2 sm:$0xff] %v376
        %1230 = vst [vmem:[%s1191] ss:$2 sm:$0xff] %v377
        %1231 = vst [vmem:[%s1193] ss:$2 sm:$0xff] %v378
        %1232 = vst [vmem:[%s1195] ss:$2 sm:$0xff] %v379
        %v1233 = vld.sshfl [vmem:[#allocation1] sm:$0xff pattern:$0x75316420]
        %v1234 = vld.sshfl [vmem:[#allocation1 + $0x8] sm:$0xff pattern:$0x75316420]
        %v1235 = vld.sshfl [vmem:[#allocation1 + $0x10] sm:$0xff pattern:$0x75316420]
        %v1236 = vld.sshfl [vmem:[#allocation1 + $0x18] sm:$0xff pattern:$0x75316420]
        %v1237 = vld.sshfl [vmem:[#allocation1 + $0x20] sm:$0xff pattern:$0x75316420]
        %v1238 = vld.sshfl [vmem:[#allocation1 + $0x28] sm:$0xff pattern:$0x75316420]
        %v1239 = vld.sshfl [vmem:[#allocation1 + $0x30] sm:$0xff pattern:$0x75316420]
        %v1240 = vld.sshfl [vmem:[#allocation1 + $0x38] sm:$0xff pattern:$0x75316420]
        %v1242 = vsel %vm465, %v396, 0
        %v1244 = vsel %vm469, %v1197, 0
        %v1246 = vsel %vm469, %v1198, 0
        %v1248 = vsel %vm469, %v1199, 0
        %v1250 = vsel %vm469, %v1200, 0
        %v1252 = vsel %vm469, %v1201, 0
        %v1254 = vsel %vm469, %v1202, 0
        %v1256 = vsel %vm469, %v1203, 0
        %v1258 = vsel %vm469, %v1204, 0
        %v1260 = vsel %vm469, %v1209, 0
        %v1262 = vsel %vm469, %v1210, 0
        %v1264 = vsel %vm469, %v1211, 0
        %v1266 = vsel %vm469, %v1212, 0
        %v1268 = vsel %vm469, %v1213, 0
        %v1270 = vsel %vm469, %v1214, 0
        %v1272 = vsel %vm469, %v1215, 0
        %v1274 = vsel %vm469, %v1216, 0
        %v1276 = vsel %vm469, %v1221, 0
        %v1278 = vsel %vm469, %v1222, 0
        %v1280 = vsel %vm469, %v1223, 0
        %v1282 = vsel %vm469, %v1224, 0
        %v1284 = vsel %vm469, %v1225, 0
        %v1286 = vsel %vm469, %v1226, 0
        %v1288 = vsel %vm469, %v1227, 0
        %v1290 = vsel %vm469, %v1228, 0
        %v1292 = vsel %vm469, %v1233, 0
        %v1294 = vsel %vm469, %v1234, 0
        %v1296 = vsel %vm469, %v1235, 0
        %v1298 = vsel %vm469, %v1236, 0
        %v1300 = vsel %vm469, %v1237, 0
        %v1302 = vsel %vm469, %v1238, 0
        %v1304 = vsel %vm469, %v1239, 0
        %v1306 = vsel %vm469, %v1240, 0
        %1308 = vmatpush.msra.mxu0 0.0
        %1309 = vmatpush.msra.mxu0 0.0
        %1310 = vmatpush.msra.mxu0 0.0
        %1311 = vmatpush.msra.mxu0 0.0
        %1312 = vmatpush.msra.mxu0 0.0
        %1313 = vmatpush.msra.mxu0 0.0
        %1314 = vmatpush.msra.mxu0 0.0
        %1315 = vmatpush.msra.mxu0 0.0
        %1316 = vmatpush.msra.mxu0 0.0
        %1317 = vmatpush.msra.mxu0 0.0
        %1318 = vmatpush.msra.mxu0 0.0
        %1319 = vmatpush.msra.mxu0 0.0
        %1320 = vmatpush.msra.mxu0 0.0
        %1321 = vmatpush.msra.mxu0 0.0
        %1322 = vmatpush.msra.mxu0 0.0
        %1323 = vmatpush.msra.mxu0 %v1244
        %1324 = vmatmul.f32.gmra.mxu0 %v1242
        %v1325 = vpop.f32.mrf.mxu0
        %v1326 = vadd.f32 %v552, %v1325
        %1327 = vdwg.mxu0
        %1328 = vmatpush.msra.mxu0 0.0
        %1329 = vmatpush.msra.mxu0 0.0
        %1330 = vmatpush.msra.mxu0 0.0
        %1331 = vmatpush.msra.mxu0 0.0
        %1332 = vmatpush.msra.mxu0 0.0
        %1333 = vmatpush.msra.mxu0 0.0
        %1334 = vmatpush.msra.mxu0 0.0
        %1335 = vmatpush.msra.mxu0 0.0
        %1336 = vmatpush.msra.mxu0 0.0
        %1337 = vmatpush.msra.mxu0 0.0
        %1338 = vmatpush.msra.mxu0 0.0
        %1339 = vmatpush.msra.mxu0 0.0
        %1340 = vmatpush.msra.mxu0 0.0
        %1341 = vmatpush.msra.mxu0 0.0
        %1342 = vmatpush.msra.mxu0 0.0
        %1343 = vmatpush.msra.mxu0 %v1246
        %1344 = vmatmul.f32.gmra.mxu0 %v1242
        %v1345 = vpop.f32.mrf.mxu0
        %v1346 = vadd.f32 %v572, %v1345
        %1347 = vdwg.mxu0
        %1348 = vmatpush.msra.mxu0 0.0
        %1349 = vmatpush.msra.mxu0 0.0
        %1350 = vmatpush.msra.mxu0 0.0
        %1351 = vmatpush.msra.mxu0 0.0
        %1352 = vmatpush.msra.mxu0 0.0
        %1353 = vmatpush.msra.mxu0 0.0
        %1354 = vmatpush.msra.mxu0 0.0
        %1355 = vmatpush.msra.mxu0 0.0
        %1356 = vmatpush.msra.mxu0 0.0
        %1357 = vmatpush.msra.mxu0 0.0
        %1358 = vmatpush.msra.mxu0 0.0
        %1359 = vmatpush.msra.mxu0 0.0
        %1360 = vmatpush.msra.mxu0 0.0
        %1361 = vmatpush.msra.mxu0 0.0
        %1362 = vmatpush.msra.mxu0 0.0
        %1363 = vmatpush.msra.mxu0 %v1248
        %1364 = vmatmul.f32.gmra.mxu0 %v1242
        %v1365 = vpop.f32.mrf.mxu0
        %v1366 = vadd.f32 %v592, %v1365
        %1367 = vdwg.mxu0
        %1368 = vmatpush.msra.mxu0 0.0
        %1369 = vmatpush.msra.mxu0 0.0
        %1370 = vmatpush.msra.mxu0 0.0
        %1371 = vmatpush.msra.mxu0 0.0
        %1372 = vmatpush.msra.mxu0 0.0
        %1373 = vmatpush.msra.mxu0 0.0
        %1374 = vmatpush.msra.mxu0 0.0
        %1375 = vmatpush.msra.mxu0 0.0
        %1376 = vmatpush.msra.mxu0 0.0
        %1377 = vmatpush.msra.mxu0 0.0
        %1378 = vmatpush.msra.mxu0 0.0
        %1379 = vmatpush.msra.mxu0 0.0
        %1380 = vmatpush.msra.mxu0 0.0
        %1381 = vmatpush.msra.mxu0 0.0
        %1382 = vmatpush.msra.mxu0 0.0
        %1383 = vmatpush.msra.mxu0 %v1250
        %1384 = vmatmul.f32.gmra.mxu0 %v1242
        %v1385 = vpop.f32.mrf.mxu0
        %v1386 = vadd.f32 %v612, %v1385
        %1387 = vdwg.mxu0
        %1388 = vmatpush.msra.mxu0 0.0
        %1389 = vmatpush.msra.mxu0 0.0
        %1390 = vmatpush.msra.mxu0 0.0
        %1391 = vmatpush.msra.mxu0 0.0
        %1392 = vmatpush.msra.mxu0 0.0
        %1393 = vmatpush.msra.mxu0 0.0
        %1394 = vmatpush.msra.mxu0 0.0
        %1395 = vmatpush.msra.mxu0 0.0
        %1396 = vmatpush.msra.mxu0 0.0
        %1397 = vmatpush.msra.mxu0 0.0
        %1398 = vmatpush.msra.mxu0 0.0
        %1399 = vmatpush.msra.mxu0 0.0
        %1400 = vmatpush.msra.mxu0 0.0
        %1401 = vmatpush.msra.mxu0 0.0
        %1402 = vmatpush.msra.mxu0 0.0
        %1403 = vmatpush.msra.mxu0 %v1252
        %1404 = vmatmul.f32.gmra.mxu0 %v1242
        %v1405 = vpop.f32.mrf.mxu0
        %v1406 = vadd.f32 %v632, %v1405
        %1407 = vdwg.mxu0
        %1408 = vmatpush.msra.mxu0 0.0
        %1409 = vmatpush.msra.mxu0 0.0
        %1410 = vmatpush.msra.mxu0 0.0
        %1411 = vmatpush.msra.mxu0 0.0
        %1412 = vmatpush.msra.mxu0 0.0
        %1413 = vmatpush.msra.mxu0 0.0
        %1414 = vmatpush.msra.mxu0 0.0
        %1415 = vmatpush.msra.mxu0 0.0
        %1416 = vmatpush.msra.mxu0 0.0
        %1417 = vmatpush.msra.mxu0 0.0
        %1418 = vmatpush.msra.mxu0 0.0
        %1419 = vmatpush.msra.mxu0 0.0
        %1420 = vmatpush.msra.mxu0 0.0
        %1421 = vmatpush.msra.mxu0 0.0
        %1422 = vmatpush.msra.mxu0 0.0
        %1423 = vmatpush.msra.mxu0 %v1254
        %1424 = vmatmul.f32.gmra.mxu0 %v1242
        %v1425 = vpop.f32.mrf.mxu0
        %v1426 = vadd.f32 %v652, %v1425
        %1427 = vdwg.mxu0
        %1428 = vmatpush.msra.mxu0 0.0
        %1429 = vmatpush.msra.mxu0 0.0
        %1430 = vmatpush.msra.mxu0 0.0
        %1431 = vmatpush.msra.mxu0 0.0
        %1432 = vmatpush.msra.mxu0 0.0
        %1433 = vmatpush.msra.mxu0 0.0
        %1434 = vmatpush.msra.mxu0 0.0
        %1435 = vmatpush.msra.mxu0 0.0
        %1436 = vmatpush.msra.mxu0 0.0
        %1437 = vmatpush.msra.mxu0 0.0
        %1438 = vmatpush.msra.mxu0 0.0
        %1439 = vmatpush.msra.mxu0 0.0
        %1440 = vmatpush.msra.mxu0 0.0
        %1441 = vmatpush.msra.mxu0 0.0
        %1442 = vmatpush.msra.mxu0 0.0
        %1443 = vmatpush.msra.mxu0 %v1256
        %1444 = vmatmul.f32.gmra.mxu0 %v1242
        %v1445 = vpop.f32.mrf.mxu0
        %v1446 = vadd.f32 %v672, %v1445
        %1447 = vdwg.mxu0
        %1448 = vmatpush.msra.mxu0 0.0
        %1449 = vmatpush.msra.mxu0 0.0
        %1450 = vmatpush.msra.mxu0 0.0
        %1451 = vmatpush.msra.mxu0 0.0
        %1452 = vmatpush.msra.mxu0 0.0
        %1453 = vmatpush.msra.mxu0 0.0
        %1454 = vmatpush.msra.mxu0 0.0
        %1455 = vmatpush.msra.mxu0 0.0
        %1456 = vmatpush.msra.mxu0 0.0
        %1457 = vmatpush.msra.mxu0 0.0
        %1458 = vmatpush.msra.mxu0 0.0
        %1459 = vmatpush.msra.mxu0 0.0
        %1460 = vmatpush.msra.mxu0 0.0
        %1461 = vmatpush.msra.mxu0 0.0
        %1462 = vmatpush.msra.mxu0 0.0
        %1463 = vmatpush.msra.mxu0 %v1258
        %1464 = vmatmul.f32.gmra.mxu0 %v1242
        %v1465 = vpop.f32.mrf.mxu0
        %v1466 = vadd.f32 %v692, %v1465
        %1467 = vdwg.mxu0
        %1468 = vmatpush.msra.mxu0 0.0
        %1469 = vmatpush.msra.mxu0 0.0
        %1470 = vmatpush.msra.mxu0 0.0
        %1471 = vmatpush.msra.mxu0 0.0
        %1472 = vmatpush.msra.mxu0 0.0
        %1473 = vmatpush.msra.mxu0 0.0
        %1474 = vmatpush.msra.mxu0 0.0
        %1475 = vmatpush.msra.mxu0 0.0
        %1476 = vmatpush.msra.mxu0 0.0
        %1477 = vmatpush.msra.mxu0 0.0
        %1478 = vmatpush.msra.mxu0 0.0
        %1479 = vmatpush.msra.mxu0 0.0
        %1480 = vmatpush.msra.mxu0 0.0
        %1481 = vmatpush.msra.mxu0 0.0
        %1482 = vmatpush.msra.mxu0 0.0
        %1483 = vmatpush.msra.mxu0 %v1260
        %1484 = vmatmul.f32.gmra.mxu0 %v1242
        %v1485 = vpop.f32.mrf.mxu0
        %v1486 = vadd.f32 %v712, %v1485
        %1487 = vdwg.mxu0
        %1488 = vmatpush.msra.mxu0 0.0
        %1489 = vmatpush.msra.mxu0 0.0
        %1490 = vmatpush.msra.mxu0 0.0
        %1491 = vmatpush.msra.mxu0 0.0
        %1492 = vmatpush.msra.mxu0 0.0
        %1493 = vmatpush.msra.mxu0 0.0
        %1494 = vmatpush.msra.mxu0 0.0
        %1495 = vmatpush.msra.mxu0 0.0
        %1496 = vmatpush.msra.mxu0 0.0
        %1497 = vmatpush.msra.mxu0 0.0
        %1498 = vmatpush.msra.mxu0 0.0
        %1499 = vmatpush.msra.mxu0 0.0
        %1500 = vmatpush.msra.mxu0 0.0
        %1501 = vmatpush.msra.mxu0 0.0
        %1502 = vmatpush.msra.mxu0 0.0
        %1503 = vmatpush.msra.mxu0 %v1262
        %1504 = vmatmul.f32.gmra.mxu0 %v1242
        %v1505 = vpop.f32.mrf.mxu0
        %v1506 = vadd.f32 %v732, %v1505
        %1507 = vdwg.mxu0
        %1508 = vmatpush.msra.mxu0 0.0
        %1509 = vmatpush.msra.mxu0 0.0
        %1510 = vmatpush.msra.mxu0 0.0
        %1511 = vmatpush.msra.mxu0 0.0
        %1512 = vmatpush.msra.mxu0 0.0
        %1513 = vmatpush.msra.mxu0 0.0
        %1514 = vmatpush.msra.mxu0 0.0
        %1515 = vmatpush.msra.mxu0 0.0
        %1516 = vmatpush.msra.mxu0 0.0
        %1517 = vmatpush.msra.mxu0 0.0
        %1518 = vmatpush.msra.mxu0 0.0
        %1519 = vmatpush.msra.mxu0 0.0
        %1520 = vmatpush.msra.mxu0 0.0
        %1521 = vmatpush.msra.mxu0 0.0
        %1522 = vmatpush.msra.mxu0 0.0
        %1523 = vmatpush.msra.mxu0 %v1264
        %1524 = vmatmul.f32.gmra.mxu0 %v1242
        %v1525 = vpop.f32.mrf.mxu0
        %v1526 = vadd.f32 %v752, %v1525
        %1527 = vdwg.mxu0
        %1528 = vmatpush.msra.mxu0 0.0
        %1529 = vmatpush.msra.mxu0 0.0
        %1530 = vmatpush.msra.mxu0 0.0
        %1531 = vmatpush.msra.mxu0 0.0
        %1532 = vmatpush.msra.mxu0 0.0
        %1533 = vmatpush.msra.mxu0 0.0
        %1534 = vmatpush.msra.mxu0 0.0
        %1535 = vmatpush.msra.mxu0 0.0
        %1536 = vmatpush.msra.mxu0 0.0
        %1537 = vmatpush.msra.mxu0 0.0
        %1538 = vmatpush.msra.mxu0 0.0
        %1539 = vmatpush.msra.mxu0 0.0
        %1540 = vmatpush.msra.mxu0 0.0
        %1541 = vmatpush.msra.mxu0 0.0
        %1542 = vmatpush.msra.mxu0 0.0
        %1543 = vmatpush.msra.mxu0 %v1266
        %1544 = vmatmul.f32.gmra.mxu0 %v1242
        %v1545 = vpop.f32.mrf.mxu0
        %v1546 = vadd.f32 %v772, %v1545
        %1547 = vdwg.mxu0
        %1548 = vmatpush.msra.mxu0 0.0
        %1549 = vmatpush.msra.mxu0 0.0
        %1550 = vmatpush.msra.mxu0 0.0
        %1551 = vmatpush.msra.mxu0 0.0
        %1552 = vmatpush.msra.mxu0 0.0
        %1553 = vmatpush.msra.mxu0 0.0
        %1554 = vmatpush.msra.mxu0 0.0
        %1555 = vmatpush.msra.mxu0 0.0
        %1556 = vmatpush.msra.mxu0 0.0
        %1557 = vmatpush.msra.mxu0 0.0
        %1558 = vmatpush.msra.mxu0 0.0
        %1559 = vmatpush.msra.mxu0 0.0
        %1560 = vmatpush.msra.mxu0 0.0
        %1561 = vmatpush.msra.mxu0 0.0
        %1562 = vmatpush.msra.mxu0 0.0
        %1563 = vmatpush.msra.mxu0 %v1268
        %1564 = vmatmul.f32.gmra.mxu0 %v1242
        %v1565 = vpop.f32.mrf.mxu0
        %v1566 = vadd.f32 %v792, %v1565
        %1567 = vdwg.mxu0
        %1568 = vmatpush.msra.mxu0 0.0
        %1569 = vmatpush.msra.mxu0 0.0
        %1570 = vmatpush.msra.mxu0 0.0
        %1571 = vmatpush.msra.mxu0 0.0
        %1572 = vmatpush.msra.mxu0 0.0
        %1573 = vmatpush.msra.mxu0 0.0
        %1574 = vmatpush.msra.mxu0 0.0
        %1575 = vmatpush.msra.mxu0 0.0
        %1576 = vmatpush.msra.mxu0 0.0
        %1577 = vmatpush.msra.mxu0 0.0
        %1578 = vmatpush.msra.mxu0 0.0
        %1579 = vmatpush.msra.mxu0 0.0
        %1580 = vmatpush.msra.mxu0 0.0
        %1581 = vmatpush.msra.mxu0 0.0
        %1582 = vmatpush.msra.mxu0 0.0
        %1583 = vmatpush.msra.mxu0 %v1270
        %1584 = vmatmul.f32.gmra.mxu0 %v1242
        %v1585 = vpop.f32.mrf.mxu0
        %v1586 = vadd.f32 %v812, %v1585
        %1587 = vdwg.mxu0
        %1588 = vmatpush.msra.mxu0 0.0
        %1589 = vmatpush.msra.mxu0 0.0
        %1590 = vmatpush.msra.mxu0 0.0
        %1591 = vmatpush.msra.mxu0 0.0
        %1592 = vmatpush.msra.mxu0 0.0
        %1593 = vmatpush.msra.mxu0 0.0
        %1594 = vmatpush.msra.mxu0 0.0
        %1595 = vmatpush.msra.mxu0 0.0
        %1596 = vmatpush.msra.mxu0 0.0
        %1597 = vmatpush.msra.mxu0 0.0
        %1598 = vmatpush.msra.mxu0 0.0
        %1599 = vmatpush.msra.mxu0 0.0
        %1600 = vmatpush.msra.mxu0 0.0
        %1601 = vmatpush.msra.mxu0 0.0
        %1602 = vmatpush.msra.mxu0 0.0
        %1603 = vmatpush.msra.mxu0 %v1272
        %1604 = vmatmul.f32.gmra.mxu0 %v1242
        %v1605 = vpop.f32.mrf.mxu0
        %v1606 = vadd.f32 %v832, %v1605
        %1607 = vdwg.mxu0
        %1608 = vmatpush.msra.mxu0 0.0
        %1609 = vmatpush.msra.mxu0 0.0
        %1610 = vmatpush.msra.mxu0 0.0
        %1611 = vmatpush.msra.mxu0 0.0
        %1612 = vmatpush.msra.mxu0 0.0
        %1613 = vmatpush.msra.mxu0 0.0
        %1614 = vmatpush.msra.mxu0 0.0
        %1615 = vmatpush.msra.mxu0 0.0
        %1616 = vmatpush.msra.mxu0 0.0
        %1617 = vmatpush.msra.mxu0 0.0
        %1618 = vmatpush.msra.mxu0 0.0
        %1619 = vmatpush.msra.mxu0 0.0
        %1620 = vmatpush.msra.mxu0 0.0
        %1621 = vmatpush.msra.mxu0 0.0
        %1622 = vmatpush.msra.mxu0 0.0
        %1623 = vmatpush.msra.mxu0 %v1274
        %1624 = vmatmul.f32.gmra.mxu0 %v1242
        %v1625 = vpop.f32.mrf.mxu0
        %v1626 = vadd.f32 %v852, %v1625
        %1627 = vdwg.mxu0
        %1628 = vmatpush.msra.mxu0 0.0
        %1629 = vmatpush.msra.mxu0 0.0
        %1630 = vmatpush.msra.mxu0 0.0
        %1631 = vmatpush.msra.mxu0 0.0
        %1632 = vmatpush.msra.mxu0 0.0
        %1633 = vmatpush.msra.mxu0 0.0
        %1634 = vmatpush.msra.mxu0 0.0
        %1635 = vmatpush.msra.mxu0 0.0
        %1636 = vmatpush.msra.mxu0 0.0
        %1637 = vmatpush.msra.mxu0 0.0
        %1638 = vmatpush.msra.mxu0 0.0
        %1639 = vmatpush.msra.mxu0 0.0
        %1640 = vmatpush.msra.mxu0 0.0
        %1641 = vmatpush.msra.mxu0 0.0
        %1642 = vmatpush.msra.mxu0 0.0
        %1643 = vmatpush.msra.mxu0 %v1276
        %1644 = vmatmul.f32.gmra.mxu0 %v1242
        %v1645 = vpop.f32.mrf.mxu0
        %v1646 = vadd.f32 %v872, %v1645
        %1647 = vdwg.mxu0
        %1648 = vmatpush.msra.mxu0 0.0
        %1649 = vmatpush.msra.mxu0 0.0
        %1650 = vmatpush.msra.mxu0 0.0
        %1651 = vmatpush.msra.mxu0 0.0
        %1652 = vmatpush.msra.mxu0 0.0
        %1653 = vmatpush.msra.mxu0 0.0
        %1654 = vmatpush.msra.mxu0 0.0
        %1655 = vmatpush.msra.mxu0 0.0
        %1656 = vmatpush.msra.mxu0 0.0
        %1657 = vmatpush.msra.mxu0 0.0
        %1658 = vmatpush.msra.mxu0 0.0
        %1659 = vmatpush.msra.mxu0 0.0
        %1660 = vmatpush.msra.mxu0 0.0
        %1661 = vmatpush.msra.mxu0 0.0
        %1662 = vmatpush.msra.mxu0 0.0
        %1663 = vmatpush.msra.mxu0 %v1278
        %1664 = vmatmul.f32.gmra.mxu0 %v1242
        %v1665 = vpop.f32.mrf.mxu0
        %v1666 = vadd.f32 %v892, %v1665
        %1667 = vdwg.mxu0
        %1668 = vmatpush.msra.mxu0 0.0
        %1669 = vmatpush.msra.mxu0 0.0
        %1670 = vmatpush.msra.mxu0 0.0
        %1671 = vmatpush.msra.mxu0 0.0
        %1672 = vmatpush.msra.mxu0 0.0
        %1673 = vmatpush.msra.mxu0 0.0
        %1674 = vmatpush.msra.mxu0 0.0
        %1675 = vmatpush.msra.mxu0 0.0
        %1676 = vmatpush.msra.mxu0 0.0
        %1677 = vmatpush.msra.mxu0 0.0
        %1678 = vmatpush.msra.mxu0 0.0
        %1679 = vmatpush.msra.mxu0 0.0
        %1680 = vmatpush.msra.mxu0 0.0
        %1681 = vmatpush.msra.mxu0 0.0
        %1682 = vmatpush.msra.mxu0 0.0
        %1683 = vmatpush.msra.mxu0 %v1280
        %1684 = vmatmul.f32.gmra.mxu0 %v1242
        %v1685 = vpop.f32.mrf.mxu0
        %v1686 = vadd.f32 %v912, %v1685
        %1687 = vdwg.mxu0
        %1688 = vmatpush.msra.mxu0 0.0
        %1689 = vmatpush.msra.mxu0 0.0
        %1690 = vmatpush.msra.mxu0 0.0
        %1691 = vmatpush.msra.mxu0 0.0
        %1692 = vmatpush.msra.mxu0 0.0
        %1693 = vmatpush.msra.mxu0 0.0
        %1694 = vmatpush.msra.mxu0 0.0
        %1695 = vmatpush.msra.mxu0 0.0
        %1696 = vmatpush.msra.mxu0 0.0
        %1697 = vmatpush.msra.mxu0 0.0
        %1698 = vmatpush.msra.mxu0 0.0
        %1699 = vmatpush.msra.mxu0 0.0
        %1700 = vmatpush.msra.mxu0 0.0
        %1701 = vmatpush.msra.mxu0 0.0
        %1702 = vmatpush.msra.mxu0 0.0
        %1703 = vmatpush.msra.mxu0 %v1282
        %1704 = vmatmul.f32.gmra.mxu0 %v1242
        %v1705 = vpop.f32.mrf.mxu0
        %v1706 = vadd.f32 %v932, %v1705
        %1707 = vdwg.mxu0
        %1708 = vmatpush.msra.mxu0 0.0
        %1709 = vmatpush.msra.mxu0 0.0
        %1710 = vmatpush.msra.mxu0 0.0
        %1711 = vmatpush.msra.mxu0 0.0
        %1712 = vmatpush.msra.mxu0 0.0
        %1713 = vmatpush.msra.mxu0 0.0
        %1714 = vmatpush.msra.mxu0 0.0
        %1715 = vmatpush.msra.mxu0 0.0
        %1716 = vmatpush.msra.mxu0 0.0
        %1717 = vmatpush.msra.mxu0 0.0
        %1718 = vmatpush.msra.mxu0 0.0
        %1719 = vmatpush.msra.mxu0 0.0
        %1720 = vmatpush.msra.mxu0 0.0
        %1721 = vmatpush.msra.mxu0 0.0
        %1722 = vmatpush.msra.mxu0 0.0
        %1723 = vmatpush.msra.mxu0 %v1284
        %1724 = vmatmul.f32.gmra.mxu0 %v1242
        %v1725 = vpop.f32.mrf.mxu0
        %v1726 = vadd.f32 %v952, %v1725
        %1727 = vdwg.mxu0
        %1728 = vmatpush.msra.mxu0 0.0
        %1729 = vmatpush.msra.mxu0 0.0
        %1730 = vmatpush.msra.mxu0 0.0
        %1731 = vmatpush.msra.mxu0 0.0
        %1732 = vmatpush.msra.mxu0 0.0
        %1733 = vmatpush.msra.mxu0 0.0
        %1734 = vmatpush.msra.mxu0 0.0
        %1735 = vmatpush.msra.mxu0 0.0
        %1736 = vmatpush.msra.mxu0 0.0
        %1737 = vmatpush.msra.mxu0 0.0
        %1738 = vmatpush.msra.mxu0 0.0
        %1739 = vmatpush.msra.mxu0 0.0
        %1740 = vmatpush.msra.mxu0 0.0
        %1741 = vmatpush.msra.mxu0 0.0
        %1742 = vmatpush.msra.mxu0 0.0
        %1743 = vmatpush.msra.mxu0 %v1286
        %1744 = vmatmul.f32.gmra.mxu0 %v1242
        %v1745 = vpop.f32.mrf.mxu0
        %v1746 = vadd.f32 %v972, %v1745
        %1747 = vdwg.mxu0
        %1748 = vmatpush.msra.mxu0 0.0
        %1749 = vmatpush.msra.mxu0 0.0
        %1750 = vmatpush.msra.mxu0 0.0
        %1751 = vmatpush.msra.mxu0 0.0
        %1752 = vmatpush.msra.mxu0 0.0
        %1753 = vmatpush.msra.mxu0 0.0
        %1754 = vmatpush.msra.mxu0 0.0
        %1755 = vmatpush.msra.mxu0 0.0
        %1756 = vmatpush.msra.mxu0 0.0
        %1757 = vmatpush.msra.mxu0 0.0
        %1758 = vmatpush.msra.mxu0 0.0
        %1759 = vmatpush.msra.mxu0 0.0
        %1760 = vmatpush.msra.mxu0 0.0
        %1761 = vmatpush.msra.mxu0 0.0
        %1762 = vmatpush.msra.mxu0 0.0
        %1763 = vmatpush.msra.mxu0 %v1288
        %1764 = vmatmul.f32.gmra.mxu0 %v1242
        %v1765 = vpop.f32.mrf.mxu0
        %v1766 = vadd.f32 %v992, %v1765
        %1767 = vdwg.mxu0
        %1768 = vmatpush.msra.mxu0 0.0
        %1769 = vmatpush.msra.mxu0 0.0
        %1770 = vmatpush.msra.mxu0 0.0
        %1771 = vmatpush.msra.mxu0 0.0
        %1772 = vmatpush.msra.mxu0 0.0
        %1773 = vmatpush.msra.mxu0 0.0
        %1774 = vmatpush.msra.mxu0 0.0
        %1775 = vmatpush.msra.mxu0 0.0
        %1776 = vmatpush.msra.mxu0 0.0
        %1777 = vmatpush.msra.mxu0 0.0
        %1778 = vmatpush.msra.mxu0 0.0
        %1779 = vmatpush.msra.mxu0 0.0
        %1780 = vmatpush.msra.mxu0 0.0
        %1781 = vmatpush.msra.mxu0 0.0
        %1782 = vmatpush.msra.mxu0 0.0
        %1783 = vmatpush.msra.mxu0 %v1290
        %1784 = vmatmul.f32.gmra.mxu0 %v1242
        %v1785 = vpop.f32.mrf.mxu0
        %v1786 = vadd.f32 %v1012, %v1785
        %1787 = vdwg.mxu0
        %1788 = vmatpush.msra.mxu0 0.0
        %1789 = vmatpush.msra.mxu0 0.0
        %1790 = vmatpush.msra.mxu0 0.0
        %1791 = vmatpush.msra.mxu0 0.0
        %1792 = vmatpush.msra.mxu0 0.0
        %1793 = vmatpush.msra.mxu0 0.0
        %1794 = vmatpush.msra.mxu0 0.0
        %1795 = vmatpush.msra.mxu0 0.0
        %1796 = vmatpush.msra.mxu0 0.0
        %1797 = vmatpush.msra.mxu0 0.0
        %1798 = vmatpush.msra.mxu0 0.0
        %1799 = vmatpush.msra.mxu0 0.0
        %1800 = vmatpush.msra.mxu0 0.0
        %1801 = vmatpush.msra.mxu0 0.0
        %1802 = vmatpush.msra.mxu0 0.0
        %1803 = vmatpush.msra.mxu0 %v1292
        %1804 = vmatmul.f32.gmra.mxu0 %v1242
        %v1805 = vpop.f32.mrf.mxu0
        %v1806 = vadd.f32 %v1032, %v1805
        %1807 = vdwg.mxu0
        %1808 = vmatpush.msra.mxu0 0.0
        %1809 = vmatpush.msra.mxu0 0.0
        %1810 = vmatpush.msra.mxu0 0.0
        %1811 = vmatpush.msra.mxu0 0.0
        %1812 = vmatpush.msra.mxu0 0.0
        %1813 = vmatpush.msra.mxu0 0.0
        %1814 = vmatpush.msra.mxu0 0.0
        %1815 = vmatpush.msra.mxu0 0.0
        %1816 = vmatpush.msra.mxu0 0.0
        %1817 = vmatpush.msra.mxu0 0.0
        %1818 = vmatpush.msra.mxu0 0.0
        %1819 = vmatpush.msra.mxu0 0.0
        %1820 = vmatpush.msra.mxu0 0.0
        %1821 = vmatpush.msra.mxu0 0.0
        %1822 = vmatpush.msra.mxu0 0.0
        %1823 = vmatpush.msra.mxu0 %v1294
        %1824 = vmatmul.f32.gmra.mxu0 %v1242
        %v1825 = vpop.f32.mrf.mxu0
        %v1826 = vadd.f32 %v1052, %v1825
        %1827 = vdwg.mxu0
        %1828 = vmatpush.msra.mxu0 0.0
        %1829 = vmatpush.msra.mxu0 0.0
        %1830 = vmatpush.msra.mxu0 0.0
        %1831 = vmatpush.msra.mxu0 0.0
        %1832 = vmatpush.msra.mxu0 0.0
        %1833 = vmatpush.msra.mxu0 0.0
        %1834 = vmatpush.msra.mxu0 0.0
        %1835 = vmatpush.msra.mxu0 0.0
        %1836 = vmatpush.msra.mxu0 0.0
        %1837 = vmatpush.msra.mxu0 0.0
        %1838 = vmatpush.msra.mxu0 0.0
        %1839 = vmatpush.msra.mxu0 0.0
        %1840 = vmatpush.msra.mxu0 0.0
        %1841 = vmatpush.msra.mxu0 0.0
        %1842 = vmatpush.msra.mxu0 0.0
        %1843 = vmatpush.msra.mxu0 %v1296
        %1844 = vmatmul.f32.gmra.mxu0 %v1242
        %v1845 = vpop.f32.mrf.mxu0
        %v1846 = vadd.f32 %v1072, %v1845
        %1847 = vdwg.mxu0
        %1848 = vmatpush.msra.mxu0 0.0
        %1849 = vmatpush.msra.mxu0 0.0
        %1850 = vmatpush.msra.mxu0 0.0
        %1851 = vmatpush.msra.mxu0 0.0
        %1852 = vmatpush.msra.mxu0 0.0
        %1853 = vmatpush.msra.mxu0 0.0
        %1854 = vmatpush.msra.mxu0 0.0
        %1855 = vmatpush.msra.mxu0 0.0
        %1856 = vmatpush.msra.mxu0 0.0
        %1857 = vmatpush.msra.mxu0 0.0
        %1858 = vmatpush.msra.mxu0 0.0
        %1859 = vmatpush.msra.mxu0 0.0
        %1860 = vmatpush.msra.mxu0 0.0
        %1861 = vmatpush.msra.mxu0 0.0
        %1862 = vmatpush.msra.mxu0 0.0
        %1863 = vmatpush.msra.mxu0 %v1298
        %1864 = vmatmul.f32.gmra.mxu0 %v1242
        %v1865 = vpop.f32.mrf.mxu0
        %v1866 = vadd.f32 %v1092, %v1865
        %1867 = vdwg.mxu0
        %1868 = vmatpush.msra.mxu0 0.0
        %1869 = vmatpush.msra.mxu0 0.0
        %1870 = vmatpush.msra.mxu0 0.0
        %1871 = vmatpush.msra.mxu0 0.0
        %1872 = vmatpush.msra.mxu0 0.0
        %1873 = vmatpush.msra.mxu0 0.0
        %1874 = vmatpush.msra.mxu0 0.0
        %1875 = vmatpush.msra.mxu0 0.0
        %1876 = vmatpush.msra.mxu0 0.0
        %1877 = vmatpush.msra.mxu0 0.0
        %1878 = vmatpush.msra.mxu0 0.0
        %1879 = vmatpush.msra.mxu0 0.0
        %1880 = vmatpush.msra.mxu0 0.0
        %1881 = vmatpush.msra.mxu0 0.0
        %1882 = vmatpush.msra.mxu0 0.0
        %1883 = vmatpush.msra.mxu0 %v1300
        %1884 = vmatmul.f32.gmra.mxu0 %v1242
        %v1885 = vpop.f32.mrf.mxu0
        %v1886 = vadd.f32 %v1112, %v1885
        %1887 = vdwg.mxu0
        %1888 = vmatpush.msra.mxu0 0.0
        %1889 = vmatpush.msra.mxu0 0.0
        %1890 = vmatpush.msra.mxu0 0.0
        %1891 = vmatpush.msra.mxu0 0.0
        %1892 = vmatpush.msra.mxu0 0.0
        %1893 = vmatpush.msra.mxu0 0.0
        %1894 = vmatpush.msra.mxu0 0.0
        %1895 = vmatpush.msra.mxu0 0.0
        %1896 = vmatpush.msra.mxu0 0.0
        %1897 = vmatpush.msra.mxu0 0.0
        %1898 = vmatpush.msra.mxu0 0.0
        %1899 = vmatpush.msra.mxu0 0.0
        %1900 = vmatpush.msra.mxu0 0.0
        %1901 = vmatpush.msra.mxu0 0.0
        %1902 = vmatpush.msra.mxu0 0.0
        %1903 = vmatpush.msra.mxu0 %v1302
        %1904 = vmatmul.f32.gmra.mxu0 %v1242
        %v1905 = vpop.f32.mrf.mxu0
        %v1906 = vadd.f32 %v1132, %v1905
        %1907 = vdwg.mxu0
        %1908 = vmatpush.msra.mxu0 0.0
        %1909 = vmatpush.msra.mxu0 0.0
        %1910 = vmatpush.msra.mxu0 0.0
        %1911 = vmatpush.msra.mxu0 0.0
        %1912 = vmatpush.msra.mxu0 0.0
        %1913 = vmatpush.msra.mxu0 0.0
        %1914 = vmatpush.msra.mxu0 0.0
        %1915 = vmatpush.msra.mxu0 0.0
        %1916 = vmatpush.msra.mxu0 0.0
        %1917 = vmatpush.msra.mxu0 0.0
        %1918 = vmatpush.msra.mxu0 0.0
        %1919 = vmatpush.msra.mxu0 0.0
        %1920 = vmatpush.msra.mxu0 0.0
        %1921 = vmatpush.msra.mxu0 0.0
        %1922 = vmatpush.msra.mxu0 0.0
        %1923 = vmatpush.msra.mxu0 %v1304
        %1924 = vmatmul.f32.gmra.mxu0 %v1242
        %v1925 = vpop.f32.mrf.mxu0
        %v1926 = vadd.f32 %v1152, %v1925
        %1927 = vdwg.mxu0
        %1928 = vmatpush.msra.mxu0 0.0
        %1929 = vmatpush.msra.mxu0 0.0
        %1930 = vmatpush.msra.mxu0 0.0
        %1931 = vmatpush.msra.mxu0 0.0
        %1932 = vmatpush.msra.mxu0 0.0
        %1933 = vmatpush.msra.mxu0 0.0
        %1934 = vmatpush.msra.mxu0 0.0
        %1935 = vmatpush.msra.mxu0 0.0
        %1936 = vmatpush.msra.mxu0 0.0
        %1937 = vmatpush.msra.mxu0 0.0
        %1938 = vmatpush.msra.mxu0 0.0
        %1939 = vmatpush.msra.mxu0 0.0
        %1940 = vmatpush.msra.mxu0 0.0
        %1941 = vmatpush.msra.mxu0 0.0
        %1942 = vmatpush.msra.mxu0 0.0
        %1943 = vmatpush.msra.mxu0 %v1306
        %1944 = vmatmul.f32.gmra.mxu0 %v1242
        %v1945 = vpop.f32.mrf.mxu0
        %v1946 = vadd.f32 %v1172, %v1945
        %1947 = vdwg.mxu0
        %v1948 = vld [vmem:[%s5] sm:$0xff]
        %1950 = vset.pattern.permute.xlu0 0
        %1951 = vperm.xlu0 %1950, %v1948
        %v1952 = vpop.permute.xlu0 %1951
        %v1954 = vadd.f32 %v1326, %v1952
        %v1955 = vadd.f32 %v1346, %v1952
        %v1956 = vadd.f32 %v1366, %v1952
        %v1957 = vadd.f32 %v1386, %v1952
        %v1958 = vadd.f32 %v1406, %v1952
        %v1959 = vadd.f32 %v1426, %v1952
        %v1960 = vadd.f32 %v1446, %v1952
        %v1961 = vadd.f32 %v1466, %v1952
        %v1962 = vadd.f32 %v1486, %v1952
        %v1963 = vadd.f32 %v1506, %v1952
        %v1964 = vadd.f32 %v1526, %v1952
        %v1965 = vadd.f32 %v1546, %v1952
        %v1966 = vadd.f32 %v1566, %v1952
        %v1967 = vadd.f32 %v1586, %v1952
        %v1968 = vadd.f32 %v1606, %v1952
        %v1969 = vadd.f32 %v1626, %v1952
        %v1970 = vadd.f32 %v1646, %v1952
        %v1971 = vadd.f32 %v1666, %v1952
        %v1972 = vadd.f32 %v1686, %v1952
        %v1973 = vadd.f32 %v1706, %v1952
        %v1974 = vadd.f32 %v1726, %v1952
        %v1975 = vadd.f32 %v1746, %v1952
        %v1976 = vadd.f32 %v1766, %v1952
        %v1977 = vadd.f32 %v1786, %v1952
        %v1978 = vadd.f32 %v1806, %v1952
        %v1979 = vadd.f32 %v1826, %v1952
        %v1980 = vadd.f32 %v1846, %v1952
        %v1981 = vadd.f32 %v1866, %v1952
        %v1982 = vadd.f32 %v1886, %v1952
        %v1983 = vadd.f32 %v1906, %v1952
        %v1984 = vadd.f32 %v1926, %v1952
        %v1985 = vadd.f32 %v1946, %v1952
        %v1986 = vmax.f32 %v1954, 0.0
        %v1987 = vmax.f32 %v1955, 0.0
        %v1988 = vmax.f32 %v1956, 0.0
        %v1989 = vmax.f32 %v1957, 0.0
        %v1990 = vmax.f32 %v1958, 0.0
        %v1991 = vmax.f32 %v1959, 0.0
        %v1992 = vmax.f32 %v1960, 0.0
        %v1993 = vmax.f32 %v1961, 0.0
        %v1994 = vmax.f32 %v1962, 0.0
        %v1995 = vmax.f32 %v1963, 0.0
        %v1996 = vmax.f32 %v1964, 0.0
        %v1997 = vmax.f32 %v1965, 0.0
        %v1998 = vmax.f32 %v1966, 0.0
        %v1999 = vmax.f32 %v1967, 0.0
        %v2000 = vmax.f32 %v1968, 0.0
        %v2001 = vmax.f32 %v1969, 0.0
        %v2002 = vmax.f32 %v1970, 0.0
        %v2003 = vmax.f32 %v1971, 0.0
        %v2004 = vmax.f32 %v1972, 0.0
        %v2005 = vmax.f32 %v1973, 0.0
        %v2006 = vmax.f32 %v1974, 0.0
        %v2007 = vmax.f32 %v1975, 0.0
        %v2008 = vmax.f32 %v1976, 0.0
        %v2009 = vmax.f32 %v1977, 0.0
        %v2010 = vmax.f32 %v1978, 0.0
        %v2011 = vmax.f32 %v1979, 0.0
        %v2012 = vmax.f32 %v1980, 0.0
        %v2013 = vmax.f32 %v1981, 0.0
        %v2014 = vmax.f32 %v1982, 0.0
        %v2015 = vmax.f32 %v1983, 0.0
        %v2016 = vmax.f32 %v1984, 0.0
        %v2017 = vmax.f32 %v1985, 0.0
        %v2018 = vld [vmem:[%s4] sm:$0x1]
        %v2019 = vld [vmem:[#allocation2] sm:$0x1]
        %2021 = vset.pattern.permute.xlu0 0
        %2022 = vperm.xlu0 %2021, %v2019
        %v2023 = vpop.permute.xlu0 %2022
        %v2025 = vperm.slane %v2023, 0
        %vm2026 = vcmask 64512
        %v2028 = vsel %vm2026, %v2018, 0
        %2030 = vmatpush.msra.mxu0 0.0
        %2031 = vmatpush.msra.mxu0 0.0
        %2032 = vmatpush.msra.mxu0 0.0
        %2033 = vmatpush.msra.mxu0 0.0
        %2034 = vmatpush.msra.mxu0 0.0
        %2035 = vmatpush.msra.mxu0 0.0
        %2036 = vmatpush.msra.mxu0 0.0
        %2037 = vmatpush.msra.mxu0 0.0
        %2038 = vmatpush.msra.mxu0 0.0
        %2039 = vmatpush.msra.mxu0 0.0
        %2040 = vmatpush.msra.mxu0 0.0
        %2041 = vmatpush.msra.mxu0 0.0
        %2042 = vmatpush.msra.mxu0 0.0
        %2043 = vmatpush.msra.mxu0 0.0
        %2044 = vmatpush.msra.mxu0 0.0
        %2045 = vmatpush.msra.mxu0 %v1986
        %2046 = vmatmul.f32.gmra.mxu0 %v2028
        %v2047 = vpop.f32.mrf.mxu0
        %v2048 = vadd.f32 %v2025, %v2047
        %2049 = vdwg.mxu0
        %2050 = vmatpush.msra.mxu0 0.0
        %2051 = vmatpush.msra.mxu0 0.0
        %2052 = vmatpush.msra.mxu0 0.0
        %2053 = vmatpush.msra.mxu0 0.0
        %2054 = vmatpush.msra.mxu0 0.0
        %2055 = vmatpush.msra.mxu0 0.0
        %2056 = vmatpush.msra.mxu0 0.0
        %2057 = vmatpush.msra.mxu0 0.0
        %2058 = vmatpush.msra.mxu0 0.0
        %2059 = vmatpush.msra.mxu0 0.0
        %2060 = vmatpush.msra.mxu0 0.0
        %2061 = vmatpush.msra.mxu0 0.0
        %2062 = vmatpush.msra.mxu0 0.0
        %2063 = vmatpush.msra.mxu0 0.0
        %2064 = vmatpush.msra.mxu0 0.0
        %2065 = vmatpush.msra.mxu0 %v1987
        %2066 = vmatmul.f32.gmra.mxu0 %v2028
        %v2067 = vpop.f32.mrf.mxu0
        %v2068 = vadd.f32 %v2025, %v2067
        %2069 = vdwg.mxu0
        %2070 = vmatpush.msra.mxu0 0.0
        %2071 = vmatpush.msra.mxu0 0.0
        %2072 = vmatpush.msra.mxu0 0.0
        %2073 = vmatpush.msra.mxu0 0.0
        %2074 = vmatpush.msra.mxu0 0.0
        %2075 = vmatpush.msra.mxu0 0.0
        %2076 = vmatpush.msra.mxu0 0.0
        %2077 = vmatpush.msra.mxu0 0.0
        %2078 = vmatpush.msra.mxu0 0.0
        %2079 = vmatpush.msra.mxu0 0.0
        %2080 = vmatpush.msra.mxu0 0.0
        %2081 = vmatpush.msra.mxu0 0.0
        %2082 = vmatpush.msra.mxu0 0.0
        %2083 = vmatpush.msra.mxu0 0.0
        %2084 = vmatpush.msra.mxu0 0.0
        %2085 = vmatpush.msra.mxu0 %v1988
        %2086 = vmatmul.f32.gmra.mxu0 %v2028
        %v2087 = vpop.f32.mrf.mxu0
        %v2088 = vadd.f32 %v2025, %v2087
        %2089 = vdwg.mxu0
        %2090 = vmatpush.msra.mxu0 0.0
        %2091 = vmatpush.msra.mxu0 0.0
        %2092 = vmatpush.msra.mxu0 0.0
        %2093 = vmatpush.msra.mxu0 0.0
        %2094 = vmatpush.msra.mxu0 0.0
        %2095 = vmatpush.msra.mxu0 0.0
        %2096 = vmatpush.msra.mxu0 0.0
        %2097 = vmatpush.msra.mxu0 0.0
        %2098 = vmatpush.msra.mxu0 0.0
        %2099 = vmatpush.msra.mxu0 0.0
        %2100 = vmatpush.msra.mxu0 0.0
        %2101 = vmatpush.msra.mxu0 0.0
        %2102 = vmatpush.msra.mxu0 0.0
        %2103 = vmatpush.msra.mxu0 0.0
        %2104 = vmatpush.msra.mxu0 0.0
        %2105 = vmatpush.msra.mxu0 %v1989
        %2106 = vmatmul.f32.gmra.mxu0 %v2028
        %v2107 = vpop.f32.mrf.mxu0
        %v2108 = vadd.f32 %v2025, %v2107
        %2109 = vdwg.mxu0
        %2110 = vmatpush.msra.mxu0 0.0
        %2111 = vmatpush.msra.mxu0 0.0
        %2112 = vmatpush.msra.mxu0 0.0
        %2113 = vmatpush.msra.mxu0 0.0
        %2114 = vmatpush.msra.mxu0 0.0
        %2115 = vmatpush.msra.mxu0 0.0
        %2116 = vmatpush.msra.mxu0 0.0
        %2117 = vmatpush.msra.mxu0 0.0
        %2118 = vmatpush.msra.mxu0 0.0
        %2119 = vmatpush.msra.mxu0 0.0
        %2120 = vmatpush.msra.mxu0 0.0
        %2121 = vmatpush.msra.mxu0 0.0
        %2122 = vmatpush.msra.mxu0 0.0
        %2123 = vmatpush.msra.mxu0 0.0
        %2124 = vmatpush.msra.mxu0 0.0
        %2125 = vmatpush.msra.mxu0 %v1990
        %2126 = vmatmul.f32.gmra.mxu0 %v2028
        %v2127 = vpop.f32.mrf.mxu0
        %v2128 = vadd.f32 %v2025, %v2127
        %2129 = vdwg.mxu0
        %2130 = vmatpush.msra.mxu0 0.0
        %2131 = vmatpush.msra.mxu0 0.0
        %2132 = vmatpush.msra.mxu0 0.0
        %2133 = vmatpush.msra.mxu0 0.0
        %2134 = vmatpush.msra.mxu0 0.0
        %2135 = vmatpush.msra.mxu0 0.0
        %2136 = vmatpush.msra.mxu0 0.0
        %2137 = vmatpush.msra.mxu0 0.0
        %2138 = vmatpush.msra.mxu0 0.0
        %2139 = vmatpush.msra.mxu0 0.0
        %2140 = vmatpush.msra.mxu0 0.0
        %2141 = vmatpush.msra.mxu0 0.0
        %2142 = vmatpush.msra.mxu0 0.0
        %2143 = vmatpush.msra.mxu0 0.0
        %2144 = vmatpush.msra.mxu0 0.0
        %2145 = vmatpush.msra.mxu0 %v1991
        %2146 = vmatmul.f32.gmra.mxu0 %v2028
        %v2147 = vpop.f32.mrf.mxu0
        %v2148 = vadd.f32 %v2025, %v2147
        %2149 = vdwg.mxu0
        %2150 = vmatpush.msra.mxu0 0.0
        %2151 = vmatpush.msra.mxu0 0.0
        %2152 = vmatpush.msra.mxu0 0.0
        %2153 = vmatpush.msra.mxu0 0.0
        %2154 = vmatpush.msra.mxu0 0.0
        %2155 = vmatpush.msra.mxu0 0.0
        %2156 = vmatpush.msra.mxu0 0.0
        %2157 = vmatpush.msra.mxu0 0.0
        %2158 = vmatpush.msra.mxu0 0.0
        %2159 = vmatpush.msra.mxu0 0.0
        %2160 = vmatpush.msra.mxu0 0.0
        %2161 = vmatpush.msra.mxu0 0.0
        %2162 = vmatpush.msra.mxu0 0.0
        %2163 = vmatpush.msra.mxu0 0.0
        %2164 = vmatpush.msra.mxu0 0.0
        %2165 = vmatpush.msra.mxu0 %v1992
        %2166 = vmatmul.f32.gmra.mxu0 %v2028
        %v2167 = vpop.f32.mrf.mxu0
        %v2168 = vadd.f32 %v2025, %v2167
        %2169 = vdwg.mxu0
        %2170 = vmatpush.msra.mxu0 0.0
        %2171 = vmatpush.msra.mxu0 0.0
        %2172 = vmatpush.msra.mxu0 0.0
        %2173 = vmatpush.msra.mxu0 0.0
        %2174 = vmatpush.msra.mxu0 0.0
        %2175 = vmatpush.msra.mxu0 0.0
        %2176 = vmatpush.msra.mxu0 0.0
        %2177 = vmatpush.msra.mxu0 0.0
        %2178 = vmatpush.msra.mxu0 0.0
        %2179 = vmatpush.msra.mxu0 0.0
        %2180 = vmatpush.msra.mxu0 0.0
        %2181 = vmatpush.msra.mxu0 0.0
        %2182 = vmatpush.msra.mxu0 0.0
        %2183 = vmatpush.msra.mxu0 0.0
        %2184 = vmatpush.msra.mxu0 0.0
        %2185 = vmatpush.msra.mxu0 %v1993
        %2186 = vmatmul.f32.gmra.mxu0 %v2028
        %v2187 = vpop.f32.mrf.mxu0
        %v2188 = vadd.f32 %v2025, %v2187
        %2189 = vdwg.mxu0
        %2190 = vmatpush.msra.mxu0 0.0
        %2191 = vmatpush.msra.mxu0 0.0
        %2192 = vmatpush.msra.mxu0 0.0
        %2193 = vmatpush.msra.mxu0 0.0
        %2194 = vmatpush.msra.mxu0 0.0
        %2195 = vmatpush.msra.mxu0 0.0
        %2196 = vmatpush.msra.mxu0 0.0
        %2197 = vmatpush.msra.mxu0 0.0
        %2198 = vmatpush.msra.mxu0 0.0
        %2199 = vmatpush.msra.mxu0 0.0
        %2200 = vmatpush.msra.mxu0 0.0
        %2201 = vmatpush.msra.mxu0 0.0
        %2202 = vmatpush.msra.mxu0 0.0
        %2203 = vmatpush.msra.mxu0 0.0
        %2204 = vmatpush.msra.mxu0 0.0
        %2205 = vmatpush.msra.mxu0 %v1994
        %2206 = vmatmul.f32.gmra.mxu0 %v2028
        %v2207 = vpop.f32.mrf.mxu0
        %v2208 = vadd.f32 %v2025, %v2207
        %2209 = vdwg.mxu0
        %2210 = vmatpush.msra.mxu0 0.0
        %2211 = vmatpush.msra.mxu0 0.0
        %2212 = vmatpush.msra.mxu0 0.0
        %2213 = vmatpush.msra.mxu0 0.0
        %2214 = vmatpush.msra.mxu0 0.0
        %2215 = vmatpush.msra.mxu0 0.0
        %2216 = vmatpush.msra.mxu0 0.0
        %2217 = vmatpush.msra.mxu0 0.0
        %2218 = vmatpush.msra.mxu0 0.0
        %2219 = vmatpush.msra.mxu0 0.0
        %2220 = vmatpush.msra.mxu0 0.0
        %2221 = vmatpush.msra.mxu0 0.0
        %2222 = vmatpush.msra.mxu0 0.0
        %2223 = vmatpush.msra.mxu0 0.0
        %2224 = vmatpush.msra.mxu0 0.0
        %2225 = vmatpush.msra.mxu0 %v1995
        %2226 = vmatmul.f32.gmra.mxu0 %v2028
        %v2227 = vpop.f32.mrf.mxu0
        %v2228 = vadd.f32 %v2025, %v2227
        %2229 = vdwg.mxu0
        %2230 = vmatpush.msra.mxu0 0.0
        %2231 = vmatpush.msra.mxu0 0.0
        %2232 = vmatpush.msra.mxu0 0.0
        %2233 = vmatpush.msra.mxu0 0.0
        %2234 = vmatpush.msra.mxu0 0.0
        %2235 = vmatpush.msra.mxu0 0.0
        %2236 = vmatpush.msra.mxu0 0.0
        %2237 = vmatpush.msra.mxu0 0.0
        %2238 = vmatpush.msra.mxu0 0.0
        %2239 = vmatpush.msra.mxu0 0.0
        %2240 = vmatpush.msra.mxu0 0.0
        %2241 = vmatpush.msra.mxu0 0.0
        %2242 = vmatpush.msra.mxu0 0.0
        %2243 = vmatpush.msra.mxu0 0.0
        %2244 = vmatpush.msra.mxu0 0.0
        %2245 = vmatpush.msra.mxu0 %v1996
        %2246 = vmatmul.f32.gmra.mxu0 %v2028
        %v2247 = vpop.f32.mrf.mxu0
        %v2248 = vadd.f32 %v2025, %v2247
        %2249 = vdwg.mxu0
        %2250 = vmatpush.msra.mxu0 0.0
        %2251 = vmatpush.msra.mxu0 0.0
        %2252 = vmatpush.msra.mxu0 0.0
        %2253 = vmatpush.msra.mxu0 0.0
        %2254 = vmatpush.msra.mxu0 0.0
        %2255 = vmatpush.msra.mxu0 0.0
        %2256 = vmatpush.msra.mxu0 0.0
        %2257 = vmatpush.msra.mxu0 0.0
        %2258 = vmatpush.msra.mxu0 0.0
        %2259 = vmatpush.msra.mxu0 0.0
        %2260 = vmatpush.msra.mxu0 0.0
        %2261 = vmatpush.msra.mxu0 0.0
        %2262 = vmatpush.msra.mxu0 0.0
        %2263 = vmatpush.msra.mxu0 0.0
        %2264 = vmatpush.msra.mxu0 0.0
        %2265 = vmatpush.msra.mxu0 %v1997
        %2266 = vmatmul.f32.gmra.mxu0 %v2028
        %v2267 = vpop.f32.mrf.mxu0
        %v2268 = vadd.f32 %v2025, %v2267
        %2269 = vdwg.mxu0
        %2270 = vmatpush.msra.mxu0 0.0
        %2271 = vmatpush.msra.mxu0 0.0
        %2272 = vmatpush.msra.mxu0 0.0
        %2273 = vmatpush.msra.mxu0 0.0
        %2274 = vmatpush.msra.mxu0 0.0
        %2275 = vmatpush.msra.mxu0 0.0
        %2276 = vmatpush.msra.mxu0 0.0
        %2277 = vmatpush.msra.mxu0 0.0
        %2278 = vmatpush.msra.mxu0 0.0
        %2279 = vmatpush.msra.mxu0 0.0
        %2280 = vmatpush.msra.mxu0 0.0
        %2281 = vmatpush.msra.mxu0 0.0
        %2282 = vmatpush.msra.mxu0 0.0
        %2283 = vmatpush.msra.mxu0 0.0
        %2284 = vmatpush.msra.mxu0 0.0
        %2285 = vmatpush.msra.mxu0 %v1998
        %2286 = vmatmul.f32.gmra.mxu0 %v2028
        %v2287 = vpop.f32.mrf.mxu0
        %v2288 = vadd.f32 %v2025, %v2287
        %2289 = vdwg.mxu0
        %2290 = vmatpush.msra.mxu0 0.0
        %2291 = vmatpush.msra.mxu0 0.0
        %2292 = vmatpush.msra.mxu0 0.0
        %2293 = vmatpush.msra.mxu0 0.0
        %2294 = vmatpush.msra.mxu0 0.0
        %2295 = vmatpush.msra.mxu0 0.0
        %2296 = vmatpush.msra.mxu0 0.0
        %2297 = vmatpush.msra.mxu0 0.0
        %2298 = vmatpush.msra.mxu0 0.0
        %2299 = vmatpush.msra.mxu0 0.0
        %2300 = vmatpush.msra.mxu0 0.0
        %2301 = vmatpush.msra.mxu0 0.0
        %2302 = vmatpush.msra.mxu0 0.0
        %2303 = vmatpush.msra.mxu0 0.0
        %2304 = vmatpush.msra.mxu0 0.0
        %2305 = vmatpush.msra.mxu0 %v1999
        %2306 = vmatmul.f32.gmra.mxu0 %v2028
        %v2307 = vpop.f32.mrf.mxu0
        %v2308 = vadd.f32 %v2025, %v2307
        %2309 = vdwg.mxu0
        %2310 = vmatpush.msra.mxu0 0.0
        %2311 = vmatpush.msra.mxu0 0.0
        %2312 = vmatpush.msra.mxu0 0.0
        %2313 = vmatpush.msra.mxu0 0.0
        %2314 = vmatpush.msra.mxu0 0.0
        %2315 = vmatpush.msra.mxu0 0.0
        %2316 = vmatpush.msra.mxu0 0.0
        %2317 = vmatpush.msra.mxu0 0.0
        %2318 = vmatpush.msra.mxu0 0.0
        %2319 = vmatpush.msra.mxu0 0.0
        %2320 = vmatpush.msra.mxu0 0.0
        %2321 = vmatpush.msra.mxu0 0.0
        %2322 = vmatpush.msra.mxu0 0.0
        %2323 = vmatpush.msra.mxu0 0.0
        %2324 = vmatpush.msra.mxu0 0.0
        %2325 = vmatpush.msra.mxu0 %v2000
        %2326 = vmatmul.f32.gmra.mxu0 %v2028
        %v2327 = vpop.f32.mrf.mxu0
        %v2328 = vadd.f32 %v2025, %v2327
        %2329 = vdwg.mxu0
        %2330 = vmatpush.msra.mxu0 0.0
        %2331 = vmatpush.msra.mxu0 0.0
        %2332 = vmatpush.msra.mxu0 0.0
        %2333 = vmatpush.msra.mxu0 0.0
        %2334 = vmatpush.msra.mxu0 0.0
        %2335 = vmatpush.msra.mxu0 0.0
        %2336 = vmatpush.msra.mxu0 0.0
        %2337 = vmatpush.msra.mxu0 0.0
        %2338 = vmatpush.msra.mxu0 0.0
        %2339 = vmatpush.msra.mxu0 0.0
        %2340 = vmatpush.msra.mxu0 0.0
        %2341 = vmatpush.msra.mxu0 0.0
        %2342 = vmatpush.msra.mxu0 0.0
        %2343 = vmatpush.msra.mxu0 0.0
        %2344 = vmatpush.msra.mxu0 0.0
        %2345 = vmatpush.msra.mxu0 %v2001
        %2346 = vmatmul.f32.gmra.mxu0 %v2028
        %v2347 = vpop.f32.mrf.mxu0
        %v2348 = vadd.f32 %v2025, %v2347
        %2349 = vdwg.mxu0
        %2350 = vmatpush.msra.mxu0 0.0
        %2351 = vmatpush.msra.mxu0 0.0
        %2352 = vmatpush.msra.mxu0 0.0
        %2353 = vmatpush.msra.mxu0 0.0
        %2354 = vmatpush.msra.mxu0 0.0
        %2355 = vmatpush.msra.mxu0 0.0
        %2356 = vmatpush.msra.mxu0 0.0
        %2357 = vmatpush.msra.mxu0 0.0
        %2358 = vmatpush.msra.mxu0 0.0
        %2359 = vmatpush.msra.mxu0 0.0
        %2360 = vmatpush.msra.mxu0 0.0
        %2361 = vmatpush.msra.mxu0 0.0
        %2362 = vmatpush.msra.mxu0 0.0
        %2363 = vmatpush.msra.mxu0 0.0
        %2364 = vmatpush.msra.mxu0 0.0
        %2365 = vmatpush.msra.mxu0 %v2002
        %2366 = vmatmul.f32.gmra.mxu0 %v2028
        %v2367 = vpop.f32.mrf.mxu0
        %v2368 = vadd.f32 %v2025, %v2367
        %2369 = vdwg.mxu0
        %2370 = vmatpush.msra.mxu0 0.0
        %2371 = vmatpush.msra.mxu0 0.0
        %2372 = vmatpush.msra.mxu0 0.0
        %2373 = vmatpush.msra.mxu0 0.0
        %2374 = vmatpush.msra.mxu0 0.0
        %2375 = vmatpush.msra.mxu0 0.0
        %2376 = vmatpush.msra.mxu0 0.0
        %2377 = vmatpush.msra.mxu0 0.0
        %2378 = vmatpush.msra.mxu0 0.0
        %2379 = vmatpush.msra.mxu0 0.0
        %2380 = vmatpush.msra.mxu0 0.0
        %2381 = vmatpush.msra.mxu0 0.0
        %2382 = vmatpush.msra.mxu0 0.0
        %2383 = vmatpush.msra.mxu0 0.0
        %2384 = vmatpush.msra.mxu0 0.0
        %2385 = vmatpush.msra.mxu0 %v2003
        %2386 = vmatmul.f32.gmra.mxu0 %v2028
        %v2387 = vpop.f32.mrf.mxu0
        %v2388 = vadd.f32 %v2025, %v2387
        %2389 = vdwg.mxu0
        %2390 = vmatpush.msra.mxu0 0.0
        %2391 = vmatpush.msra.mxu0 0.0
        %2392 = vmatpush.msra.mxu0 0.0
        %2393 = vmatpush.msra.mxu0 0.0
        %2394 = vmatpush.msra.mxu0 0.0
        %2395 = vmatpush.msra.mxu0 0.0
        %2396 = vmatpush.msra.mxu0 0.0
        %2397 = vmatpush.msra.mxu0 0.0
        %2398 = vmatpush.msra.mxu0 0.0
        %2399 = vmatpush.msra.mxu0 0.0
        %2400 = vmatpush.msra.mxu0 0.0
        %2401 = vmatpush.msra.mxu0 0.0
        %2402 = vmatpush.msra.mxu0 0.0
        %2403 = vmatpush.msra.mxu0 0.0
        %2404 = vmatpush.msra.mxu0 0.0
        %2405 = vmatpush.msra.mxu0 %v2004
        %2406 = vmatmul.f32.gmra.mxu0 %v2028
        %v2407 = vpop.f32.mrf.mxu0
        %v2408 = vadd.f32 %v2025, %v2407
        %2409 = vdwg.mxu0
        %2410 = vmatpush.msra.mxu0 0.0
        %2411 = vmatpush.msra.mxu0 0.0
        %2412 = vmatpush.msra.mxu0 0.0
        %2413 = vmatpush.msra.mxu0 0.0
        %2414 = vmatpush.msra.mxu0 0.0
        %2415 = vmatpush.msra.mxu0 0.0
        %2416 = vmatpush.msra.mxu0 0.0
        %2417 = vmatpush.msra.mxu0 0.0
        %2418 = vmatpush.msra.mxu0 0.0
        %2419 = vmatpush.msra.mxu0 0.0
        %2420 = vmatpush.msra.mxu0 0.0
        %2421 = vmatpush.msra.mxu0 0.0
        %2422 = vmatpush.msra.mxu0 0.0
        %2423 = vmatpush.msra.mxu0 0.0
        %2424 = vmatpush.msra.mxu0 0.0
        %2425 = vmatpush.msra.mxu0 %v2005
        %2426 = vmatmul.f32.gmra.mxu0 %v2028
        %v2427 = vpop.f32.mrf.mxu0
        %v2428 = vadd.f32 %v2025, %v2427
        %2429 = vdwg.mxu0
        %2430 = vmatpush.msra.mxu0 0.0
        %2431 = vmatpush.msra.mxu0 0.0
        %2432 = vmatpush.msra.mxu0 0.0
        %2433 = vmatpush.msra.mxu0 0.0
        %2434 = vmatpush.msra.mxu0 0.0
        %2435 = vmatpush.msra.mxu0 0.0
        %2436 = vmatpush.msra.mxu0 0.0
        %2437 = vmatpush.msra.mxu0 0.0
        %2438 = vmatpush.msra.mxu0 0.0
        %2439 = vmatpush.msra.mxu0 0.0
        %2440 = vmatpush.msra.mxu0 0.0
        %2441 = vmatpush.msra.mxu0 0.0
        %2442 = vmatpush.msra.mxu0 0.0
        %2443 = vmatpush.msra.mxu0 0.0
        %2444 = vmatpush.msra.mxu0 0.0
        %2445 = vmatpush.msra.mxu0 %v2006
        %2446 = vmatmul.f32.gmra.mxu0 %v2028
        %v2447 = vpop.f32.mrf.mxu0
        %v2448 = vadd.f32 %v2025, %v2447
        %2449 = vdwg.mxu0
        %2450 = vmatpush.msra.mxu0 0.0
        %2451 = vmatpush.msra.mxu0 0.0
        %2452 = vmatpush.msra.mxu0 0.0
        %2453 = vmatpush.msra.mxu0 0.0
        %2454 = vmatpush.msra.mxu0 0.0
        %2455 = vmatpush.msra.mxu0 0.0
        %2456 = vmatpush.msra.mxu0 0.0
        %2457 = vmatpush.msra.mxu0 0.0
        %2458 = vmatpush.msra.mxu0 0.0
        %2459 = vmatpush.msra.mxu0 0.0
        %2460 = vmatpush.msra.mxu0 0.0
        %2461 = vmatpush.msra.mxu0 0.0
        %2462 = vmatpush.msra.mxu0 0.0
        %2463 = vmatpush.msra.mxu0 0.0
        %2464 = vmatpush.msra.mxu0 0.0
        %2465 = vmatpush.msra.mxu0 %v2007
        %2466 = vmatmul.f32.gmra.mxu0 %v2028
        %v2467 = vpop.f32.mrf.mxu0
        %v2468 = vadd.f32 %v2025, %v2467
        %2469 = vdwg.mxu0
        %2470 = vmatpush.msra.mxu0 0.0
        %2471 = vmatpush.msra.mxu0 0.0
        %2472 = vmatpush.msra.mxu0 0.0
        %2473 = vmatpush.msra.mxu0 0.0
        %2474 = vmatpush.msra.mxu0 0.0
        %2475 = vmatpush.msra.mxu0 0.0
        %2476 = vmatpush.msra.mxu0 0.0
        %2477 = vmatpush.msra.mxu0 0.0
        %2478 = vmatpush.msra.mxu0 0.0
        %2479 = vmatpush.msra.mxu0 0.0
        %2480 = vmatpush.msra.mxu0 0.0
        %2481 = vmatpush.msra.mxu0 0.0
        %2482 = vmatpush.msra.mxu0 0.0
        %2483 = vmatpush.msra.mxu0 0.0
        %2484 = vmatpush.msra.mxu0 0.0
        %2485 = vmatpush.msra.mxu0 %v2008
        %2486 = vmatmul.f32.gmra.mxu0 %v2028
        %v2487 = vpop.f32.mrf.mxu0
        %v2488 = vadd.f32 %v2025, %v2487
        %2489 = vdwg.mxu0
        %2490 = vmatpush.msra.mxu0 0.0
        %2491 = vmatpush.msra.mxu0 0.0
        %2492 = vmatpush.msra.mxu0 0.0
        %2493 = vmatpush.msra.mxu0 0.0
        %2494 = vmatpush.msra.mxu0 0.0
        %2495 = vmatpush.msra.mxu0 0.0
        %2496 = vmatpush.msra.mxu0 0.0
        %2497 = vmatpush.msra.mxu0 0.0
        %2498 = vmatpush.msra.mxu0 0.0
        %2499 = vmatpush.msra.mxu0 0.0
        %2500 = vmatpush.msra.mxu0 0.0
        %2501 = vmatpush.msra.mxu0 0.0
        %2502 = vmatpush.msra.mxu0 0.0
        %2503 = vmatpush.msra.mxu0 0.0
        %2504 = vmatpush.msra.mxu0 0.0
        %2505 = vmatpush.msra.mxu0 %v2009
        %2506 = vmatmul.f32.gmra.mxu0 %v2028
        %v2507 = vpop.f32.mrf.mxu0
        %v2508 = vadd.f32 %v2025, %v2507
        %2509 = vdwg.mxu0
        %2510 = vmatpush.msra.mxu0 0.0
        %2511 = vmatpush.msra.mxu0 0.0
        %2512 = vmatpush.msra.mxu0 0.0
        %2513 = vmatpush.msra.mxu0 0.0
        %2514 = vmatpush.msra.mxu0 0.0
        %2515 = vmatpush.msra.mxu0 0.0
        %2516 = vmatpush.msra.mxu0 0.0
        %2517 = vmatpush.msra.mxu0 0.0
        %2518 = vmatpush.msra.mxu0 0.0
        %2519 = vmatpush.msra.mxu0 0.0
        %2520 = vmatpush.msra.mxu0 0.0
        %2521 = vmatpush.msra.mxu0 0.0
        %2522 = vmatpush.msra.mxu0 0.0
        %2523 = vmatpush.msra.mxu0 0.0
        %2524 = vmatpush.msra.mxu0 0.0
        %2525 = vmatpush.msra.mxu0 %v2010
        %2526 = vmatmul.f32.gmra.mxu0 %v2028
        %v2527 = vpop.f32.mrf.mxu0
        %v2528 = vadd.f32 %v2025, %v2527
        %2529 = vdwg.mxu0
        %2530 = vmatpush.msra.mxu0 0.0
        %2531 = vmatpush.msra.mxu0 0.0
        %2532 = vmatpush.msra.mxu0 0.0
        %2533 = vmatpush.msra.mxu0 0.0
        %2534 = vmatpush.msra.mxu0 0.0
        %2535 = vmatpush.msra.mxu0 0.0
        %2536 = vmatpush.msra.mxu0 0.0
        %2537 = vmatpush.msra.mxu0 0.0
        %2538 = vmatpush.msra.mxu0 0.0
        %2539 = vmatpush.msra.mxu0 0.0
        %2540 = vmatpush.msra.mxu0 0.0
        %2541 = vmatpush.msra.mxu0 0.0
        %2542 = vmatpush.msra.mxu0 0.0
        %2543 = vmatpush.msra.mxu0 0.0
        %2544 = vmatpush.msra.mxu0 0.0
        %2545 = vmatpush.msra.mxu0 %v2011
        %2546 = vmatmul.f32.gmra.mxu0 %v2028
        %v2547 = vpop.f32.mrf.mxu0
        %v2548 = vadd.f32 %v2025, %v2547
        %2549 = vdwg.mxu0
        %2550 = vmatpush.msra.mxu0 0.0
        %2551 = vmatpush.msra.mxu0 0.0
        %2552 = vmatpush.msra.mxu0 0.0
        %2553 = vmatpush.msra.mxu0 0.0
        %2554 = vmatpush.msra.mxu0 0.0
        %2555 = vmatpush.msra.mxu0 0.0
        %2556 = vmatpush.msra.mxu0 0.0
        %2557 = vmatpush.msra.mxu0 0.0
        %2558 = vmatpush.msra.mxu0 0.0
        %2559 = vmatpush.msra.mxu0 0.0
        %2560 = vmatpush.msra.mxu0 0.0
        %2561 = vmatpush.msra.mxu0 0.0
        %2562 = vmatpush.msra.mxu0 0.0
        %2563 = vmatpush.msra.mxu0 0.0
        %2564 = vmatpush.msra.mxu0 0.0
        %2565 = vmatpush.msra.mxu0 %v2012
        %2566 = vmatmul.f32.gmra.mxu0 %v2028
        %v2567 = vpop.f32.mrf.mxu0
        %v2568 = vadd.f32 %v2025, %v2567
        %2569 = vdwg.mxu0
        %2570 = vmatpush.msra.mxu0 0.0
        %2571 = vmatpush.msra.mxu0 0.0
        %2572 = vmatpush.msra.mxu0 0.0
        %2573 = vmatpush.msra.mxu0 0.0
        %2574 = vmatpush.msra.mxu0 0.0
        %2575 = vmatpush.msra.mxu0 0.0
        %2576 = vmatpush.msra.mxu0 0.0
        %2577 = vmatpush.msra.mxu0 0.0
        %2578 = vmatpush.msra.mxu0 0.0
        %2579 = vmatpush.msra.mxu0 0.0
        %2580 = vmatpush.msra.mxu0 0.0
        %2581 = vmatpush.msra.mxu0 0.0
        %2582 = vmatpush.msra.mxu0 0.0
        %2583 = vmatpush.msra.mxu0 0.0
        %2584 = vmatpush.msra.mxu0 0.0
        %2585 = vmatpush.msra.mxu0 %v2013
        %2586 = vmatmul.f32.gmra.mxu0 %v2028
        %v2587 = vpop.f32.mrf.mxu0
        %v2588 = vadd.f32 %v2025, %v2587
        %2589 = vdwg.mxu0
        %2590 = vmatpush.msra.mxu0 0.0
        %2591 = vmatpush.msra.mxu0 0.0
        %2592 = vmatpush.msra.mxu0 0.0
        %2593 = vmatpush.msra.mxu0 0.0
        %2594 = vmatpush.msra.mxu0 0.0
        %2595 = vmatpush.msra.mxu0 0.0
        %2596 = vmatpush.msra.mxu0 0.0
        %2597 = vmatpush.msra.mxu0 0.0
        %2598 = vmatpush.msra.mxu0 0.0
        %2599 = vmatpush.msra.mxu0 0.0
        %2600 = vmatpush.msra.mxu0 0.0
        %2601 = vmatpush.msra.mxu0 0.0
        %2602 = vmatpush.msra.mxu0 0.0
        %2603 = vmatpush.msra.mxu0 0.0
        %2604 = vmatpush.msra.mxu0 0.0
        %2605 = vmatpush.msra.mxu0 %v2014
        %2606 = vmatmul.f32.gmra.mxu0 %v2028
        %v2607 = vpop.f32.mrf.mxu0
        %v2608 = vadd.f32 %v2025, %v2607
        %2609 = vdwg.mxu0
        %2610 = vmatpush.msra.mxu0 0.0
        %2611 = vmatpush.msra.mxu0 0.0
        %2612 = vmatpush.msra.mxu0 0.0
        %2613 = vmatpush.msra.mxu0 0.0
        %2614 = vmatpush.msra.mxu0 0.0
        %2615 = vmatpush.msra.mxu0 0.0
        %2616 = vmatpush.msra.mxu0 0.0
        %2617 = vmatpush.msra.mxu0 0.0
        %2618 = vmatpush.msra.mxu0 0.0
        %2619 = vmatpush.msra.mxu0 0.0
        %2620 = vmatpush.msra.mxu0 0.0
        %2621 = vmatpush.msra.mxu0 0.0
        %2622 = vmatpush.msra.mxu0 0.0
        %2623 = vmatpush.msra.mxu0 0.0
        %2624 = vmatpush.msra.mxu0 0.0
        %2625 = vmatpush.msra.mxu0 %v2015
        %2626 = vmatmul.f32.gmra.mxu0 %v2028
        %v2627 = vpop.f32.mrf.mxu0
        %v2628 = vadd.f32 %v2025, %v2627
        %2629 = vdwg.mxu0
        %2630 = vmatpush.msra.mxu0 0.0
        %2631 = vmatpush.msra.mxu0 0.0
        %2632 = vmatpush.msra.mxu0 0.0
        %2633 = vmatpush.msra.mxu0 0.0
        %2634 = vmatpush.msra.mxu0 0.0
        %2635 = vmatpush.msra.mxu0 0.0
        %2636 = vmatpush.msra.mxu0 0.0
        %2637 = vmatpush.msra.mxu0 0.0
        %2638 = vmatpush.msra.mxu0 0.0
        %2639 = vmatpush.msra.mxu0 0.0
        %2640 = vmatpush.msra.mxu0 0.0
        %2641 = vmatpush.msra.mxu0 0.0
        %2642 = vmatpush.msra.mxu0 0.0
        %2643 = vmatpush.msra.mxu0 0.0
        %2644 = vmatpush.msra.mxu0 0.0
        %2645 = vmatpush.msra.mxu0 %v2016
        %2646 = vmatmul.f32.gmra.mxu0 %v2028
        %v2647 = vpop.f32.mrf.mxu0
        %v2648 = vadd.f32 %v2025, %v2647
        %2649 = vdwg.mxu0
        %2650 = vmatpush.msra.mxu0 0.0
        %2651 = vmatpush.msra.mxu0 0.0
        %2652 = vmatpush.msra.mxu0 0.0
        %2653 = vmatpush.msra.mxu0 0.0
        %2654 = vmatpush.msra.mxu0 0.0
        %2655 = vmatpush.msra.mxu0 0.0
        %2656 = vmatpush.msra.mxu0 0.0
        %2657 = vmatpush.msra.mxu0 0.0
        %2658 = vmatpush.msra.mxu0 0.0
        %2659 = vmatpush.msra.mxu0 0.0
        %2660 = vmatpush.msra.mxu0 0.0
        %2661 = vmatpush.msra.mxu0 0.0
        %2662 = vmatpush.msra.mxu0 0.0
        %2663 = vmatpush.msra.mxu0 0.0
        %2664 = vmatpush.msra.mxu0 0.0
        %2665 = vmatpush.msra.mxu0 %v2017
        %2666 = vmatmul.f32.gmra.mxu0 %v2028
        %v2667 = vpop.f32.mrf.mxu0
        %v2668 = vadd.f32 %v2025, %v2667
        %2669 = vdwg.mxu0
        %v2670 = vxor.u32 %v2048, 2147483648
        %v2671 = vxor.u32 %v2068, 2147483648
        %v2672 = vxor.u32 %v2088, 2147483648
        %v2673 = vxor.u32 %v2108, 2147483648
        %v2674 = vxor.u32 %v2128, 2147483648
        %v2675 = vxor.u32 %v2148, 2147483648
        %v2676 = vxor.u32 %v2168, 2147483648
        %v2677 = vxor.u32 %v2188, 2147483648
        %v2678 = vxor.u32 %v2208, 2147483648
        %v2679 = vxor.u32 %v2228, 2147483648
        %v2680 = vxor.u32 %v2248, 2147483648
        %v2681 = vxor.u32 %v2268, 2147483648
        %v2682 = vxor.u32 %v2288, 2147483648
        %v2683 = vxor.u32 %v2308, 2147483648
        %v2684 = vxor.u32 %v2328, 2147483648
        %v2685 = vxor.u32 %v2348, 2147483648
        %v2686 = vxor.u32 %v2368, 2147483648
        %v2687 = vxor.u32 %v2388, 2147483648
        %v2688 = vxor.u32 %v2408, 2147483648
        %v2689 = vxor.u32 %v2428, 2147483648
        %v2690 = vxor.u32 %v2448, 2147483648
        %v2691 = vxor.u32 %v2468, 2147483648
        %v2692 = vxor.u32 %v2488, 2147483648
        %v2693 = vxor.u32 %v2508, 2147483648
        %v2694 = vxor.u32 %v2528, 2147483648
        %v2695 = vxor.u32 %v2548, 2147483648
        %v2696 = vxor.u32 %v2568, 2147483648
        %v2697 = vxor.u32 %v2588, 2147483648
        %v2698 = vxor.u32 %v2608, 2147483648
        %v2699 = vxor.u32 %v2628, 2147483648
        %v2700 = vxor.u32 %v2648, 2147483648
        %v2701 = vxor.u32 %v2668, 2147483648
        %v2702 = vmul.f32 %v2670, 1.442695
        %v2703 = vpow.pop %v2702
        %v2704 = vmul.f32 %v2671, 1.442695
        %v2705 = vpow.pop %v2704
        %v2706 = vmul.f32 %v2672, 1.442695
        %v2707 = vpow.pop %v2706
        %v2708 = vmul.f32 %v2673, 1.442695
        %v2709 = vpow.pop %v2708
        %v2710 = vmul.f32 %v2674, 1.442695
        %v2711 = vpow.pop %v2710
        %v2712 = vmul.f32 %v2675, 1.442695
        %v2713 = vpow.pop %v2712
        %v2714 = vmul.f32 %v2676, 1.442695
        %v2715 = vpow.pop %v2714
        %v2716 = vmul.f32 %v2677, 1.442695
        %v2717 = vpow.pop %v2716
        %v2718 = vmul.f32 %v2678, 1.442695
        %v2719 = vpow.pop %v2718
        %v2720 = vmul.f32 %v2679, 1.442695
        %v2721 = vpow.pop %v2720
        %v2722 = vmul.f32 %v2680, 1.442695
        %v2723 = vpow.pop %v2722
        %v2724 = vmul.f32 %v2681, 1.442695
        %v2725 = vpow.pop %v2724
        %v2726 = vmul.f32 %v2682, 1.442695
        %v2727 = vpow.pop %v2726
        %v2728 = vmul.f32 %v2683, 1.442695
        %v2729 = vpow.pop %v2728
        %v2730 = vmul.f32 %v2684, 1.442695
        %v2731 = vpow.pop %v2730
        %v2732 = vmul.f32 %v2685, 1.442695
        %v2733 = vpow.pop %v2732
        %v2734 = vmul.f32 %v2686, 1.442695
        %v2735 = vpow.pop %v2734
        %v2736 = vmul.f32 %v2687, 1.442695
        %v2737 = vpow.pop %v2736
        %v2738 = vmul.f32 %v2688, 1.442695
        %v2739 = vpow.pop %v2738
        %v2740 = vmul.f32 %v2689, 1.442695
        %v2741 = vpow.pop %v2740
        %v2742 = vmul.f32 %v2690, 1.442695
        %v2743 = vpow.pop %v2742
        %v2744 = vmul.f32 %v2691, 1.442695
        %v2745 = vpow.pop %v2744
        %v2746 = vmul.f32 %v2692, 1.442695
        %v2747 = vpow.pop %v2746
        %v2748 = vmul.f32 %v2693, 1.442695
        %v2749 = vpow.pop %v2748
        %v2750 = vmul.f32 %v2694, 1.442695
        %v2751 = vpow.pop %v2750
        %v2752 = vmul.f32 %v2695, 1.442695
        %v2753 = vpow.pop %v2752
        %v2754 = vmul.f32 %v2696, 1.442695
        %v2755 = vpow.pop %v2754
        %v2756 = vmul.f32 %v2697, 1.442695
        %v2757 = vpow.pop %v2756
        %v2758 = vmul.f32 %v2698, 1.442695
        %v2759 = vpow.pop %v2758
        %v2760 = vmul.f32 %v2699, 1.442695
        %v2761 = vpow.pop %v2760
        %v2762 = vmul.f32 %v2700, 1.442695
        %v2763 = vpow.pop %v2762
        %v2764 = vmul.f32 %v2701, 1.442695
        %v2765 = vpow.pop %v2764
        %v2766 = vadd.f32 %v2703, 1.0
        %v2767 = vadd.f32 %v2705, 1.0
        %v2768 = vadd.f32 %v2707, 1.0
        %v2769 = vadd.f32 %v2709, 1.0
        %v2770 = vadd.f32 %v2711, 1.0
        %v2771 = vadd.f32 %v2713, 1.0
        %v2772 = vadd.f32 %v2715, 1.0
        %v2773 = vadd.f32 %v2717, 1.0
        %v2774 = vadd.f32 %v2719, 1.0
        %v2775 = vadd.f32 %v2721, 1.0
        %v2776 = vadd.f32 %v2723, 1.0
        %v2777 = vadd.f32 %v2725, 1.0
        %v2778 = vadd.f32 %v2727, 1.0
        %v2779 = vadd.f32 %v2729, 1.0
        %v2780 = vadd.f32 %v2731, 1.0
        %v2781 = vadd.f32 %v2733, 1.0
        %v2782 = vadd.f32 %v2735, 1.0
        %v2783 = vadd.f32 %v2737, 1.0
        %v2784 = vadd.f32 %v2739, 1.0
        %v2785 = vadd.f32 %v2741, 1.0
        %v2786 = vadd.f32 %v2743, 1.0
        %v2787 = vadd.f32 %v2745, 1.0
        %v2788 = vadd.f32 %v2747, 1.0
        %v2789 = vadd.f32 %v2749, 1.0
        %v2790 = vadd.f32 %v2751, 1.0
        %v2791 = vadd.f32 %v2753, 1.0
        %v2792 = vadd.f32 %v2755, 1.0
        %v2793 = vadd.f32 %v2757, 1.0
        %v2794 = vadd.f32 %v2759, 1.0
        %v2795 = vadd.f32 %v2761, 1.0
        %v2796 = vadd.f32 %v2763, 1.0
        %v2797 = vadd.f32 %v2765, 1.0
        %v2798 = vrcp.pop %v2766
        %v2799 = vmul.f32 %v2766, %v2798
        %v2800 = vsub.f32 1.0, %v2799
        %v2801 = vmul.f32 %v2798, %v2800
        %v2802 = vadd.f32 %v2798, %v2801
        %vm2803 = vweird.f32 %v2766
        %vm2804 = vweird.f32 %v2798
        %vm2805 = vmor %vm2803, %vm2804
        %v2806 = vsel %vm2805, %v2798, %v2802
        %v2807 = vand.u32 2147483647, %v2766
        %vm2808 = vcmp.eq.f32.partialorder %v2807, 8.507059e+37
        %v2809 = vand.u32 %v2766, 2147483648
        %v2810 = vor.u32 1.1754944e-38, %v2809
        %v2811 = vsel %vm2808, %v2810, %v2806
        %v2812 = vmul.f32 1.0, %v2811
        %v2813 = vrcp.pop %v2767
        %v2814 = vmul.f32 %v2767, %v2813
        %v2815 = vsub.f32 1.0, %v2814
        %v2816 = vmul.f32 %v2813, %v2815
        %v2817 = vadd.f32 %v2813, %v2816
        %vm2818 = vweird.f32 %v2767
        %vm2819 = vweird.f32 %v2813
        %vm2820 = vmor %vm2818, %vm2819
        %v2821 = vsel %vm2820, %v2813, %v2817
        %v2822 = vand.u32 2147483647, %v2767
        %vm2823 = vcmp.eq.f32.partialorder %v2822, 8.507059e+37
        %v2824 = vand.u32 %v2767, 2147483648
        %v2825 = vor.u32 1.1754944e-38, %v2824
        %v2826 = vsel %vm2823, %v2825, %v2821
        %v2827 = vmul.f32 1.0, %v2826
        %v2828 = vrcp.pop %v2768
        %v2829 = vmul.f32 %v2768, %v2828
        %v2830 = vsub.f32 1.0, %v2829
        %v2831 = vmul.f32 %v2828, %v2830
        %v2832 = vadd.f32 %v2828, %v2831
        %vm2833 = vweird.f32 %v2768
        %vm2834 = vweird.f32 %v2828
        %vm2835 = vmor %vm2833, %vm2834
        %v2836 = vsel %vm2835, %v2828, %v2832
        %v2837 = vand.u32 2147483647, %v2768
        %vm2838 = vcmp.eq.f32.partialorder %v2837, 8.507059e+37
        %v2839 = vand.u32 %v2768, 2147483648
        %v2840 = vor.u32 1.1754944e-38, %v2839
        %v2841 = vsel %vm2838, %v2840, %v2836
        %v2842 = vmul.f32 1.0, %v2841
        %v2843 = vrcp.pop %v2769
        %v2844 = vmul.f32 %v2769, %v2843
        %v2845 = vsub.f32 1.0, %v2844
        %v2846 = vmul.f32 %v2843, %v2845
        %v2847 = vadd.f32 %v2843, %v2846
        %vm2848 = vweird.f32 %v2769
        %vm2849 = vweird.f32 %v2843
        %vm2850 = vmor %vm2848, %vm2849
        %v2851 = vsel %vm2850, %v2843, %v2847
        %v2852 = vand.u32 2147483647, %v2769
        %vm2853 = vcmp.eq.f32.partialorder %v2852, 8.507059e+37
        %v2854 = vand.u32 %v2769, 2147483648
        %v2855 = vor.u32 1.1754944e-38, %v2854
        %v2856 = vsel %vm2853, %v2855, %v2851
        %v2857 = vmul.f32 1.0, %v2856
        %v2858 = vrcp.pop %v2770
        %v2859 = vmul.f32 %v2770, %v2858
        %v2860 = vsub.f32 1.0, %v2859
        %v2861 = vmul.f32 %v2858, %v2860
        %v2862 = vadd.f32 %v2858, %v2861
        %vm2863 = vweird.f32 %v2770
        %vm2864 = vweird.f32 %v2858
        %vm2865 = vmor %vm2863, %vm2864
        %v2866 = vsel %vm2865, %v2858, %v2862
        %v2867 = vand.u32 2147483647, %v2770
        %vm2868 = vcmp.eq.f32.partialorder %v2867, 8.507059e+37
        %v2869 = vand.u32 %v2770, 2147483648
        %v2870 = vor.u32 1.1754944e-38, %v2869
        %v2871 = vsel %vm2868, %v2870, %v2866
        %v2872 = vmul.f32 1.0, %v2871
        %v2873 = vrcp.pop %v2771
        %v2874 = vmul.f32 %v2771, %v2873
        %v2875 = vsub.f32 1.0, %v2874
        %v2876 = vmul.f32 %v2873, %v2875
        %v2877 = vadd.f32 %v2873, %v2876
        %vm2878 = vweird.f32 %v2771
        %vm2879 = vweird.f32 %v2873
        %vm2880 = vmor %vm2878, %vm2879
        %v2881 = vsel %vm2880, %v2873, %v2877
        %v2882 = vand.u32 2147483647, %v2771
        %vm2883 = vcmp.eq.f32.partialorder %v2882, 8.507059e+37
        %v2884 = vand.u32 %v2771, 2147483648
        %v2885 = vor.u32 1.1754944e-38, %v2884
        %v2886 = vsel %vm2883, %v2885, %v2881
        %v2887 = vmul.f32 1.0, %v2886
        %v2888 = vrcp.pop %v2772
        %v2889 = vmul.f32 %v2772, %v2888
        %v2890 = vsub.f32 1.0, %v2889
        %v2891 = vmul.f32 %v2888, %v2890
        %v2892 = vadd.f32 %v2888, %v2891
        %vm2893 = vweird.f32 %v2772
        %vm2894 = vweird.f32 %v2888
        %vm2895 = vmor %vm2893, %vm2894
        %v2896 = vsel %vm2895, %v2888, %v2892
        %v2897 = vand.u32 2147483647, %v2772
        %vm2898 = vcmp.eq.f32.partialorder %v2897, 8.507059e+37
        %v2899 = vand.u32 %v2772, 2147483648
        %v2900 = vor.u32 1.1754944e-38, %v2899
        %v2901 = vsel %vm2898, %v2900, %v2896
        %v2902 = vmul.f32 1.0, %v2901
        %v2903 = vrcp.pop %v2773
        %v2904 = vmul.f32 %v2773, %v2903
        %v2905 = vsub.f32 1.0, %v2904
        %v2906 = vmul.f32 %v2903, %v2905
        %v2907 = vadd.f32 %v2903, %v2906
        %vm2908 = vweird.f32 %v2773
        %vm2909 = vweird.f32 %v2903
        %vm2910 = vmor %vm2908, %vm2909
        %v2911 = vsel %vm2910, %v2903, %v2907
        %v2912 = vand.u32 2147483647, %v2773
        %vm2913 = vcmp.eq.f32.partialorder %v2912, 8.507059e+37
        %v2914 = vand.u32 %v2773, 2147483648
        %v2915 = vor.u32 1.1754944e-38, %v2914
        %v2916 = vsel %vm2913, %v2915, %v2911
        %v2917 = vmul.f32 1.0, %v2916
        %v2918 = vrcp.pop %v2774
        %v2919 = vmul.f32 %v2774, %v2918
        %v2920 = vsub.f32 1.0, %v2919
        %v2921 = vmul.f32 %v2918, %v2920
        %v2922 = vadd.f32 %v2918, %v2921
        %vm2923 = vweird.f32 %v2774
        %vm2924 = vweird.f32 %v2918
        %vm2925 = vmor %vm2923, %vm2924
        %v2926 = vsel %vm2925, %v2918, %v2922
        %v2927 = vand.u32 2147483647, %v2774
        %vm2928 = vcmp.eq.f32.partialorder %v2927, 8.507059e+37
        %v2929 = vand.u32 %v2774, 2147483648
        %v2930 = vor.u32 1.1754944e-38, %v2929
        %v2931 = vsel %vm2928, %v2930, %v2926
        %v2932 = vmul.f32 1.0, %v2931
        %v2933 = vrcp.pop %v2775
        %v2934 = vmul.f32 %v2775, %v2933
        %v2935 = vsub.f32 1.0, %v2934
        %v2936 = vmul.f32 %v2933, %v2935
        %v2937 = vadd.f32 %v2933, %v2936
        %vm2938 = vweird.f32 %v2775
        %vm2939 = vweird.f32 %v2933
        %vm2940 = vmor %vm2938, %vm2939
        %v2941 = vsel %vm2940, %v2933, %v2937
        %v2942 = vand.u32 2147483647, %v2775
        %vm2943 = vcmp.eq.f32.partialorder %v2942, 8.507059e+37
        %v2944 = vand.u32 %v2775, 2147483648
        %v2945 = vor.u32 1.1754944e-38, %v2944
        %v2946 = vsel %vm2943, %v2945, %v2941
        %v2947 = vmul.f32 1.0, %v2946
        %v2948 = vrcp.pop %v2776
        %v2949 = vmul.f32 %v2776, %v2948
        %v2950 = vsub.f32 1.0, %v2949
        %v2951 = vmul.f32 %v2948, %v2950
        %v2952 = vadd.f32 %v2948, %v2951
        %vm2953 = vweird.f32 %v2776
        %vm2954 = vweird.f32 %v2948
        %vm2955 = vmor %vm2953, %vm2954
        %v2956 = vsel %vm2955, %v2948, %v2952
        %v2957 = vand.u32 2147483647, %v2776
        %vm2958 = vcmp.eq.f32.partialorder %v2957, 8.507059e+37
        %v2959 = vand.u32 %v2776, 2147483648
        %v2960 = vor.u32 1.1754944e-38, %v2959
        %v2961 = vsel %vm2958, %v2960, %v2956
        %v2962 = vmul.f32 1.0, %v2961
        %v2963 = vrcp.pop %v2777
        %v2964 = vmul.f32 %v2777, %v2963
        %v2965 = vsub.f32 1.0, %v2964
        %v2966 = vmul.f32 %v2963, %v2965
        %v2967 = vadd.f32 %v2963, %v2966
        %vm2968 = vweird.f32 %v2777
        %vm2969 = vweird.f32 %v2963
        %vm2970 = vmor %vm2968, %vm2969
        %v2971 = vsel %vm2970, %v2963, %v2967
        %v2972 = vand.u32 2147483647, %v2777
        %vm2973 = vcmp.eq.f32.partialorder %v2972, 8.507059e+37
        %v2974 = vand.u32 %v2777, 2147483648
        %v2975 = vor.u32 1.1754944e-38, %v2974
        %v2976 = vsel %vm2973, %v2975, %v2971
        %v2977 = vmul.f32 1.0, %v2976
        %v2978 = vrcp.pop %v2778
        %v2979 = vmul.f32 %v2778, %v2978
        %v2980 = vsub.f32 1.0, %v2979
        %v2981 = vmul.f32 %v2978, %v2980
        %v2982 = vadd.f32 %v2978, %v2981
        %vm2983 = vweird.f32 %v2778
        %vm2984 = vweird.f32 %v2978
        %vm2985 = vmor %vm2983, %vm2984
        %v2986 = vsel %vm2985, %v2978, %v2982
        %v2987 = vand.u32 2147483647, %v2778
        %vm2988 = vcmp.eq.f32.partialorder %v2987, 8.507059e+37
        %v2989 = vand.u32 %v2778, 2147483648
        %v2990 = vor.u32 1.1754944e-38, %v2989
        %v2991 = vsel %vm2988, %v2990, %v2986
        %v2992 = vmul.f32 1.0, %v2991
        %v2993 = vrcp.pop %v2779
        %v2994 = vmul.f32 %v2779, %v2993
        %v2995 = vsub.f32 1.0, %v2994
        %v2996 = vmul.f32 %v2993, %v2995
        %v2997 = vadd.f32 %v2993, %v2996
        %vm2998 = vweird.f32 %v2779
        %vm2999 = vweird.f32 %v2993
        %vm3000 = vmor %vm2998, %vm2999
        %v3001 = vsel %vm3000, %v2993, %v2997
        %v3002 = vand.u32 2147483647, %v2779
        %vm3003 = vcmp.eq.f32.partialorder %v3002, 8.507059e+37
        %v3004 = vand.u32 %v2779, 2147483648
        %v3005 = vor.u32 1.1754944e-38, %v3004
        %v3006 = vsel %vm3003, %v3005, %v3001
        %v3007 = vmul.f32 1.0, %v3006
        %v3008 = vrcp.pop %v2780
        %v3009 = vmul.f32 %v2780, %v3008
        %v3010 = vsub.f32 1.0, %v3009
        %v3011 = vmul.f32 %v3008, %v3010
        %v3012 = vadd.f32 %v3008, %v3011
        %vm3013 = vweird.f32 %v2780
        %vm3014 = vweird.f32 %v3008
        %vm3015 = vmor %vm3013, %vm3014
        %v3016 = vsel %vm3015, %v3008, %v3012
        %v3017 = vand.u32 2147483647, %v2780
        %vm3018 = vcmp.eq.f32.partialorder %v3017, 8.507059e+37
        %v3019 = vand.u32 %v2780, 2147483648
        %v3020 = vor.u32 1.1754944e-38, %v3019
        %v3021 = vsel %vm3018, %v3020, %v3016
        %v3022 = vmul.f32 1.0, %v3021
        %v3023 = vrcp.pop %v2781
        %v3024 = vmul.f32 %v2781, %v3023
        %v3025 = vsub.f32 1.0, %v3024
        %v3026 = vmul.f32 %v3023, %v3025
        %v3027 = vadd.f32 %v3023, %v3026
        %vm3028 = vweird.f32 %v2781
        %vm3029 = vweird.f32 %v3023
        %vm3030 = vmor %vm3028, %vm3029
        %v3031 = vsel %vm3030, %v3023, %v3027
        %v3032 = vand.u32 2147483647, %v2781
        %vm3033 = vcmp.eq.f32.partialorder %v3032, 8.507059e+37
        %v3034 = vand.u32 %v2781, 2147483648
        %v3035 = vor.u32 1.1754944e-38, %v3034
        %v3036 = vsel %vm3033, %v3035, %v3031
        %v3037 = vmul.f32 1.0, %v3036
        %v3038 = vrcp.pop %v2782
        %v3039 = vmul.f32 %v2782, %v3038
        %v3040 = vsub.f32 1.0, %v3039
        %v3041 = vmul.f32 %v3038, %v3040
        %v3042 = vadd.f32 %v3038, %v3041
        %vm3043 = vweird.f32 %v2782
        %vm3044 = vweird.f32 %v3038
        %vm3045 = vmor %vm3043, %vm3044
        %v3046 = vsel %vm3045, %v3038, %v3042
        %v3047 = vand.u32 2147483647, %v2782
        %vm3048 = vcmp.eq.f32.partialorder %v3047, 8.507059e+37
        %v3049 = vand.u32 %v2782, 2147483648
        %v3050 = vor.u32 1.1754944e-38, %v3049
        %v3051 = vsel %vm3048, %v3050, %v3046
        %v3052 = vmul.f32 1.0, %v3051
        %v3053 = vrcp.pop %v2783
        %v3054 = vmul.f32 %v2783, %v3053
        %v3055 = vsub.f32 1.0, %v3054
        %v3056 = vmul.f32 %v3053, %v3055
        %v3057 = vadd.f32 %v3053, %v3056
        %vm3058 = vweird.f32 %v2783
        %vm3059 = vweird.f32 %v3053
        %vm3060 = vmor %vm3058, %vm3059
        %v3061 = vsel %vm3060, %v3053, %v3057
        %v3062 = vand.u32 2147483647, %v2783
        %vm3063 = vcmp.eq.f32.partialorder %v3062, 8.507059e+37
        %v3064 = vand.u32 %v2783, 2147483648
        %v3065 = vor.u32 1.1754944e-38, %v3064
        %v3066 = vsel %vm3063, %v3065, %v3061
        %v3067 = vmul.f32 1.0, %v3066
        %v3068 = vrcp.pop %v2784
        %v3069 = vmul.f32 %v2784, %v3068
        %v3070 = vsub.f32 1.0, %v3069
        %v3071 = vmul.f32 %v3068, %v3070
        %v3072 = vadd.f32 %v3068, %v3071
        %vm3073 = vweird.f32 %v2784
        %vm3074 = vweird.f32 %v3068
        %vm3075 = vmor %vm3073, %vm3074
        %v3076 = vsel %vm3075, %v3068, %v3072
        %v3077 = vand.u32 2147483647, %v2784
        %vm3078 = vcmp.eq.f32.partialorder %v3077, 8.507059e+37
        %v3079 = vand.u32 %v2784, 2147483648
        %v3080 = vor.u32 1.1754944e-38, %v3079
        %v3081 = vsel %vm3078, %v3080, %v3076
        %v3082 = vmul.f32 1.0, %v3081
        %v3083 = vrcp.pop %v2785
        %v3084 = vmul.f32 %v2785, %v3083
        %v3085 = vsub.f32 1.0, %v3084
        %v3086 = vmul.f32 %v3083, %v3085
        %v3087 = vadd.f32 %v3083, %v3086
        %vm3088 = vweird.f32 %v2785
        %vm3089 = vweird.f32 %v3083
        %vm3090 = vmor %vm3088, %vm3089
        %v3091 = vsel %vm3090, %v3083, %v3087
        %v3092 = vand.u32 2147483647, %v2785
        %vm3093 = vcmp.eq.f32.partialorder %v3092, 8.507059e+37
        %v3094 = vand.u32 %v2785, 2147483648
        %v3095 = vor.u32 1.1754944e-38, %v3094
        %v3096 = vsel %vm3093, %v3095, %v3091
        %v3097 = vmul.f32 1.0, %v3096
        %v3098 = vrcp.pop %v2786
        %v3099 = vmul.f32 %v2786, %v3098
        %v3100 = vsub.f32 1.0, %v3099
        %v3101 = vmul.f32 %v3098, %v3100
        %v3102 = vadd.f32 %v3098, %v3101
        %vm3103 = vweird.f32 %v2786
        %vm3104 = vweird.f32 %v3098
        %vm3105 = vmor %vm3103, %vm3104
        %v3106 = vsel %vm3105, %v3098, %v3102
        %v3107 = vand.u32 2147483647, %v2786
        %vm3108 = vcmp.eq.f32.partialorder %v3107, 8.507059e+37
        %v3109 = vand.u32 %v2786, 2147483648
        %v3110 = vor.u32 1.1754944e-38, %v3109
        %v3111 = vsel %vm3108, %v3110, %v3106
        %v3112 = vmul.f32 1.0, %v3111
        %v3113 = vrcp.pop %v2787
        %v3114 = vmul.f32 %v2787, %v3113
        %v3115 = vsub.f32 1.0, %v3114
        %v3116 = vmul.f32 %v3113, %v3115
        %v3117 = vadd.f32 %v3113, %v3116
        %vm3118 = vweird.f32 %v2787
        %vm3119 = vweird.f32 %v3113
        %vm3120 = vmor %vm3118, %vm3119
        %v3121 = vsel %vm3120, %v3113, %v3117
        %v3122 = vand.u32 2147483647, %v2787
        %vm3123 = vcmp.eq.f32.partialorder %v3122, 8.507059e+37
        %v3124 = vand.u32 %v2787, 2147483648
        %v3125 = vor.u32 1.1754944e-38, %v3124
        %v3126 = vsel %vm3123, %v3125, %v3121
        %v3127 = vmul.f32 1.0, %v3126
        %v3128 = vrcp.pop %v2788
        %v3129 = vmul.f32 %v2788, %v3128
        %v3130 = vsub.f32 1.0, %v3129
        %v3131 = vmul.f32 %v3128, %v3130
        %v3132 = vadd.f32 %v3128, %v3131
        %vm3133 = vweird.f32 %v2788
        %vm3134 = vweird.f32 %v3128
        %vm3135 = vmor %vm3133, %vm3134
        %v3136 = vsel %vm3135, %v3128, %v3132
        %v3137 = vand.u32 2147483647, %v2788
        %vm3138 = vcmp.eq.f32.partialorder %v3137, 8.507059e+37
        %v3139 = vand.u32 %v2788, 2147483648
        %v3140 = vor.u32 1.1754944e-38, %v3139
        %v3141 = vsel %vm3138, %v3140, %v3136
        %v3142 = vmul.f32 1.0, %v3141
        %v3143 = vrcp.pop %v2789
        %v3144 = vmul.f32 %v2789, %v3143
        %v3145 = vsub.f32 1.0, %v3144
        %v3146 = vmul.f32 %v3143, %v3145
        %v3147 = vadd.f32 %v3143, %v3146
        %vm3148 = vweird.f32 %v2789
        %vm3149 = vweird.f32 %v3143
        %vm3150 = vmor %vm3148, %vm3149
        %v3151 = vsel %vm3150, %v3143, %v3147
        %v3152 = vand.u32 2147483647, %v2789
        %vm3153 = vcmp.eq.f32.partialorder %v3152, 8.507059e+37
        %v3154 = vand.u32 %v2789, 2147483648
        %v3155 = vor.u32 1.1754944e-38, %v3154
        %v3156 = vsel %vm3153, %v3155, %v3151
        %v3157 = vmul.f32 1.0, %v3156
        %v3158 = vrcp.pop %v2790
        %v3159 = vmul.f32 %v2790, %v3158
        %v3160 = vsub.f32 1.0, %v3159
        %v3161 = vmul.f32 %v3158, %v3160
        %v3162 = vadd.f32 %v3158, %v3161
        %vm3163 = vweird.f32 %v2790
        %vm3164 = vweird.f32 %v3158
        %vm3165 = vmor %vm3163, %vm3164
        %v3166 = vsel %vm3165, %v3158, %v3162
        %v3167 = vand.u32 2147483647, %v2790
        %vm3168 = vcmp.eq.f32.partialorder %v3167, 8.507059e+37
        %v3169 = vand.u32 %v2790, 2147483648
        %v3170 = vor.u32 1.1754944e-38, %v3169
        %v3171 = vsel %vm3168, %v3170, %v3166
        %v3172 = vmul.f32 1.0, %v3171
        %v3173 = vrcp.pop %v2791
        %v3174 = vmul.f32 %v2791, %v3173
        %v3175 = vsub.f32 1.0, %v3174
        %v3176 = vmul.f32 %v3173, %v3175
        %v3177 = vadd.f32 %v3173, %v3176
        %vm3178 = vweird.f32 %v2791
        %vm3179 = vweird.f32 %v3173
        %vm3180 = vmor %vm3178, %vm3179
        %v3181 = vsel %vm3180, %v3173, %v3177
        %v3182 = vand.u32 2147483647, %v2791
        %vm3183 = vcmp.eq.f32.partialorder %v3182, 8.507059e+37
        %v3184 = vand.u32 %v2791, 2147483648
        %v3185 = vor.u32 1.1754944e-38, %v3184
        %v3186 = vsel %vm3183, %v3185, %v3181
        %v3187 = vmul.f32 1.0, %v3186
        %v3188 = vrcp.pop %v2792
        %v3189 = vmul.f32 %v2792, %v3188
        %v3190 = vsub.f32 1.0, %v3189
        %v3191 = vmul.f32 %v3188, %v3190
        %v3192 = vadd.f32 %v3188, %v3191
        %vm3193 = vweird.f32 %v2792
        %vm3194 = vweird.f32 %v3188
        %vm3195 = vmor %vm3193, %vm3194
        %v3196 = vsel %vm3195, %v3188, %v3192
        %v3197 = vand.u32 2147483647, %v2792
        %vm3198 = vcmp.eq.f32.partialorder %v3197, 8.507059e+37
        %v3199 = vand.u32 %v2792, 2147483648
        %v3200 = vor.u32 1.1754944e-38, %v3199
        %v3201 = vsel %vm3198, %v3200, %v3196
        %v3202 = vmul.f32 1.0, %v3201
        %v3203 = vrcp.pop %v2793
        %v3204 = vmul.f32 %v2793, %v3203
        %v3205 = vsub.f32 1.0, %v3204
        %v3206 = vmul.f32 %v3203, %v3205
        %v3207 = vadd.f32 %v3203, %v3206
        %vm3208 = vweird.f32 %v2793
        %vm3209 = vweird.f32 %v3203
        %vm3210 = vmor %vm3208, %vm3209
        %v3211 = vsel %vm3210, %v3203, %v3207
        %v3212 = vand.u32 2147483647, %v2793
        %vm3213 = vcmp.eq.f32.partialorder %v3212, 8.507059e+37
        %v3214 = vand.u32 %v2793, 2147483648
        %v3215 = vor.u32 1.1754944e-38, %v3214
        %v3216 = vsel %vm3213, %v3215, %v3211
        %v3217 = vmul.f32 1.0, %v3216
        %v3218 = vrcp.pop %v2794
        %v3219 = vmul.f32 %v2794, %v3218
        %v3220 = vsub.f32 1.0, %v3219
        %v3221 = vmul.f32 %v3218, %v3220
        %v3222 = vadd.f32 %v3218, %v3221
        %vm3223 = vweird.f32 %v2794
        %vm3224 = vweird.f32 %v3218
        %vm3225 = vmor %vm3223, %vm3224
        %v3226 = vsel %vm3225, %v3218, %v3222
        %v3227 = vand.u32 2147483647, %v2794
        %vm3228 = vcmp.eq.f32.partialorder %v3227, 8.507059e+37
        %v3229 = vand.u32 %v2794, 2147483648
        %v3230 = vor.u32 1.1754944e-38, %v3229
        %v3231 = vsel %vm3228, %v3230, %v3226
        %v3232 = vmul.f32 1.0, %v3231
        %v3233 = vrcp.pop %v2795
        %v3234 = vmul.f32 %v2795, %v3233
        %v3235 = vsub.f32 1.0, %v3234
        %v3236 = vmul.f32 %v3233, %v3235
        %v3237 = vadd.f32 %v3233, %v3236
        %vm3238 = vweird.f32 %v2795
        %vm3239 = vweird.f32 %v3233
        %vm3240 = vmor %vm3238, %vm3239
        %v3241 = vsel %vm3240, %v3233, %v3237
        %v3242 = vand.u32 2147483647, %v2795
        %vm3243 = vcmp.eq.f32.partialorder %v3242, 8.507059e+37
        %v3244 = vand.u32 %v2795, 2147483648
        %v3245 = vor.u32 1.1754944e-38, %v3244
        %v3246 = vsel %vm3243, %v3245, %v3241
        %v3247 = vmul.f32 1.0, %v3246
        %v3248 = vrcp.pop %v2796
        %v3249 = vmul.f32 %v2796, %v3248
        %v3250 = vsub.f32 1.0, %v3249
        %v3251 = vmul.f32 %v3248, %v3250
        %v3252 = vadd.f32 %v3248, %v3251
        %vm3253 = vweird.f32 %v2796
        %vm3254 = vweird.f32 %v3248
        %vm3255 = vmor %vm3253, %vm3254
        %v3256 = vsel %vm3255, %v3248, %v3252
        %v3257 = vand.u32 2147483647, %v2796
        %vm3258 = vcmp.eq.f32.partialorder %v3257, 8.507059e+37
        %v3259 = vand.u32 %v2796, 2147483648
        %v3260 = vor.u32 1.1754944e-38, %v3259
        %v3261 = vsel %vm3258, %v3260, %v3256
        %v3262 = vmul.f32 1.0, %v3261
        %v3263 = vrcp.pop %v2797
        %v3264 = vmul.f32 %v2797, %v3263
        %v3265 = vsub.f32 1.0, %v3264
        %v3266 = vmul.f32 %v3263, %v3265
        %v3267 = vadd.f32 %v3263, %v3266
        %vm3268 = vweird.f32 %v2797
        %vm3269 = vweird.f32 %v3263
        %vm3270 = vmor %vm3268, %vm3269
        %v3271 = vsel %vm3270, %v3263, %v3267
        %v3272 = vand.u32 2147483647, %v2797
        %vm3273 = vcmp.eq.f32.partialorder %v3272, 8.507059e+37
        %v3274 = vand.u32 %v2797, 2147483648
        %v3275 = vor.u32 1.1754944e-38, %v3274
        %v3276 = vsel %vm3273, %v3275, %v3271
        %v3277 = vmul.f32 1.0, %v3276
        %v3278 = vperm.slane %v2812, 0
        %v3279 = vperm.slane %v2827, 0
        %v3280 = vperm.slane %v2842, 0
        %v3281 = vperm.slane %v2857, 0
        %v3282 = vperm.slane %v2872, 0
        %v3283 = vperm.slane %v2887, 0
        %v3284 = vperm.slane %v2902, 0
        %v3285 = vperm.slane %v2917, 0
        %v3286 = vperm.slane %v2932, 0
        %v3287 = vperm.slane %v2947, 0
        %v3288 = vperm.slane %v2962, 0
        %v3289 = vperm.slane %v2977, 0
        %v3290 = vperm.slane %v2992, 0
        %v3291 = vperm.slane %v3007, 0
        %v3292 = vperm.slane %v3022, 0
        %v3293 = vperm.slane %v3037, 0
        %v3294 = vperm.slane %v3052, 0
        %v3295 = vperm.slane %v3067, 0
        %v3296 = vperm.slane %v3082, 0
        %v3297 = vperm.slane %v3097, 0
        %v3298 = vperm.slane %v3112, 0
        %v3299 = vperm.slane %v3127, 0
        %v3300 = vperm.slane %v3142, 0
        %v3301 = vperm.slane %v3157, 0
        %v3302 = vperm.slane %v3172, 0
        %v3303 = vperm.slane %v3187, 0
        %v3304 = vperm.slane %v3202, 0
        %v3305 = vperm.slane %v3217, 0
        %v3306 = vperm.slane %v3232, 0
        %v3307 = vperm.slane %v3247, 0
        %v3308 = vperm.slane %v3262, 0
        %v3309 = vperm.slane %v3277, 0
        %v3342 = vrot.slane %v3279, 4
        %v3343 = vrot.slane %v3281, 4
        %v3344 = vrot.slane %v3283, 4
        %v3345 = vrot.slane %v3285, 4
        %v3346 = vrot.slane %v3287, 4
        %v3347 = vrot.slane %v3289, 4
        %v3348 = vrot.slane %v3291, 4
        %v3349 = vrot.slane %v3293, 4
        %v3350 = vrot.slane %v3295, 4
        %v3351 = vrot.slane %v3297, 4
        %v3352 = vrot.slane %v3299, 4
        %v3353 = vrot.slane %v3301, 4
        %v3354 = vrot.slane %v3303, 4
        %v3355 = vrot.slane %v3305, 4
        %v3356 = vrot.slane %v3307, 4
        %v3357 = vrot.slane %v3309, 4
        %v3358 = vsel %vm469, %v3278, %v3342
        %v3359 = vsel %vm469, %v3280, %v3343
        %v3360 = vsel %vm469, %v3282, %v3344
        %v3361 = vsel %vm469, %v3284, %v3345
        %v3362 = vsel %vm469, %v3286, %v3346
        %v3363 = vsel %vm469, %v3288, %v3347
        %v3364 = vsel %vm469, %v3290, %v3348
        %v3365 = vsel %vm469, %v3292, %v3349
        %v3366 = vsel %vm469, %v3294, %v3350
        %v3367 = vsel %vm469, %v3296, %v3351
        %v3368 = vsel %vm469, %v3298, %v3352
        %v3369 = vsel %vm469, %v3300, %v3353
        %v3370 = vsel %vm469, %v3302, %v3354
        %v3371 = vsel %vm469, %v3304, %v3355
        %v3372 = vsel %vm469, %v3306, %v3356
        %v3373 = vsel %vm469, %v3308, %v3357
        %v3390 = vmul.f32 %v380, %v3358
        %v3391 = vmul.f32 %v381, %v3359
        %v3392 = vmul.f32 %v382, %v3360
        %v3393 = vmul.f32 %v383, %v3361
        %v3394 = vmul.f32 %v384, %v3362
        %v3395 = vmul.f32 %v385, %v3363
        %v3396 = vmul.f32 %v386, %v3364
        %v3397 = vmul.f32 %v387, %v3365
        %v3398 = vmul.f32 %v388, %v3366
        %v3399 = vmul.f32 %v389, %v3367
        %v3400 = vmul.f32 %v390, %v3368
        %v3401 = vmul.f32 %v391, %v3369
        %v3402 = vmul.f32 %v392, %v3370
        %v3403 = vmul.f32 %v393, %v3371
        %v3404 = vmul.f32 %v394, %v3372
        %v3405 = vmul.f32 %v395, %v3373
        %3406 = vst [vmem:[%s360] sm:$0xff] %v3390
        %3407 = vst [vmem:[%s360 + $0x8] sm:$0xff] %v3391
        %3408 = vst [vmem:[%s360 + $0x10] sm:$0xff] %v3392
        %3409 = vst [vmem:[%s360 + $0x18] sm:$0xff] %v3393
        %3410 = vst [vmem:[%s360 + $0x20] sm:$0xff] %v3394
        %3411 = vst [vmem:[%s360 + $0x28] sm:$0xff] %v3395
        %3412 = vst [vmem:[%s360 + $0x30] sm:$0xff] %v3396
        %3413 = vst [vmem:[%s360 + $0x38] sm:$0xff] %v3397
        %3414 = vst [vmem:[%s360 + $0x40] sm:$0xff] %v3398
        %3415 = vst [vmem:[%s360 + $0x48] sm:$0xff] %v3399
        %3416 = vst [vmem:[%s360 + $0x50] sm:$0xff] %v3400
        %3417 = vst [vmem:[%s360 + $0x58] sm:$0xff] %v3401
        %3418 = vst [vmem:[%s360 + $0x60] sm:$0xff] %v3402
        %3419 = vst [vmem:[%s360 + $0x68] sm:$0xff] %v3403
        %3420 = vst [vmem:[%s360 + $0x70] sm:$0xff] %v3404
        %3421 = vst [vmem:[%s360 + $0x78] sm:$0xff] %v3405
        %s3422 = sand.u32 %s212, 1
        %s3423 = scalar_lea.sflag [#allocation5], %s3422
        %s3424 = sand.u32 %s212, 1
        %s3425 = smul.addr %s3424, 128
        %s3426 = scalar_lea.vmem [#allocation8], %s3425
        // Predicated region
        $region57: #{tpu_custom_call.1} parent=47 // pred_check
          %p3427 = pneg %p222
        $region58: #{tpu_custom_call.1} parent=47 // pred_check_branch
          %3429 = sbr.rel (%p3427) target = $region60
        $region59: #{tpu_custom_call.1} parent=47 // pred_region
          %s3430 = smul.u32 32, %s34
          %3432 = vsyncadd %s3423, 0
          %s3433 = smul.addr %s33, 32
          %s3434 = sadd.s32 %s3430, %s3433
          %s3435 = smul.addr %s3434, 4
          %s3436 = scalar_lea.hbm %s7, %s3435
          %s3438 = sshll.u32 %s3426, 4
          %s3439 = int_to_ptr.vmem [resolvable:$true] %s3438
          %s3440 = sshll.u32 %s3436, 4
          %s3441 = int_to_ptr.hbm [resolvable:$true] %s3440
          %3443 = dma.vmem_to_hbm [thread:$0]  %s3439, 2048, %s3441, %s3423
        $region60: #{tpu_custom_call.1} parent=47 // pred_fallthru
          _
      $region48: #{tpu_custom_call.1} parent=5 // pred_fallthru
        _
      %p3444 = scmp.le.s32.totalorder 2, %s24
      // Predicated region
      $region61: #{tpu_custom_call.1} parent=5 // pred_check
        %p3445 = pneg %p3444
      $region62: #{tpu_custom_call.1} parent=5 // pred_check_branch
        %3447 = sbr.rel (%p3445) target = $region64
      $region63: #{tpu_custom_call.1} parent=5 // pred_region
        %s3448 = ssub.s32 %s24, 2
        // Predicated region
        $region65: #{tpu_custom_call.1} parent=63 // pred_check
          %p3449 = pneg %p228
        $region66: #{tpu_custom_call.1} parent=63 // pred_check_branch
          %3451 = sbr.rel (%p3449) target = $region68
        $region67: #{tpu_custom_call.1} parent=63 // pred_region
          %s3452 = sand.u32 %s213, 1
          %s3453 = scalar_lea.sflag [#allocation5], %s3452
          %s3454 = sand.u32 %s213, 1
          %s3455 = smul.addr %s3454, 128
          %s3456 = scalar_lea.vmem [#allocation8], %s3455
          %3458 = dma.done %s3453, 2048
        $region68: #{tpu_custom_call.1} parent=63 // pred_fallthru
          _
      $region64: #{tpu_custom_call.1} parent=5 // pred_fallthru
        _
    $region6: #{tpu_custom_call.1} parent=1 // loop_footer
      %s28 = sadd.s32 1, %s24
    $region7: #{tpu_custom_call.1} parent=1 // loop_footer_branch
      %23 = sbr.rel target = $region3
    $region8: #{tpu_custom_call.1} parent=1 // loop_exit
      _
    %3459 = vsyncpa [#allocation4], 1
    %s3460 = scalar_lea.sflag [#allocation4], 1
    %3461 = vsyncpa %s3460, 1
    %3462 = vsyncpa [#allocation7], 1
    %s3463 = scalar_lea.sflag [#allocation7], 1
    %3464 = vsyncpa %s3463, 1
    %3465 = vsyncpa [#allocation5], 1
    %s3466 = scalar_lea.sflag [#allocation5], 1
    %3467 = vsyncpa %s3466, 1

</llo_original>
